<compile_context>
chip_gen: v7x
topology: tpu7x:2x2x1
jax: 0.10.0
libtpu: 0.0.40
codegen_flags: <defaults>
</compile_context>

<pallas_src>
import jax
import jax.numpy as jnp
from jax.experimental import pallas as pl
from jax.experimental.pallas import tpu as pltpu

# Module dimensions (fixed by PCN_encoder.__init__)
DIM0_L1, DIM1_L1, DIM2_L1 = 3, 128, 256      # PointNetfeat(3, 128, 256, global_feat=False)
DIM0_L2, DIM1_L2, DIM2_L2 = 512, 512, 1024   # PointNetfeat(512, 512, 1024, global_feat=True)
CIN_PAD = 8                                  # pad 3 input channels -> 8


def _round_up(v, m):
    return (v + m - 1) // m * m


def _chip_config():
    """Generation-aware tile size / VMEM limit / epilogue dtype."""
    try:
        kind = jax.devices()[0].device_kind.lower()
    except Exception:
        kind = ""
    if "v5 lite" in kind or "v5e" in kind:
        # 128 MiB VMEM, no bf16 VPU -> f32 epilogues; win is just step amortization.
        return dict(n_tile=4096, vmem_limit=100 * 1024 * 1024, ep_dtype=jnp.float32)
    if "v6" in kind:
        # 128 MiB VMEM, bf16 VPU.
        return dict(n_tile=4096, vmem_limit=100 * 1024 * 1024, ep_dtype=jnp.bfloat16)
    if "7x" in kind or "v7" in kind:
        # 64 MiB physical VMEM -> leave headroom for Mosaic scratch, keep nt=2048.
        return dict(n_tile=2048, vmem_limit=56 * 1024 * 1024, ep_dtype=jnp.bfloat16)
    # Unknown chip: conservative config that works everywhere.
    return dict(n_tile=2048, vmem_limit=56 * 1024 * 1024, ep_dtype=jnp.float32)


def _mm(a, w_ref):
    """bf16 x bf16 matmul on the MXU with f32 accumulation."""
    return jnp.dot(a.astype(jnp.bfloat16), w_ref[...],
                   preferred_element_type=jnp.float32)


def make_pointfeat_rawmax_kernel(ep_dtype):
    """Pass 1: running per-batch max over points of the RAW h1 @ W2 output."""
    def kernel(x_ref, w1_ref, b1_ref, w2_ref, g_ref):
        n = pl.program_id(1)
        bt, nt, cin = x_ref.shape

        x = x_ref[...].reshape(bt * nt, cin)                              # (Bt*Nt, 8) bf16
        h1 = jnp.maximum(_mm(x, w1_ref).astype(ep_dtype) + b1_ref[...], 0.0)
        z2 = _mm(h1, w2_ref)                                              # RAW (Bt*Nt, 256) f32

        tile_max = jnp.max(z2.reshape(bt, nt, -1), axis=1, keepdims=True)  # (Bt, 1, 256)

        @pl.when(n == 0)
        def _():
            g_ref[...] = tile_max

        @pl.when(n > 0)
        def _():
            g_ref[...] = jnp.maximum(g_ref[...], tile_max)

    return kernel


def make_encode_kernel(ep_dtype):
    """Pass 2: recompute h2, apply layer 2, running max of RAW h3 @ W4 -> v."""
    def kernel(x_ref, w1_ref, b1_ref, w2_ref, b2_ref, w3b_ref, b3eff_ref, w4_ref,
               v_ref):
        n = pl.program_id(1)
        bt, nt, cin = x_ref.shape

        # Recompute pointfeat for this tile. NOTE: this h2 feeds W3[256:] per point,
        # so it keeps its real per-point bias + ReLU (hoisting would be incorrect).
        x = x_ref[...].reshape(bt * nt, cin)
        h1 = jnp.maximum(_mm(x, w1_ref).astype(ep_dtype) + b1_ref[...], 0.0)
        h2 = jnp.maximum(_mm(h1, w2_ref).astype(ep_dtype) + b2_ref[...], 0.0)

        # concat([g_bcast, h2], -1) @ W3 == g @ W3[:256] + h2 @ W3[256:]
        #   -> b3_eff = g @ W3[:256] + b3 is precomputed in XLA and broadcast here.
        h3 = _mm(h2, w3b_ref).astype(ep_dtype).reshape(bt, nt, DIM1_L2)   # (Bt, Nt, 512)
        h3 = jnp.maximum(h3 + b3eff_ref[...], 0.0)

        # RAW final matmul; bias + ReLU hoisted past the max into the wrapper.
        z4 = _mm(h3.reshape(bt * nt, DIM1_L2), w4_ref)                    # (Bt*Nt, 1024) f32
        tile_max = jnp.max(z4.reshape(bt, nt, -1), axis=1, keepdims=True)  # (Bt, 1, 1024)

        @pl.when(n == 0)
        def _():
            v_ref[...] = tile_max

        @pl.when(n > 0)
        def _():
            v_ref[...] = jnp.maximum(v_ref[...], tile_max)

    return kernel


def pcn_encoder(x, params, *, n_tile=None):
    """x: (B, 3, N) float32 (PyTorch NCW). Returns (B, 1024) global feature."""
    w1, b1, w2, b2, w3, b3, w4, b4 = params
    B, C, N = x.shape
    assert C == DIM0_L1

    cfg = _chip_config()
    ep_dtype = cfg["ep_dtype"]
    if n_tile is None:
        n_tile = cfg["n_tile"]
    n_tile = _round_up(n_tile, 128)

    # ---- tile sizing (static, from shapes) ----------------------------------
    nt = min(n_tile, _round_up(N, 128))
    bt = 1
    # Fold batches until each grid step feeds >= 256 rows to the MXU, but only
    # when the fold divides B (no padded-batch waste for odd small batches).
    while bt * nt < 256 and bt * 2 <= B and B % (bt * 2) == 0:
        bt *= 2
    n_pad = _round_up(N, nt)
    b_pad = _round_up(B, bt)

    # ---- host-side layout prep (one fused XLA pass; tiny vs kernel FLOPs) ----
    # channels-last, bf16, zero-pad 3 input channels -> 8 (matches zero rows in w1).
    x_cl = jnp.pad(jnp.transpose(x, (0, 2, 1)).astype(jnp.bfloat16),
                   ((0, 0), (0, 0), (0, CIN_PAD - C)))
    if n_pad > N:   # replicate the last point: duplicates never change a max
        x_cl = jnp.pad(x_cl, ((0, 0), (0, n_pad - N), (0, 0)), mode="edge")
    if b_pad > B:   # junk batch rows, sliced off at the end
        x_cl = jnp.pad(x_cl, ((0, b_pad - B), (0, 0), (0, 0)))

    w1p = jnp.pad(w1, ((0, CIN_PAD - C), (0, 0))).astype(jnp.bfloat16)   # (8, 128)
    w2b = w2.astype(jnp.bfloat16)                                        # (128, 256)
    w3bp = w3[DIM2_L1:].astype(jnp.bfloat16)                             # (256, 512) pointfeat half
    w4b = w4.astype(jnp.bfloat16)                                        # (512, 1024)
    b1e = b1.astype(ep_dtype)
    b2e = b2.astype(ep_dtype)

    grid = (b_pad // bt, n_pad // nt)   # (batch tiles: parallel, point tiles: reduction)

    def wspec(shape):
        # Whole-array block with constant index: stays resident in VMEM.
        return pl.BlockSpec(shape, lambda b, n: (0,) * len(shape))

    x_spec = pl.BlockSpec((bt, nt, CIN_PAD), lambda b, n: (b, n, 0))
    g_spec = pl.BlockSpec((bt, 1, DIM2_L1), lambda b, n: (b, 0, 0))
    v_spec = pl.BlockSpec((bt, 1, DIM2_L2), lambda b, n: (b, 0, 0))
    beff_spec = pl.BlockSpec((bt, 1, DIM1_L2), lambda b, n: (b, 0, 0))

    cparams = pltpu.CompilerParams(
        dimension_semantics=("parallel", "arbitrary"),
        vmem_limit_bytes=cfg["vmem_limit"])

    # ---- pass 1: g_raw = max over points of raw h1 @ W2 ----------------------
    g_raw = pl.pallas_call(
        make_pointfeat_rawmax_kernel(ep_dtype),
        out_shape=jax.ShapeDtypeStruct((b_pad, 1, DIM2_L1), jnp.float32),
        grid_spec=pltpu.PrefetchScalarGridSpec(
            num_scalar_prefetch=0,
            grid=grid,
            in_specs=[x_spec, wspec(w1p.shape), wspec(b1e.shape), wspec(w2b.shape)],
            out_specs=g_spec),
        compiler_params=cparams,
    )(x_cl, w1p, b1e, w2b)

    # ---- tiny XLA glue: hoisted layer-1 epilogue + effective layer-2 bias ----
    # max_n(relu(z2 + b2)) == relu(max_n(z2) + b2)
    g_act = jax.nn.relu(g_raw[:, 0, :] + b2)                             # (b_pad, 256) f32
    b3_eff = jnp.dot(g_act, w3[:DIM2_L1],
                     preferred_element_type=jnp.float32) + b3            # (b_pad, 512) f32
    b3_eff = b3_eff[:, None, :].astype(ep_dtype)                         # (b_pad, 1, 512)

    # ---- pass 2: v_raw = max over points of raw h3 @ W4 ----------------------
    v_raw = pl.pallas_call(
        make_encode_kernel(ep_dtype),
        out_shape=jax.ShapeDtypeStruct((b_pad, 1, DIM2_L2), jnp.float32),
        grid_spec=pltpu.PrefetchScalarGridSpec(
            num_scalar_prefetch=0,
            grid=grid,
            in_specs=[x_spec,
                      wspec(w1p.shape), wspec(b1e.shape),
                      wspec(w2b.shape), wspec(b2e.shape),
                      wspec(w3bp.shape), beff_spec, wspec(w4b.shape)],
            out_specs=v_spec),
        compiler_params=cparams,
    )(x_cl, w1p, b1e, w2b, b2e, w3bp, b3_eff, w4b)

    # Hoisted final epilogue: max_n(relu(z4 + b4)) == relu(max_n(z4) + b4).
    return jax.nn.relu(v_raw[:B, 0, :] + b4)


def init_params(key):
    """Deterministic parameter init (PyTorch-Conv1d-style uniform bounds).
    Weights stored matmul-form: (C_in, C_out); biases (1, C_out)."""
    ks = jax.random.split(key, 4)

    def lin(k, fan_in, fan_out):
        kw, kb = jax.random.split(k)
        bound = 1.0 / float(fan_in) ** 0.5
        w = jax.random.uniform(kw, (fan_in, fan_out), jnp.float32, -bound, bound)
        b = jax.random.uniform(kb, (1, fan_out), jnp.float32, -bound, bound)
        return w, b

    w1, b1 = lin(ks[0], DIM0_L1, DIM1_L1)   # layer1.conv1: 3 -> 128
    w2, b2 = lin(ks[1], DIM1_L1, DIM2_L1)   # layer1.conv2: 128 -> 256
    w3, b3 = lin(ks[2], DIM0_L2, DIM1_L2)   # layer2.conv1: 512 -> 512
    w4, b4 = lin(ks[3], DIM1_L2, DIM2_L2)   # layer2.conv2: 512 -> 1024
    return (w1, b1, w2, b2, w3, b3, w4, b4)


def ref_forward(x, params):
    """Pure-JAX f32 reference mirroring the PyTorch forward exactly."""
    w1, b1, w2, b2, w3, b3, w4, b4 = params
    xc = jnp.transpose(x, (0, 2, 1))                                   # (B, N, 3)
    h1 = jax.nn.relu(xc @ w1 + b1)
    h2 = jax.nn.relu(h1 @ w2 + b2)                                     # pointfeat (B, N, 256)
    g = jnp.max(h2, axis=1, keepdims=True)                             # (B, 1, 256)
    f = jnp.concatenate([jnp.broadcast_to(g, h2.shape[:2] + (DIM2_L1,)), h2], axis=-1)
    h3 = jax.nn.relu(f @ w3 + b3)
    h4 = jax.nn.relu(h3 @ w4 + b4)
    return jnp.max(h4, axis=1)                                         # (B, 1024)


if __name__ == "__main__":
    key = jax.random.PRNGKey(0)
    pkey, k1, k2 = jax.random.split(key, 3)
    params = init_params(pkey)

    fwd = jax.jit(pcn_encoder, static_argnames=("n_tile",))

    # Case 1: B=2, N=128 -- exercises batch folding (Bt=2 -> 256 MXU rows),
    # single point tile per batch tile, chip-default n_tile / vmem config.
    x1 = jax.random.normal(k1, (2, DIM0_L1, 128), jnp.float32)
    out1 = jax.block_until_ready(fwd(x1, params, n_tile=None))
    ref1 = ref_forward(x1, params)
    assert out1.shape == (2, DIM2_L2), out1.shape
    # bf16 MXU operands (f32 accumulation) -> looser tolerance vs the f32 reference.
    assert jnp.allclose(out1, ref1, atol=3e-2, rtol=3e-2), "case 1 mismatch vs reference"

    # Case 2: B=3, N=300 with a forced small point tile -- exercises N tiling
    # (3 tiles + running max), edge-replication point padding (300 -> 384) and
    # the divisibility-only batch-fold heuristic (B=3 -> bt=1, no batch padding).
    x2 = jax.random.normal(k2, (3, DIM0_L1, 300), jnp.float32)
    out2 = jax.block_until_ready(fwd(x2, params, n_tile=128))
    ref2 = ref_forward(x2, params)
    assert out2.shape == (3, DIM2_L2), out2.shape
    assert jnp.allclose(out2, ref2, atol=3e-2, rtol=3e-2), "case 2 mismatch vs reference"

    print("KERNEL_OK")
</pallas_src>

<mosaic_0001>
module attributes {stable_mosaic.version = 11 : i64} {
  func.func @kernel(%arg0: i32, %arg1: i32, %arg2: memref<2x128x8xbf16, #tpu.memory_space<vmem>>, %arg3: memref<8x128xbf16, #tpu.memory_space<vmem>>, %arg4: memref<1x128xf32, #tpu.memory_space<vmem>>, %arg5: memref<128x256xbf16, #tpu.memory_space<vmem>>, %arg6: memref<2x1x256xf32, #tpu.memory_space<vmem>>) attributes {dimension_semantics = [#tpu.dimension_semantics<parallel>, #tpu.dimension_semantics<arbitrary>], iteration_bounds = array<i64: 1, 1>, scalar_prefetch = 0 : i64, scratch_operands = 0 : i64, tpu.core_type = #tpu.core_type<tc>, window_params = [{transform_indices = @transform_0, window_bounds = array<i64: 2, 128, 8>}, {pipeline_mode = #tpu.pipeline_mode<synchronous>, transform_indices = @transform_1, window_bounds = array<i64: 8, 128>}, {pipeline_mode = #tpu.pipeline_mode<synchronous>, transform_indices = @transform_2, window_bounds = array<i64: 1, 128>}, {pipeline_mode = #tpu.pipeline_mode<synchronous>, transform_indices = @transform_3, window_bounds = array<i64: 128, 256>}, {transform_indices = @transform_4, window_bounds = array<i64: 2, 1, 256>}]} {
    %c0 = arith.constant 0 : index
    %c0_0 = arith.constant 0 : index
    %c0_1 = arith.constant 0 : index
    %0 = vector.load %arg2[%c0, %c0_0, %c0_1] : memref<2x128x8xbf16, #tpu.memory_space<vmem>>, vector<2x128x8xbf16>
    %1 = vector.shape_cast %0 : vector<2x128x8xbf16> to vector<256x8xbf16>
    %c0_2 = arith.constant 0 : index
    %c0_3 = arith.constant 0 : index
    %2 = vector.load %arg3[%c0_2, %c0_3] : memref<8x128xbf16, #tpu.memory_space<vmem>>, vector<8x128xbf16>
    %cst = arith.constant dense<0.000000e+00> : vector<256x128xf32>
    %3 = tpu.matmul %1, %2, %cst {dimension_numbers = #tpu.dot_dimension_numbers<[1], [0], [0], [1], [0, 0, 1, 1], [], []>} : vector<256x8xbf16>, vector<8x128xbf16>, vector<256x128xf32> -> vector<256x128xf32>
    %c0_4 = arith.constant 0 : index
    %c0_5 = arith.constant 0 : index
    %4 = vector.load %arg4[%c0_4, %c0_5] : memref<1x128xf32, #tpu.memory_space<vmem>>, vector<1x128xf32>
    %5 = vector.broadcast %4 : vector<1x128xf32> to vector<256x128xf32>
    %6 = arith.addf %3, %5 : vector<256x128xf32>
    %cst_6 = arith.constant 0.000000e+00 : f32
    %7 = vector.broadcast %cst_6 : f32 to vector<256x128xf32>
    %8 = arith.maximumf %6, %7 : vector<256x128xf32>
    %9 = arith.truncf %8 : vector<256x128xf32> to vector<256x128xbf16>
    %c0_7 = arith.constant 0 : index
    %c0_8 = arith.constant 0 : index
    %10 = vector.load %arg5[%c0_7, %c0_8] : memref<128x256xbf16, #tpu.memory_space<vmem>>, vector<128x256xbf16>
    %cst_9 = arith.constant dense<0.000000e+00> : vector<256x256xf32>
    %11 = tpu.matmul %9, %10, %cst_9 {dimension_numbers = #tpu.dot_dimension_numbers<[1], [0], [0], [1], [0, 0, 1, 1], [], []>} : vector<256x128xbf16>, vector<128x256xbf16>, vector<256x256xf32> -> vector<256x256xf32>
    %12 = vector.shape_cast %11 : vector<256x256xf32> to vector<2x128x256xf32>
    %cst_10 = arith.constant dense<0xFF800000> : vector<2x256xf32>
    %13 = vector.multi_reduction <maximumf>, %12, %cst_10 [1] : vector<2x128x256xf32> to vector<2x256xf32>
    %14 = vector.shape_cast %13 : vector<2x256xf32> to vector<2x1x256xf32>
    %c0_i32 = arith.constant 0 : i32
    %15 = arith.cmpi eq, %arg1, %c0_i32 : i32
    %16 = arith.extui %15 : i1 to i32
    %c0_i32_11 = arith.constant 0 : i32
    %17 = arith.cmpi ne, %16, %c0_i32_11 : i32
    scf.if %17 {
      %c0_14 = arith.constant 0 : index
      %c0_15 = arith.constant 0 : index
      %c0_16 = arith.constant 0 : index
      %21 = vector.load %arg6[%c0_14, %c0_15, %c0_16] : memref<2x1x256xf32, #tpu.memory_space<vmem>>, vector<2x1x256xf32>
      tpu.vector_store %arg6[%c0_14, %c0_15, %c0_16], %14 {strides = array<i32>} : memref<2x1x256xf32, #tpu.memory_space<vmem>>, vector<2x1x256xf32>,
    } else {
    }
    %c0_i32_12 = arith.constant 0 : i32
    %18 = arith.cmpi sgt, %arg1, %c0_i32_12 : i32
    %19 = arith.extui %18 : i1 to i32
    %c0_i32_13 = arith.constant 0 : i32
    %20 = arith.cmpi ne, %19, %c0_i32_13 : i32
    scf.if %20 {
      %c0_14 = arith.constant 0 : index
      %c0_15 = arith.constant 0 : index
      %c0_16 = arith.constant 0 : index
      %21 = vector.load %arg6[%c0_14, %c0_15, %c0_16] : memref<2x1x256xf32, #tpu.memory_space<vmem>>, vector<2x1x256xf32>
      %22 = arith.maximumf %21, %14 : vector<2x1x256xf32>
      %c0_17 = arith.constant 0 : index
      %c0_18 = arith.constant 0 : index
      %c0_19 = arith.constant 0 : index
      %23 = vector.load %arg6[%c0_17, %c0_18, %c0_19] : memref<2x1x256xf32, #tpu.memory_space<vmem>>, vector<2x1x256xf32>
      tpu.vector_store %arg6[%c0_17, %c0_18, %c0_19], %22 {strides = array<i32>} : memref<2x1x256xf32, #tpu.memory_space<vmem>>, vector<2x1x256xf32>,
    } else {
    }
    return
  }
  func.func @transform_0(%arg0: i32, %arg1: i32) -> (i32, i32, i32) {
    %c0_i32 = arith.constant 0 : i32
    %c0_i32_0 = arith.constant 0 : i32
    return %arg0, %arg1, %c0_i32 : i32, i32, i32
  }
  func.func @transform_1(%arg0: i32, %arg1: i32) -> (i32, i32) {
    %c0_i32 = arith.constant 0 : i32
    %c0_i32_0 = arith.constant 0 : i32
    %c0_i32_1 = arith.constant 0 : i32
    return %c0_i32, %c0_i32_0 : i32, i32
  }
  func.func @transform_2(%arg0: i32, %arg1: i32) -> (i32, i32) {
    %c0_i32 = arith.constant 0 : i32
    %c0_i32_0 = arith.constant 0 : i32
    %c0_i32_1 = arith.constant 0 : i32
    return %c0_i32, %c0_i32_0 : i32, i32
  }
  func.func @transform_3(%arg0: i32, %arg1: i32) -> (i32, i32) {
    %c0_i32 = arith.constant 0 : i32
    %c0_i32_0 = arith.constant 0 : i32
    %c0_i32_1 = arith.constant 0 : i32
    return %c0_i32, %c0_i32_0 : i32, i32
  }
  func.func @transform_4(%arg0: i32, %arg1: i32) -> (i32, i32, i32) {
    %c0_i32 = arith.constant 0 : i32
    %c0_i32_0 = arith.constant 0 : i32
    %c0_i32_1 = arith.constant 0 : i32
    return %arg0, %c0_i32, %c0_i32_0 : i32, i32, i32
  }
}

module attributes {stable_mosaic.version = 11 : i64} {
  func.func @kernel(%arg0: i32, %arg1: i32, %arg2: memref<2x128x8xbf16, #tpu.memory_space<vmem>>, %arg3: memref<8x128xbf16, #tpu.memory_space<vmem>>, %arg4: memref<1x128xf32, #tpu.memory_space<vmem>>, %arg5: memref<128x256xbf16, #tpu.memory_space<vmem>>, %arg6: memref<1x256xf32, #tpu.memory_space<vmem>>, %arg7: memref<256x512xbf16, #tpu.memory_space<vmem>>, %arg8: memref<2x1x512xf32, #tpu.memory_space<vmem>>, %arg9: memref<512x1024xbf16, #tpu.memory_space<vmem>>, %arg10: memref<2x1x1024xf32, #tpu.memory_space<vmem>>) attributes {dimension_semantics = [#tpu.dimension_semantics<parallel>, #tpu.dimension_semantics<arbitrary>], iteration_bounds = array<i64: 1, 1>, scalar_prefetch = 0 : i64, scratch_operands = 0 : i64, tpu.core_type = #tpu.core_type<tc>, window_params = [{transform_indices = @transform_0, window_bounds = array<i64: 2, 128, 8>}, {pipeline_mode = #tpu.pipeline_mode<synchronous>, transform_indices = @transform_1, window_bounds = array<i64: 8, 128>}, {pipeline_mode = #tpu.pipeline_mode<synchronous>, transform_indices = @transform_2, window_bounds = array<i64: 1, 128>}, {pipeline_mode = #tpu.pipeline_mode<synchronous>, transform_indices = @transform_3, window_bounds = array<i64: 128, 256>}, {pipeline_mode = #tpu.pipeline_mode<synchronous>, transform_indices = @transform_4, window_bounds = array<i64: 1, 256>}, {pipeline_mode = #tpu.pipeline_mode<synchronous>, transform_indices = @transform_5, window_bounds = array<i64: 256, 512>}, {transform_indices = @transform_6, window_bounds = array<i64: 2, 1, 512>}, {pipeline_mode = #tpu.pipeline_mode<synchronous>, transform_indices = @transform_7, window_bounds = array<i64: 512, 1024>}, {transform_indices = @transform_8, window_bounds = array<i64: 2, 1, 1024>}]} {
    %c0 = arith.constant 0 : index
    %c0_0 = arith.constant 0 : index
    %c0_1 = arith.constant 0 : index
    %0 = vector.load %arg2[%c0, %c0_0, %c0_1] : memref<2x128x8xbf16, #tpu.memory_space<vmem>>, vector<2x128x8xbf16>
    %1 = vector.shape_cast %0 : vector<2x128x8xbf16> to vector<256x8xbf16>
    %c0_2 = arith.constant 0 : index
    %c0_3 = arith.constant 0 : index
    %2 = vector.load %arg3[%c0_2, %c0_3] : memref<8x128xbf16, #tpu.memory_space<vmem>>, vector<8x128xbf16>
    %cst = arith.constant dense<0.000000e+00> : vector<256x128xf32>
    %3 = tpu.matmul %1, %2, %cst {dimension_numbers = #tpu.dot_dimension_numbers<[1], [0], [0], [1], [0, 0, 1, 1], [], []>} : vector<256x8xbf16>, vector<8x128xbf16>, vector<256x128xf32> -> vector<256x128xf32>
    %c0_4 = arith.constant 0 : index
    %c0_5 = arith.constant 0 : index
    %4 = vector.load %arg4[%c0_4, %c0_5] : memref<1x128xf32, #tpu.memory_space<vmem>>, vector<1x128xf32>
    %5 = vector.broadcast %4 : vector<1x128xf32> to vector<256x128xf32>
    %6 = arith.addf %3, %5 : vector<256x128xf32>
    %cst_6 = arith.constant 0.000000e+00 : f32
    %7 = vector.broadcast %cst_6 : f32 to vector<256x128xf32>
    %8 = arith.maximumf %6, %7 : vector<256x128xf32>
    %9 = arith.truncf %8 : vector<256x128xf32> to vector<256x128xbf16>
    %c0_7 = arith.constant 0 : index
    %c0_8 = arith.constant 0 : index
    %10 = vector.load %arg5[%c0_7, %c0_8] : memref<128x256xbf16, #tpu.memory_space<vmem>>, vector<128x256xbf16>
    %cst_9 = arith.constant dense<0.000000e+00> : vector<256x256xf32>
    %11 = tpu.matmul %9, %10, %cst_9 {dimension_numbers = #tpu.dot_dimension_numbers<[1], [0], [0], [1], [0, 0, 1, 1], [], []>} : vector<256x128xbf16>, vector<128x256xbf16>, vector<256x256xf32> -> vector<256x256xf32>
    %c0_10 = arith.constant 0 : index
    %c0_11 = arith.constant 0 : index
    %12 = vector.load %arg6[%c0_10, %c0_11] : memref<1x256xf32, #tpu.memory_space<vmem>>, vector<1x256xf32>
    %13 = vector.broadcast %12 : vector<1x256xf32> to vector<256x256xf32>
    %14 = arith.addf %11, %13 : vector<256x256xf32>
    %cst_12 = arith.constant 0.000000e+00 : f32
    %15 = vector.broadcast %cst_12 : f32 to vector<256x256xf32>
    %16 = arith.maximumf %14, %15 : vector<256x256xf32>
    %17 = arith.truncf %16 : vector<256x256xf32> to vector<256x256xbf16>
    %c0_13 = arith.constant 0 : index
    %c0_14 = arith.constant 0 : index
    %18 = vector.load %arg7[%c0_13, %c0_14] : memref<256x512xbf16, #tpu.memory_space<vmem>>, vector<256x512xbf16>
    %cst_15 = arith.constant dense<0.000000e+00> : vector<256x512xf32>
    %19 = tpu.matmul %17, %18, %cst_15 {dimension_numbers = #tpu.dot_dimension_numbers<[1], [0], [0], [1], [0, 0, 1, 1], [], []>} : vector<256x256xbf16>, vector<256x512xbf16>, vector<256x512xf32> -> vector<256x512xf32>
    %20 = vector.shape_cast %19 : vector<256x512xf32> to vector<2x128x512xf32>
    %c0_16 = arith.constant 0 : index
    %c0_17 = arith.constant 0 : index
    %c0_18 = arith.constant 0 : index
    %21 = vector.load %arg8[%c0_16, %c0_17, %c0_18] : memref<2x1x512xf32, #tpu.memory_space<vmem>>, vector<2x1x512xf32>
    %22 = vector.broadcast %21 : vector<2x1x512xf32> to vector<2x128x512xf32>
    %23 = arith.addf %20, %22 : vector<2x128x512xf32>
    %cst_19 = arith.constant 0.000000e+00 : f32
    %24 = vector.broadcast %cst_19 : f32 to vector<2x128x512xf32>
    %25 = arith.maximumf %23, %24 : vector<2x128x512xf32>
    %26 = vector.shape_cast %25 : vector<2x128x512xf32> to vector<256x512xf32>
    %27 = arith.truncf %26 : vector<256x512xf32> to vector<256x512xbf16>
    %c0_20 = arith.constant 0 : index
    %c0_21 = arith.constant 0 : index
    %28 = vector.load %arg9[%c0_20, %c0_21] : memref<512x1024xbf16, #tpu.memory_space<vmem>>, vector<512x1024xbf16>
    %cst_22 = arith.constant dense<0.000000e+00> : vector<256x1024xf32>
    %29 = tpu.matmul %27, %28, %cst_22 {dimension_numbers = #tpu.dot_dimension_numbers<[1], [0], [0], [1], [0, 0, 1, 1], [], []>} : vector<256x512xbf16>, vector<512x1024xbf16>, vector<256x1024xf32> -> vector<256x1024xf32>
    %30 = vector.shape_cast %29 : vector<256x1024xf32> to vector<2x128x1024xf32>
    %cst_23 = arith.constant dense<0xFF800000> : vector<2x1024xf32>
    %31 = vector.multi_reduction <maximumf>, %30, %cst_23 [1] : vector<2x128x1024xf32> to vector<2x1024xf32>
    %32 = vector.shape_cast %31 : vector<2x1024xf32> to vector<2x1x1024xf32>
    %c0_i32 = arith.constant 0 : i32
    %33 = arith.cmpi eq, %arg1, %c0_i32 : i32
    %34 = arith.extui %33 : i1 to i32
    %c0_i32_24 = arith.constant 0 : i32
    %35 = arith.cmpi ne, %34, %c0_i32_24 : i32
    scf.if %35 {
      %c0_27 = arith.constant 0 : index
      %c0_28 = arith.constant 0 : index
      %c0_29 = arith.constant 0 : index
      %39 = vector.load %arg10[%c0_27, %c0_28, %c0_29] : memref<2x1x1024xf32, #tpu.memory_space<vmem>>, vector<2x1x1024xf32>
      tpu.vector_store %arg10[%c0_27, %c0_28, %c0_29], %32 {strides = array<i32>} : memref<2x1x1024xf32, #tpu.memory_space<vmem>>, vector<2x1x1024xf32>,
    } else {
    }
    %c0_i32_25 = arith.constant 0 : i32
    %36 = arith.cmpi sgt, %arg1, %c0_i32_25 : i32
    %37 = arith.extui %36 : i1 to i32
    %c0_i32_26 = arith.constant 0 : i32
    %38 = arith.cmpi ne, %37, %c0_i32_26 : i32
    scf.if %38 {
      %c0_27 = arith.constant 0 : index
      %c0_28 = arith.constant 0 : index
      %c0_29 = arith.constant 0 : index
      %39 = vector.load %arg10[%c0_27, %c0_28, %c0_29] : memref<2x1x1024xf32, #tpu.memory_space<vmem>>, vector<2x1x1024xf32>
      %40 = arith.maximumf %39, %32 : vector<2x1x1024xf32>
      %c0_30 = arith.constant 0 : index
      %c0_31 = arith.constant 0 : index
      %c0_32 = arith.constant 0 : index
      %41 = vector.load %arg10[%c0_30, %c0_31, %c0_32] : memref<2x1x1024xf32, #tpu.memory_space<vmem>>, vector<2x1x1024xf32>
      tpu.vector_store %arg10[%c0_30, %c0_31, %c0_32], %40 {strides = array<i32>} : memref<2x1x1024xf32, #tpu.memory_space<vmem>>, vector<2x1x1024xf32>,
    } else {
    }
    return
  }
  func.func @transform_0(%arg0: i32, %arg1: i32) -> (i32, i32, i32) {
    %c0_i32 = arith.constant 0 : i32
    %c0_i32_0 = arith.constant 0 : i32
    return %arg0, %arg1, %c0_i32 : i32, i32, i32
  }
  func.func @transform_1(%arg0: i32, %arg1: i32) -> (i32, i32) {
    %c0_i32 = arith.constant 0 : i32
    %c0_i32_0 = arith.constant 0 : i32
    %c0_i32_1 = arith.constant 0 : i32
    return %c0_i32, %c0_i32_0 : i32, i32
  }
  func.func @transform_2(%arg0: i32, %arg1: i32) -> (i32, i32) {
    %c0_i32 = arith.constant 0 : i32
    %c0_i32_0 = arith.constant 0 : i32
    %c0_i32_1 = arith.constant 0 : i32
    return %c0_i32, %c0_i32_0 : i32, i32
  }
  func.func @transform_3(%arg0: i32, %arg1: i32) -> (i32, i32) {
    %c0_i32 = arith.constant 0 : i32
    %c0_i32_0 = arith.constant 0 : i32
    %c0_i32_1 = arith.constant 0 : i32
    return %c0_i32, %c0_i32_0 : i32, i32
  }
  func.func @transform_4(%arg0: i32, %arg1: i32) -> (i32, i32) {
    %c0_i32 = arith.constant 0 : i32
    %c0_i32_0 = arith.constant 0 : i32
    %c0_i32_1 = arith.constant 0 : i32
    return %c0_i32, %c0_i32_0 : i32, i32
  }
  func.func @transform_5(%arg0: i32, %arg1: i32) -> (i32, i32) {
    %c0_i32 = arith.constant 0 : i32
    %c0_i32_0 = arith.constant 0 : i32
    %c0_i32_1 = arith.constant 0 : i32
    return %c0_i32, %c0_i32_0 : i32, i32
  }
  func.func @transform_6(%arg0: i32, %arg1: i32) -> (i32, i32, i32) {
    %c0_i32 = arith.constant 0 : i32
    %c0_i32_0 = arith.constant 0 : i32
    %c0_i32_1 = arith.constant 0 : i32
    return %arg0, %c0_i32, %c0_i32_0 : i32, i32, i32
  }
  func.func @transform_7(%arg0: i32, %arg1: i32) -> (i32, i32) {
    %c0_i32 = arith.constant 0 : i32
    %c0_i32_0 = arith.constant 0 : i32
    %c0_i32_1 = arith.constant 0 : i32
    return %c0_i32, %c0_i32_0 : i32, i32
  }
  func.func @transform_8(%arg0: i32, %arg1: i32) -> (i32, i32, i32) {
    %c0_i32 = arith.constant 0 : i32
    %c0_i32_0 = arith.constant 0 : i32
    %c0_i32_1 = arith.constant 0 : i32
    return %arg0, %c0_i32, %c0_i32_0 : i32, i32, i32
  }
}

</mosaic_0001>

<llo_original>
// kernel: pcn_encoder.2
$region0: #{pcn_encoder.2}
  #allocation0 [shape = 'u32[]', space=smem, size = 0x4, offset = 0x4, fixed_abs, tag = 'smem constant byte address 0x4 - core index']
  #allocation1 [shape = 'u32[144,128]{1,0:T(1,128)}', space=vmem, size = 0x12000, scoped, tag = 'internal scratch']
  %s0 = inlined_call_operand.vmem [shape: bf16[2,128,8], index: 0, kind: input, shape index: {}]
  %s1 = inlined_call_operand.vmem [shape: bf16[8,128], index: 1, kind: input, shape index: {}]
  %s2 = inlined_call_operand.hbm [shape: f32[1,128], index: 2, kind: input, shape index: {}]
  %s3 = inlined_call_operand.vmem [shape: bf16[128,256], index: 3, kind: input, shape index: {}]
  %s4 = inlined_call_operand.vmem [shape: f32[2,1,256], index: 4, kind: output, shape index: {}]
  %s5 = sld [smem:[#allocation0]]
  $region38: #{pcn_encoder.2} parent=0
    _
  %s7 = ssub.s32 1, %s5
  %s8 = scalar_select 0, %s7, %s5
  $region1: #{pcn_encoder.2} parent=0
    #allocation2 [shape = 'u8[512]{0}', space=vmem, size = 0x400, scoped, tag = 'input window, operand 2, single buffered']
    #allocation3 [shape = 's32[1]{0}', space=sflag, size = 0x4, scoped, tag = 'scoped memory for pcn_encoder.2']
    %9 = vsyncpa [#allocation3], 0
    // Predicated region
    $region2: #{pcn_encoder.2} parent=1 // pred_check
      _
    $region3: #{pcn_encoder.2} parent=1 // pred_check_branch
      %11 = sbr.rel (0) target = $region5
    $region4: #{pcn_encoder.2} parent=1 // pred_region
      _
    $region5: #{pcn_encoder.2} parent=1 // pred_fallthru
      _
    // Predicated region
    $region6: #{pcn_encoder.2} parent=1 // pred_check
      _
    $region7: #{pcn_encoder.2} parent=1 // pred_check_branch
      %13 = sbr.rel (0) target = $region9
    $region8: #{pcn_encoder.2} parent=1 // pred_region
      _
    $region9: #{pcn_encoder.2} parent=1 // pred_fallthru
      _
    // Predicated region
    $region10: #{pcn_encoder.2} parent=1 // pred_check
      _
    $region11: #{pcn_encoder.2} parent=1 // pred_check_branch
      %15 = sbr.rel (0) target = $region13
    $region12: #{pcn_encoder.2} parent=1 // pred_region
      %s17 = ssub.s32 16, 16
      %18 = vsyncadd [#allocation3], %s17
      %s20 = sshll.u32 [#allocation2], 4
      %s21 = int_to_ptr.vmem [resolvable:$true] %s20
      %23 = dma.hbm_to_vmem [thread:$0]  %s2, 16, %s21, [#allocation3]
    $region13: #{pcn_encoder.2} parent=1 // pred_fallthru
      _
    // Predicated region
    $region14: #{pcn_encoder.2} parent=1 // pred_check
      _
    $region15: #{pcn_encoder.2} parent=1 // pred_check_branch
      %25 = sbr.rel (0) target = $region17
    $region16: #{pcn_encoder.2} parent=1 // pred_region
      _
    $region17: #{pcn_encoder.2} parent=1 // pred_fallthru
      _
    // Predicated region
    $region18: #{pcn_encoder.2} parent=1 // pred_check
      _
    $region19: #{pcn_encoder.2} parent=1 // pred_check_branch
      %27 = sbr.rel (0) target = $region21
    $region20: #{pcn_encoder.2} parent=1 // pred_region
      %28 = dma.done [#allocation3], 16
    $region21: #{pcn_encoder.2} parent=1 // pred_fallthru
      _
    %v30 = vld [vmem:[%s0] sm:$0xf]
    %v31 = vld [vmem:[%s0 + $0x4] sm:$0xf]
    %v32 = vld [vmem:[%s0 + $0x8] sm:$0xf]
    %v33 = vld [vmem:[%s0 + $0xc] sm:$0xf]
    %v34 = vld [vmem:[%s0 + $0x10] sm:$0xf]
    %v35 = vld [vmem:[%s0 + $0x14] sm:$0xf]
    %v36 = vld [vmem:[%s0 + $0x18] sm:$0xf]
    %v37 = vld [vmem:[%s0 + $0x1c] sm:$0xf]
    %v38 = vld [vmem:[%s0 + $0x20] sm:$0xf]
    %v39 = vld [vmem:[%s0 + $0x24] sm:$0xf]
    %v40 = vld [vmem:[%s0 + $0x28] sm:$0xf]
    %v41 = vld [vmem:[%s0 + $0x2c] sm:$0xf]
    %v42 = vld [vmem:[%s0 + $0x30] sm:$0xf]
    %v43 = vld [vmem:[%s0 + $0x34] sm:$0xf]
    %v44 = vld [vmem:[%s0 + $0x38] sm:$0xf]
    %v45 = vld [vmem:[%s0 + $0x3c] sm:$0xf]
    %v46 = vld [vmem:[%s0 + $0x40] sm:$0xf]
    %v47 = vld [vmem:[%s0 + $0x44] sm:$0xf]
    %v48 = vld [vmem:[%s0 + $0x48] sm:$0xf]
    %v49 = vld [vmem:[%s0 + $0x4c] sm:$0xf]
    %v50 = vld [vmem:[%s0 + $0x50] sm:$0xf]
    %v51 = vld [vmem:[%s0 + $0x54] sm:$0xf]
    %v52 = vld [vmem:[%s0 + $0x58] sm:$0xf]
    %v53 = vld [vmem:[%s0 + $0x5c] sm:$0xf]
    %v54 = vld [vmem:[%s0 + $0x60] sm:$0xf]
    %v55 = vld [vmem:[%s0 + $0x64] sm:$0xf]
    %v56 = vld [vmem:[%s0 + $0x68] sm:$0xf]
    %v57 = vld [vmem:[%s0 + $0x6c] sm:$0xf]
    %v58 = vld [vmem:[%s0 + $0x70] sm:$0xf]
    %v59 = vld [vmem:[%s0 + $0x74] sm:$0xf]
    %v60 = vld [vmem:[%s0 + $0x78] sm:$0xf]
    %v61 = vld [vmem:[%s0 + $0x7c] sm:$0xf]
    %v62 = vld [vmem:[%s1] sm:$0xf]
    %v63 = vld [vmem:[#allocation2] sm:$0x1]
    %v65 = vlaneseq
    %v66 = vshrl.u32 %v65, 7
    %v67 = vsub.s32 0, %v66
    %v68 = vrot.slane %v63, %v67
    %v102 = vunpack.c.l.b16 %v30
    %v103 = vunpack.c.l.b16 %v31
    %v104 = vunpack.c.l.b16 %v32
    %v105 = vunpack.c.l.b16 %v33
    %v106 = vunpack.c.l.b16 %v34
    %v107 = vunpack.c.l.b16 %v35
    %v108 = vunpack.c.l.b16 %v36
    %v109 = vunpack.c.l.b16 %v37
    %v110 = vunpack.c.l.b16 %v38
    %v111 = vunpack.c.l.b16 %v39
    %v112 = vunpack.c.l.b16 %v40
    %v113 = vunpack.c.l.b16 %v41
    %v114 = vunpack.c.l.b16 %v42
    %v115 = vunpack.c.l.b16 %v43
    %v116 = vunpack.c.l.b16 %v44
    %v117 = vunpack.c.l.b16 %v45
    %v118 = vunpack.c.l.b16 %v46
    %v119 = vunpack.c.l.b16 %v47
    %v120 = vunpack.c.l.b16 %v48
    %v121 = vunpack.c.l.b16 %v49
    %v122 = vunpack.c.l.b16 %v50
    %v123 = vunpack.c.l.b16 %v51
    %v124 = vunpack.c.l.b16 %v52
    %v125 = vunpack.c.l.b16 %v53
    %v126 = vunpack.c.l.b16 %v54
    %v127 = vunpack.c.l.b16 %v55
    %v128 = vunpack.c.l.b16 %v56
    %v129 = vunpack.c.l.b16 %v57
    %v130 = vunpack.c.l.b16 %v58
    %v131 = vunpack.c.l.b16 %v59
    %v132 = vunpack.c.l.b16 %v60
    %v133 = vunpack.c.l.b16 %v61
    %v134 = vpack.c.b16 %v103, %v102
    %v135 = vpack.c.b16 %v105, %v104
    %v136 = vpack.c.b16 %v107, %v106
    %v137 = vpack.c.b16 %v109, %v108
    %v138 = vpack.c.b16 %v111, %v110
    %v139 = vpack.c.b16 %v113, %v112
    %v140 = vpack.c.b16 %v115, %v114
    %v141 = vpack.c.b16 %v117, %v116
    %v142 = vpack.c.b16 %v119, %v118
    %v143 = vpack.c.b16 %v121, %v120
    %v144 = vpack.c.b16 %v123, %v122
    %v145 = vpack.c.b16 %v125, %v124
    %v146 = vpack.c.b16 %v127, %v126
    %v147 = vpack.c.b16 %v129, %v128
    %v148 = vpack.c.b16 %v131, %v130
    %v149 = vpack.c.b16 %v133, %v132
    %vm150 = vcmask 64512
    %v152 = vsel %vm150, %v134, 0
    %v155 = vsel %vm150, %v135, 0
    %v158 = vsel %vm150, %v136, 0
    %v161 = vsel %vm150, %v137, 0
    %v164 = vsel %vm150, %v138, 0
    %v167 = vsel %vm150, %v139, 0
    %v170 = vsel %vm150, %v140, 0
    %v173 = vsel %vm150, %v141, 0
    %v176 = vsel %vm150, %v142, 0
    %v179 = vsel %vm150, %v143, 0
    %v182 = vsel %vm150, %v144, 0
    %v185 = vsel %vm150, %v145, 0
    %v188 = vsel %vm150, %v146, 0
    %v191 = vsel %vm150, %v147, 0
    %v194 = vsel %vm150, %v148, 0
    %v197 = vsel %vm150, %v149, 0
    %vm199 = vcmask 1043456
    %v201 = vsel %vm199, %v62, 0
    %203 = vmatprep.subr.bf16.mxu0 0
    %204 = vmatpush1.bf16.msra.mxu0 %v201
    %205 = vmatprep.subr.bf16.mxu0 0
    %206 = vmatpush1.bf16.msra.mxu0 0
    %207 = vmatprep.subr.bf16.mxu0 0
    %208 = vmatpush1.bf16.msra.mxu0 0
    %209 = vmatprep.subr.bf16.mxu0 0
    %210 = vmatpush1.bf16.msra.mxu0 0
    %211 = vmatprep.subr.bf16.mxu0 0
    %212 = vmatpush1.bf16.msra.mxu0 0
    %213 = vmatprep.subr.bf16.mxu0 0
    %214 = vmatpush1.bf16.msra.mxu0 0
    %215 = vmatprep.subr.bf16.mxu0 0
    %216 = vmatpush1.bf16.msra.mxu0 0
    %217 = vmatprep.subr.bf16.mxu0 0
    %218 = vmatpush1.bf16.msra.mxu0 0
    %219 = vmatprep.subr.bf16.mxu0 0
    %220 = vmatpush1.bf16.msra.mxu0 0
    %221 = vmatprep.subr.bf16.mxu0 0
    %222 = vmatpush1.bf16.msra.mxu0 0
    %223 = vmatprep.subr.bf16.mxu0 0
    %224 = vmatpush1.bf16.msra.mxu0 0
    %225 = vmatprep.subr.bf16.mxu0 0
    %226 = vmatpush1.bf16.msra.mxu0 0
    %227 = vmatprep.subr.bf16.mxu0 0
    %228 = vmatpush1.bf16.msra.mxu0 0
    %229 = vmatprep.subr.bf16.mxu0 0
    %230 = vmatpush1.bf16.msra.mxu0 0
    %231 = vmatprep.subr.bf16.mxu0 0
    %232 = vmatpush1.bf16.msra.mxu0 0
    %233 = vmatprep.subr.bf16.mxu0 0
    %234 = vmatpush1.bf16.msra.mxu0 0
    %235 = vmatprep.mubr.bf16.mxu0 0
    %236 = vmatmul.mubr.bf16.gmra.mrb[0].mxu0 %v152
    %v237 = vpop.f32.mrb[0].mxu0
    %v238 = vadd.f32 %v68, %v237
    %v239 = vpop.f32.mrb[0].mxu0
    %v240 = vpop.f32.mrb[0].mxu0
    %v241 = vadd.f32 %v68, %v240
    %v242 = vpop.f32.mrb[0].mxu0
    %243 = vmatprep.mubr.bf16.mxu0 0
    %244 = vmatmul.mubr.bf16.gmra.mrb[0].mxu0 %v155
    %v245 = vpop.f32.mrb[0].mxu0
    %v246 = vadd.f32 %v68, %v245
    %v247 = vpop.f32.mrb[0].mxu0
    %v248 = vpop.f32.mrb[0].mxu0
    %v249 = vadd.f32 %v68, %v248
    %v250 = vpop.f32.mrb[0].mxu0
    %251 = vmatprep.mubr.bf16.mxu0 0
    %252 = vmatmul.mubr.bf16.gmra.mrb[0].mxu0 %v158
    %v253 = vpop.f32.mrb[0].mxu0
    %v254 = vadd.f32 %v68, %v253
    %v255 = vpop.f32.mrb[0].mxu0
    %v256 = vpop.f32.mrb[0].mxu0
    %v257 = vadd.f32 %v68, %v256
    %v258 = vpop.f32.mrb[0].mxu0
    %259 = vmatprep.mubr.bf16.mxu0 0
    %260 = vmatmul.mubr.bf16.gmra.mrb[0].mxu0 %v161
    %v261 = vpop.f32.mrb[0].mxu0
    %v262 = vadd.f32 %v68, %v261
    %v263 = vpop.f32.mrb[0].mxu0
    %v264 = vpop.f32.mrb[0].mxu0
    %v265 = vadd.f32 %v68, %v264
    %v266 = vpop.f32.mrb[0].mxu0
    %267 = vmatprep.mubr.bf16.mxu0 0
    %268 = vmatmul.mubr.bf16.gmra.mrb[0].mxu0 %v164
    %v269 = vpop.f32.mrb[0].mxu0
    %v270 = vadd.f32 %v68, %v269
    %v271 = vpop.f32.mrb[0].mxu0
    %v272 = vpop.f32.mrb[0].mxu0
    %v273 = vadd.f32 %v68, %v272
    %v274 = vpop.f32.mrb[0].mxu0
    %275 = vmatprep.mubr.bf16.mxu0 0
    %276 = vmatmul.mubr.bf16.gmra.mrb[0].mxu0 %v167
    %v277 = vpop.f32.mrb[0].mxu0
    %v278 = vadd.f32 %v68, %v277
    %v279 = vpop.f32.mrb[0].mxu0
    %v280 = vpop.f32.mrb[0].mxu0
    %v281 = vadd.f32 %v68, %v280
    %v282 = vpop.f32.mrb[0].mxu0
    %283 = vmatprep.mubr.bf16.mxu0 0
    %284 = vmatmul.mubr.bf16.gmra.mrb[0].mxu0 %v170
    %v285 = vpop.f32.mrb[0].mxu0
    %v286 = vadd.f32 %v68, %v285
    %v287 = vpop.f32.mrb[0].mxu0
    %v288 = vpop.f32.mrb[0].mxu0
    %v289 = vadd.f32 %v68, %v288
    %v290 = vpop.f32.mrb[0].mxu0
    %291 = vmatprep.mubr.bf16.mxu0 0
    %292 = vmatmul.mubr.bf16.gmra.mrb[0].mxu0 %v173
    %v293 = vpop.f32.mrb[0].mxu0
    %v294 = vadd.f32 %v68, %v293
    %v295 = vpop.f32.mrb[0].mxu0
    %v296 = vpop.f32.mrb[0].mxu0
    %v297 = vadd.f32 %v68, %v296
    %v298 = vpop.f32.mrb[0].mxu0
    %299 = vmatprep.mubr.bf16.mxu0 0
    %300 = vmatmul.mubr.bf16.gmra.mrb[0].mxu0 %v176
    %v301 = vpop.f32.mrb[0].mxu0
    %v302 = vadd.f32 %v68, %v301
    %v303 = vpop.f32.mrb[0].mxu0
    %v304 = vpop.f32.mrb[0].mxu0
    %v305 = vadd.f32 %v68, %v304
    %v306 = vpop.f32.mrb[0].mxu0
    %307 = vmatprep.mubr.bf16.mxu0 0
    %308 = vmatmul.mubr.bf16.gmra.mrb[0].mxu0 %v179
    %v309 = vpop.f32.mrb[0].mxu0
    %v310 = vadd.f32 %v68, %v309
    %v311 = vpop.f32.mrb[0].mxu0
    %v312 = vpop.f32.mrb[0].mxu0
    %v313 = vadd.f32 %v68, %v312
    %v314 = vpop.f32.mrb[0].mxu0
    %315 = vmatprep.mubr.bf16.mxu0 0
    %316 = vmatmul.mubr.bf16.gmra.mrb[0].mxu0 %v182
    %v317 = vpop.f32.mrb[0].mxu0
    %v318 = vadd.f32 %v68, %v317
    %v319 = vpop.f32.mrb[0].mxu0
    %v320 = vpop.f32.mrb[0].mxu0
    %v321 = vadd.f32 %v68, %v320
    %v322 = vpop.f32.mrb[0].mxu0
    %323 = vmatprep.mubr.bf16.mxu0 0
    %324 = vmatmul.mubr.bf16.gmra.mrb[0].mxu0 %v185
    %v325 = vpop.f32.mrb[0].mxu0
    %v326 = vadd.f32 %v68, %v325
    %v327 = vpop.f32.mrb[0].mxu0
    %v328 = vpop.f32.mrb[0].mxu0
    %v329 = vadd.f32 %v68, %v328
    %v330 = vpop.f32.mrb[0].mxu0
    %331 = vmatprep.mubr.bf16.mxu0 0
    %332 = vmatmul.mubr.bf16.gmra.mrb[0].mxu0 %v188
    %v333 = vpop.f32.mrb[0].mxu0
    %v334 = vadd.f32 %v68, %v333
    %v335 = vpop.f32.mrb[0].mxu0
    %v336 = vpop.f32.mrb[0].mxu0
    %v337 = vadd.f32 %v68, %v336
    %v338 = vpop.f32.mrb[0].mxu0
    %339 = vmatprep.mubr.bf16.mxu0 0
    %340 = vmatmul.mubr.bf16.gmra.mrb[0].mxu0 %v191
    %v341 = vpop.f32.mrb[0].mxu0
    %v342 = vadd.f32 %v68, %v341
    %v343 = vpop.f32.mrb[0].mxu0
    %v344 = vpop.f32.mrb[0].mxu0
    %v345 = vadd.f32 %v68, %v344
    %v346 = vpop.f32.mrb[0].mxu0
    %347 = vmatprep.mubr.bf16.mxu0 0
    %348 = vmatmul.mubr.bf16.gmra.mrb[0].mxu0 %v194
    %v349 = vpop.f32.mrb[0].mxu0
    %v350 = vadd.f32 %v68, %v349
    %v351 = vpop.f32.mrb[0].mxu0
    %v352 = vpop.f32.mrb[0].mxu0
    %v353 = vadd.f32 %v68, %v352
    %v354 = vpop.f32.mrb[0].mxu0
    %355 = vmatprep.mubr.bf16.mxu0 0
    %356 = vmatmul.mubr.bf16.gmra.mrb[0].mxu0 %v197
    %v357 = vpop.f32.mrb[0].mxu0
    %v358 = vadd.f32 %v68, %v357
    %v359 = vpop.f32.mrb[0].mxu0
    %v360 = vpop.f32.mrb[0].mxu0
    %v361 = vadd.f32 %v68, %v360
    %v362 = vpop.f32.mrb[0].mxu0
    %363 = vdwg.mxu0
    %v364 = vmax.f32 %v238, 0.0
    %v365 = vmax.f32 %v241, 0.0
    %v366 = vmax.f32 %v246, 0.0
    %v367 = vmax.f32 %v249, 0.0
    %v368 = vmax.f32 %v254, 0.0
    %v369 = vmax.f32 %v257, 0.0
    %v370 = vmax.f32 %v262, 0.0
    %v371 = vmax.f32 %v265, 0.0
    %v372 = vmax.f32 %v270, 0.0
    %v373 = vmax.f32 %v273, 0.0
    %v374 = vmax.f32 %v278, 0.0
    %v375 = vmax.f32 %v281, 0.0
    %v376 = vmax.f32 %v286, 0.0
    %v377 = vmax.f32 %v289, 0.0
    %v378 = vmax.f32 %v294, 0.0
    %v379 = vmax.f32 %v297, 0.0
    %v380 = vmax.f32 %v302, 0.0
    %v381 = vmax.f32 %v305, 0.0
    %v382 = vmax.f32 %v310, 0.0
    %v383 = vmax.f32 %v313, 0.0
    %v384 = vmax.f32 %v318, 0.0
    %v385 = vmax.f32 %v321, 0.0
    %v386 = vmax.f32 %v326, 0.0
    %v387 = vmax.f32 %v329, 0.0
    %v388 = vmax.f32 %v334, 0.0
    %v389 = vmax.f32 %v337, 0.0
    %v390 = vmax.f32 %v342, 0.0
    %v391 = vmax.f32 %v345, 0.0
    %v392 = vmax.f32 %v350, 0.0
    %v393 = vmax.f32 %v353, 0.0
    %v394 = vmax.f32 %v358, 0.0
    %v395 = vmax.f32 %v361, 0.0
    %v396 = vpack.c.bf16 %v365, %v364
    %v397 = vpack.c.bf16 %v367, %v366
    %v398 = vpack.c.bf16 %v369, %v368
    %v399 = vpack.c.bf16 %v371, %v370
    %v400 = vpack.c.bf16 %v373, %v372
    %v401 = vpack.c.bf16 %v375, %v374
    %v402 = vpack.c.bf16 %v377, %v376
    %v403 = vpack.c.bf16 %v379, %v378
    %v404 = vpack.c.bf16 %v381, %v380
    %v405 = vpack.c.bf16 %v383, %v382
    %v406 = vpack.c.bf16 %v385, %v384
    %v407 = vpack.c.bf16 %v387, %v386
    %v408 = vpack.c.bf16 %v389, %v388
    %v409 = vpack.c.bf16 %v391, %v390
    %v410 = vpack.c.bf16 %v393, %v392
    %v411 = vpack.c.bf16 %v395, %v394
    %v412 = vld [vmem:[%s3] sm:$0xff]
    %v413 = vld [vmem:[%s3 + $0x8] sm:$0xff]
    %v414 = vld [vmem:[%s3 + $0x10] sm:$0xff]
    %v415 = vld [vmem:[%s3 + $0x18] sm:$0xff]
    %v416 = vld [vmem:[%s3 + $0x20] sm:$0xff]
    %v417 = vld [vmem:[%s3 + $0x28] sm:$0xff]
    %v418 = vld [vmem:[%s3 + $0x30] sm:$0xff]
    %v419 = vld [vmem:[%s3 + $0x38] sm:$0xff]
    %v420 = vld [vmem:[%s3 + $0x40] sm:$0xff]
    %v421 = vld [vmem:[%s3 + $0x48] sm:$0xff]
    %v422 = vld [vmem:[%s3 + $0x50] sm:$0xff]
    %v423 = vld [vmem:[%s3 + $0x58] sm:$0xff]
    %v424 = vld [vmem:[%s3 + $0x60] sm:$0xff]
    %v425 = vld [vmem:[%s3 + $0x68] sm:$0xff]
    %v426 = vld [vmem:[%s3 + $0x70] sm:$0xff]
    %v427 = vld [vmem:[%s3 + $0x78] sm:$0xff]
    %v444 = vunpack.c.l.b16 %v412
    %v445 = vunpack.c.h.b16 %v412
    %v446 = vunpack.c.l.b16 %v413
    %v447 = vunpack.c.h.b16 %v413
    %v448 = vunpack.c.l.b16 %v414
    %v449 = vunpack.c.h.b16 %v414
    %v450 = vunpack.c.l.b16 %v415
    %v451 = vunpack.c.h.b16 %v415
    %v452 = vunpack.c.l.b16 %v416
    %v453 = vunpack.c.h.b16 %v416
    %v454 = vunpack.c.l.b16 %v417
    %v455 = vunpack.c.h.b16 %v417
    %v456 = vunpack.c.l.b16 %v418
    %v457 = vunpack.c.h.b16 %v418
    %v458 = vunpack.c.l.b16 %v419
    %v459 = vunpack.c.h.b16 %v419
    %v460 = vunpack.c.l.b16 %v420
    %v461 = vunpack.c.h.b16 %v420
    %v462 = vunpack.c.l.b16 %v421
    %v463 = vunpack.c.h.b16 %v421
    %v464 = vunpack.c.l.b16 %v422
    %v465 = vunpack.c.h.b16 %v422
    %v466 = vunpack.c.l.b16 %v423
    %v467 = vunpack.c.h.b16 %v423
    %v468 = vunpack.c.l.b16 %v424
    %v469 = vunpack.c.h.b16 %v424
    %v470 = vunpack.c.l.b16 %v425
    %v471 = vunpack.c.h.b16 %v425
    %v472 = vunpack.c.l.b16 %v426
    %v473 = vunpack.c.h.b16 %v426
    %v474 = vunpack.c.l.b16 %v427
    %v475 = vunpack.c.h.b16 %v427
    %v476 = vpack.c.b16 %v446, %v444
    %v477 = vpack.c.b16 %v447, %v445
    %v478 = vpack.c.b16 %v450, %v448
    %v479 = vpack.c.b16 %v451, %v449
    %v480 = vpack.c.b16 %v454, %v452
    %v481 = vpack.c.b16 %v455, %v453
    %v482 = vpack.c.b16 %v458, %v456
    %v483 = vpack.c.b16 %v459, %v457
    %v484 = vpack.c.b16 %v462, %v460
    %v485 = vpack.c.b16 %v463, %v461
    %v486 = vpack.c.b16 %v466, %v464
    %v487 = vpack.c.b16 %v467, %v465
    %v488 = vpack.c.b16 %v470, %v468
    %v489 = vpack.c.b16 %v471, %v469
    %v490 = vpack.c.b16 %v474, %v472
    %v491 = vpack.c.b16 %v475, %v473
    %508 = vmatprep.subr.bf16.mxu0 %v477
    %509 = vmatpush1.bf16.msra.mxu0 %v476
    %510 = vmatprep.subr.bf16.mxu0 %v479
    %511 = vmatpush1.bf16.msra.mxu0 %v478
    %512 = vmatprep.subr.bf16.mxu0 %v481
    %513 = vmatpush1.bf16.msra.mxu0 %v480
    %514 = vmatprep.subr.bf16.mxu0 %v483
    %515 = vmatpush1.bf16.msra.mxu0 %v482
    %516 = vmatprep.subr.bf16.mxu0 %v485
    %517 = vmatpush1.bf16.msra.mxu0 %v484
    %518 = vmatprep.subr.bf16.mxu0 %v487
    %519 = vmatpush1.bf16.msra.mxu0 %v486
    %520 = vmatprep.subr.bf16.mxu0 %v489
    %521 = vmatpush1.bf16.msra.mxu0 %v488
    %522 = vmatprep.subr.bf16.mxu0 %v491
    %523 = vmatpush1.bf16.msra.mxu0 %v490
    %524 = vmatprep.subr.bf16.mxu0 0
    %525 = vmatpush1.bf16.msra.mxu0 0
    %526 = vmatprep.subr.bf16.mxu0 0
    %527 = vmatpush1.bf16.msra.mxu0 0
    %528 = vmatprep.subr.bf16.mxu0 0
    %529 = vmatpush1.bf16.msra.mxu0 0
    %530 = vmatprep.subr.bf16.mxu0 0
    %531 = vmatpush1.bf16.msra.mxu0 0
    %532 = vmatprep.subr.bf16.mxu0 0
    %533 = vmatpush1.bf16.msra.mxu0 0
    %534 = vmatprep.subr.bf16.mxu0 0
    %535 = vmatpush1.bf16.msra.mxu0 0
    %536 = vmatprep.subr.bf16.mxu0 0
    %537 = vmatpush1.bf16.msra.mxu0 0
    %538 = vmatprep.subr.bf16.mxu0 0
    %539 = vmatpush1.bf16.msra.mxu0 0
    %540 = vmatprep.mubr.bf16.mxu0 0
    %541 = vmatmul.mubr.bf16.gmra.mrb[0].mxu0 %v396
    %v542 = vpop.f32.mrb[0].mxu0
    %v543 = vadd.f32 0.0, %v542
    %v544 = vpop.f32.mrb[0].mxu0
    %v545 = vadd.f32 0.0, %v544
    %v546 = vpop.f32.mrb[0].mxu0
    %v547 = vadd.f32 0.0, %v546
    %v548 = vpop.f32.mrb[0].mxu0
    %v549 = vadd.f32 0.0, %v548
    %550 = vmatprep.mubr.bf16.mxu0 0
    %551 = vmatmul.mubr.bf16.gmra.mrb[0].mxu0 %v397
    %v552 = vpop.f32.mrb[0].mxu0
    %v553 = vadd.f32 0.0, %v552
    %v554 = vpop.f32.mrb[0].mxu0
    %v555 = vadd.f32 0.0, %v554
    %v556 = vpop.f32.mrb[0].mxu0
    %v557 = vadd.f32 0.0, %v556
    %v558 = vpop.f32.mrb[0].mxu0
    %v559 = vadd.f32 0.0, %v558
    %560 = vmatprep.mubr.bf16.mxu0 0
    %561 = vmatmul.mubr.bf16.gmra.mrb[0].mxu0 %v398
    %v562 = vpop.f32.mrb[0].mxu0
    %v563 = vadd.f32 0.0, %v562
    %v564 = vpop.f32.mrb[0].mxu0
    %v565 = vadd.f32 0.0, %v564
    %v566 = vpop.f32.mrb[0].mxu0
    %v567 = vadd.f32 0.0, %v566
    %v568 = vpop.f32.mrb[0].mxu0
    %v569 = vadd.f32 0.0, %v568
    %570 = vmatprep.mubr.bf16.mxu0 0
    %571 = vmatmul.mubr.bf16.gmra.mrb[0].mxu0 %v399
    %v572 = vpop.f32.mrb[0].mxu0
    %v573 = vadd.f32 0.0, %v572
    %v574 = vpop.f32.mrb[0].mxu0
    %v575 = vadd.f32 0.0, %v574
    %v576 = vpop.f32.mrb[0].mxu0
    %v577 = vadd.f32 0.0, %v576
    %v578 = vpop.f32.mrb[0].mxu0
    %v579 = vadd.f32 0.0, %v578
    %580 = vmatprep.mubr.bf16.mxu0 0
    %581 = vmatmul.mubr.bf16.gmra.mrb[0].mxu0 %v400
    %v582 = vpop.f32.mrb[0].mxu0
    %v583 = vadd.f32 0.0, %v582
    %v584 = vpop.f32.mrb[0].mxu0
    %v585 = vadd.f32 0.0, %v584
    %v586 = vpop.f32.mrb[0].mxu0
    %v587 = vadd.f32 0.0, %v586
    %v588 = vpop.f32.mrb[0].mxu0
    %v589 = vadd.f32 0.0, %v588
    %590 = vmatprep.mubr.bf16.mxu0 0
    %591 = vmatmul.mubr.bf16.gmra.mrb[0].mxu0 %v401
    %v592 = vpop.f32.mrb[0].mxu0
    %v593 = vadd.f32 0.0, %v592
    %v594 = vpop.f32.mrb[0].mxu0
    %v595 = vadd.f32 0.0, %v594
    %v596 = vpop.f32.mrb[0].mxu0
    %v597 = vadd.f32 0.0, %v596
    %v598 = vpop.f32.mrb[0].mxu0
    %v599 = vadd.f32 0.0, %v598
    %600 = vmatprep.mubr.bf16.mxu0 0
    %601 = vmatmul.mubr.bf16.gmra.mrb[0].mxu0 %v402
    %v602 = vpop.f32.mrb[0].mxu0
    %v603 = vadd.f32 0.0, %v602
    %v604 = vpop.f32.mrb[0].mxu0
    %v605 = vadd.f32 0.0, %v604
    %v606 = vpop.f32.mrb[0].mxu0
    %v607 = vadd.f32 0.0, %v606
    %v608 = vpop.f32.mrb[0].mxu0
    %v609 = vadd.f32 0.0, %v608
    %610 = vmatprep.mubr.bf16.mxu0 0
    %611 = vmatmul.mubr.bf16.gmra.mrb[0].mxu0 %v403
    %v612 = vpop.f32.mrb[0].mxu0
    %v613 = vadd.f32 0.0, %v612
    %v614 = vpop.f32.mrb[0].mxu0
    %v615 = vadd.f32 0.0, %v614
    %v616 = vpop.f32.mrb[0].mxu0
    %v617 = vadd.f32 0.0, %v616
    %v618 = vpop.f32.mrb[0].mxu0
    %v619 = vadd.f32 0.0, %v618
    %620 = vmatprep.mubr.bf16.mxu0 0
    %621 = vmatmul.mubr.bf16.gmra.mrb[0].mxu0 %v404
    %v622 = vpop.f32.mrb[0].mxu0
    %v623 = vadd.f32 0.0, %v622
    %v624 = vpop.f32.mrb[0].mxu0
    %v625 = vadd.f32 0.0, %v624
    %v626 = vpop.f32.mrb[0].mxu0
    %v627 = vadd.f32 0.0, %v626
    %v628 = vpop.f32.mrb[0].mxu0
    %v629 = vadd.f32 0.0, %v628
    %630 = vmatprep.mubr.bf16.mxu0 0
    %631 = vmatmul.mubr.bf16.gmra.mrb[0].mxu0 %v405
    %v632 = vpop.f32.mrb[0].mxu0
    %v633 = vadd.f32 0.0, %v632
    %v634 = vpop.f32.mrb[0].mxu0
    %v635 = vadd.f32 0.0, %v634
    %v636 = vpop.f32.mrb[0].mxu0
    %v637 = vadd.f32 0.0, %v636
    %v638 = vpop.f32.mrb[0].mxu0
    %v639 = vadd.f32 0.0, %v638
    %640 = vmatprep.mubr.bf16.mxu0 0
    %641 = vmatmul.mubr.bf16.gmra.mrb[0].mxu0 %v406
    %v642 = vpop.f32.mrb[0].mxu0
    %v643 = vadd.f32 0.0, %v642
    %v644 = vpop.f32.mrb[0].mxu0
    %v645 = vadd.f32 0.0, %v644
    %v646 = vpop.f32.mrb[0].mxu0
    %v647 = vadd.f32 0.0, %v646
    %v648 = vpop.f32.mrb[0].mxu0
    %v649 = vadd.f32 0.0, %v648
    %650 = vmatprep.mubr.bf16.mxu0 0
    %651 = vmatmul.mubr.bf16.gmra.mrb[0].mxu0 %v407
    %v652 = vpop.f32.mrb[0].mxu0
    %v653 = vadd.f32 0.0, %v652
    %v654 = vpop.f32.mrb[0].mxu0
    %v655 = vadd.f32 0.0, %v654
    %v656 = vpop.f32.mrb[0].mxu0
    %v657 = vadd.f32 0.0, %v656
    %v658 = vpop.f32.mrb[0].mxu0
    %v659 = vadd.f32 0.0, %v658
    %660 = vmatprep.mubr.bf16.mxu0 0
    %661 = vmatmul.mubr.bf16.gmra.mrb[0].mxu0 %v408
    %v662 = vpop.f32.mrb[0].mxu0
    %v663 = vadd.f32 0.0, %v662
    %v664 = vpop.f32.mrb[0].mxu0
    %v665 = vadd.f32 0.0, %v664
    %v666 = vpop.f32.mrb[0].mxu0
    %v667 = vadd.f32 0.0, %v666
    %v668 = vpop.f32.mrb[0].mxu0
    %v669 = vadd.f32 0.0, %v668
    %670 = vmatprep.mubr.bf16.mxu0 0
    %671 = vmatmul.mubr.bf16.gmra.mrb[0].mxu0 %v409
    %v672 = vpop.f32.mrb[0].mxu0
    %v673 = vadd.f32 0.0, %v672
    %v674 = vpop.f32.mrb[0].mxu0
    %v675 = vadd.f32 0.0, %v674
    %v676 = vpop.f32.mrb[0].mxu0
    %v677 = vadd.f32 0.0, %v676
    %v678 = vpop.f32.mrb[0].mxu0
    %v679 = vadd.f32 0.0, %v678
    %680 = vmatprep.mubr.bf16.mxu0 0
    %681 = vmatmul.mubr.bf16.gmra.mrb[0].mxu0 %v410
    %v682 = vpop.f32.mrb[0].mxu0
    %v683 = vadd.f32 0.0, %v682
    %v684 = vpop.f32.mrb[0].mxu0
    %v685 = vadd.f32 0.0, %v684
    %v686 = vpop.f32.mrb[0].mxu0
    %v687 = vadd.f32 0.0, %v686
    %v688 = vpop.f32.mrb[0].mxu0
    %v689 = vadd.f32 0.0, %v688
    %690 = vmatprep.mubr.bf16.mxu0 0
    %691 = vmatmul.mubr.bf16.gmra.mrb[0].mxu0 %v411
    %v692 = vpop.f32.mrb[0].mxu0
    %v693 = vadd.f32 0.0, %v692
    %v694 = vpop.f32.mrb[0].mxu0
    %v695 = vadd.f32 0.0, %v694
    %v696 = vpop.f32.mrb[0].mxu0
    %v697 = vadd.f32 0.0, %v696
    %v698 = vpop.f32.mrb[0].mxu0
    %v699 = vadd.f32 0.0, %v698
    %700 = vdwg.mxu0
    %v701 = vmax.f32 %v543, %v547
    %v702 = vmax.f32 %v701, %v553
    %v703 = vmax.f32 %v702, %v557
    %v704 = vmax.f32 %v703, %v563
    %v705 = vmax.f32 %v704, %v567
    %v706 = vmax.f32 %v705, %v573
    %v707 = vmax.f32 %v706, %v577
    %v708 = vmax.f32 %v707, %v583
    %v709 = vmax.f32 %v708, %v587
    %v710 = vmax.f32 %v709, %v593
    %v711 = vmax.f32 %v710, %v597
    %v712 = vmax.f32 %v711, %v603
    %v713 = vmax.f32 %v712, %v607
    %v714 = vmax.f32 %v713, %v613
    %v715 = vmax.f32 %v714, %v617
    %v716 = vrot.slane %v715, 4
    %v717 = vmax.f32 %v715, %v716
    %v718 = vrot.slane %v717, 2
    %v719 = vmax.f32 %v717, %v718
    %v720 = vrot.slane %v719, 1
    %v721 = vmax.f32 %v719, %v720
    %v722 = vmax.f32 %v545, %v549
    %v723 = vmax.f32 %v722, %v555
    %v724 = vmax.f32 %v723, %v559
    %v725 = vmax.f32 %v724, %v565
    %v726 = vmax.f32 %v725, %v569
    %v727 = vmax.f32 %v726, %v575
    %v728 = vmax.f32 %v727, %v579
    %v729 = vmax.f32 %v728, %v585
    %v730 = vmax.f32 %v729, %v589
    %v731 = vmax.f32 %v730, %v595
    %v732 = vmax.f32 %v731, %v599
    %v733 = vmax.f32 %v732, %v605
    %v734 = vmax.f32 %v733, %v609
    %v735 = vmax.f32 %v734, %v615
    %v736 = vmax.f32 %v735, %v619
    %v737 = vrot.slane %v736, 4
    %v738 = vmax.f32 %v736, %v737
    %v739 = vrot.slane %v738, 2
    %v740 = vmax.f32 %v738, %v739
    %v741 = vrot.slane %v740, 1
    %v742 = vmax.f32 %v740, %v741
    %v743 = vmax.f32 %v623, %v627
    %v744 = vmax.f32 %v743, %v633
    %v745 = vmax.f32 %v744, %v637
    %v746 = vmax.f32 %v745, %v643
    %v747 = vmax.f32 %v746, %v647
    %v748 = vmax.f32 %v747, %v653
    %v749 = vmax.f32 %v748, %v657
    %v750 = vmax.f32 %v749, %v663
    %v751 = vmax.f32 %v750, %v667
    %v752 = vmax.f32 %v751, %v673
    %v753 = vmax.f32 %v752, %v677
    %v754 = vmax.f32 %v753, %v683
    %v755 = vmax.f32 %v754, %v687
    %v756 = vmax.f32 %v755, %v693
    %v757 = vmax.f32 %v756, %v697
    %v758 = vrot.slane %v757, 4
    %v759 = vmax.f32 %v757, %v758
    %v760 = vrot.slane %v759, 2
    %v761 = vmax.f32 %v759, %v760
    %v762 = vrot.slane %v761, 1
    %v763 = vmax.f32 %v761, %v762
    %v764 = vmax.f32 %v625, %v629
    %v765 = vmax.f32 %v764, %v635
    %v766 = vmax.f32 %v765, %v639
    %v767 = vmax.f32 %v766, %v645
    %v768 = vmax.f32 %v767, %v649
    %v769 = vmax.f32 %v768, %v655
    %v770 = vmax.f32 %v769, %v659
    %v771 = vmax.f32 %v770, %v665
    %v772 = vmax.f32 %v771, %v669
    %v773 = vmax.f32 %v772, %v675
    %v774 = vmax.f32 %v773, %v679
    %v775 = vmax.f32 %v774, %v685
    %v776 = vmax.f32 %v775, %v689
    %v777 = vmax.f32 %v776, %v695
    %v778 = vmax.f32 %v777, %v699
    %v779 = vrot.slane %v778, 4
    %v780 = vmax.f32 %v778, %v779
    %v781 = vrot.slane %v780, 2
    %v782 = vmax.f32 %v780, %v781
    %v783 = vrot.slane %v782, 1
    %v784 = vmax.f32 %v782, %v783
    %p785 = scmp.eq.s32.totalorder 0, 0
    // Predicated region
    $region22: #{pcn_encoder.2} parent=1 // pred_check
      %p786 = pneg %p785
    $region23: #{pcn_encoder.2} parent=1 // pred_check_branch
      %788 = sbr.rel (%p786) target = $region25
    $region24: #{pcn_encoder.2} parent=1 // pred_region
      %v793 = vcombine.low %v721, %v742
      %v795 = vunpack.c.l.s4 1966171168
      %v796 = vunpack.c.0.s8 %v795
      %v797 = vlaneseq
      %v798 = vshrl.u32 %v797, 7
      %v799 = vsub.s32 %v796, %v798
      %v800 = vrot.slane %v793, %v799
      %v802 = vunpack.c.l.s4 1966171168
      %v803 = vunpack.c.0.s8 %v802
      %v804 = vlaneseq
      %v805 = vshrl.u32 %v804, 7
      %v806 = vsub.s32 %v803, %v805
      %v807 = vrot.slane %v800, %v806
      %v808 = vcombine.low %v763, %v784
      %v810 = vunpack.c.l.s4 1966171168
      %v811 = vunpack.c.0.s8 %v810
      %v812 = vlaneseq
      %v813 = vshrl.u32 %v812, 7
      %v814 = vsub.s32 %v811, %v813
      %v815 = vrot.slane %v808, %v814
      %v817 = vunpack.c.l.s4 1966171168
      %v818 = vunpack.c.0.s8 %v817
      %v819 = vlaneseq
      %v820 = vshrl.u32 %v819, 7
      %v821 = vsub.s32 %v818, %v820
      %v822 = vrot.slane %v815, %v821
      %v825 = vlaneseq
      %vm826 = vcmp.ge.s32.totalorder %v825, 0
      %vm827 = vcmp.lt.s32.totalorder %v825, 256
      %vm828 = vmand %vm826, %vm827
      %829 = vst.msk [vmem:[%s4] sm:$0x3] %vm828, %v807
      %830 = vst.msk [vmem:[%s4 + $0x2] sm:$0x3] %vm828, %v822
    $region25: #{pcn_encoder.2} parent=1 // pred_fallthru
      _
    %p831 = scmp.gt.s32.totalorder 0, 0
    // Predicated region
    $region26: #{pcn_encoder.2} parent=1 // pred_check
      %p832 = pneg %p831
    $region27: #{pcn_encoder.2} parent=1 // pred_check_branch
      %834 = sbr.rel (%p832) target = $region29
    $region28: #{pcn_encoder.2} parent=1 // pred_region
      %v835 = vld [vmem:[%s4] sm:$0x3]
      %v836 = vld [vmem:[%s4 + $0x2] sm:$0x3]
      %v841 = vcombine.low %v721, %v742
      %v843 = vunpack.c.l.s4 1966171168
      %v844 = vunpack.c.0.s8 %v843
      %v845 = vlaneseq
      %v846 = vshrl.u32 %v845, 7
      %v847 = vsub.s32 %v844, %v846
      %v848 = vrot.slane %v841, %v847
      %v850 = vunpack.c.l.s4 1966171168
      %v851 = vunpack.c.0.s8 %v850
      %v852 = vlaneseq
      %v853 = vshrl.u32 %v852, 7
      %v854 = vsub.s32 %v851, %v853
      %v855 = vrot.slane %v848, %v854
      %v856 = vcombine.low %v763, %v784
      %v858 = vunpack.c.l.s4 1966171168
      %v859 = vunpack.c.0.s8 %v858
      %v860 = vlaneseq
      %v861 = vshrl.u32 %v860, 7
      %v862 = vsub.s32 %v859, %v861
      %v863 = vrot.slane %v856, %v862
      %v865 = vunpack.c.l.s4 1966171168
      %v866 = vunpack.c.0.s8 %v865
      %v867 = vlaneseq
      %v868 = vshrl.u32 %v867, 7
      %v869 = vsub.s32 %v866, %v868
      %v870 = vrot.slane %v863, %v869
      %v873 = vmax.f32 %v835, %v855
      %v874 = vmax.f32 %v836, %v870
      %v875 = vlaneseq
      %vm876 = vcmp.ge.s32.totalorder %v875, 0
      %vm877 = vcmp.lt.s32.totalorder %v875, 256
      %vm878 = vmand %vm876, %vm877
      %879 = vst.msk [vmem:[%s4] sm:$0x3] %vm878, %v873
      %880 = vst.msk [vmem:[%s4 + $0x2] sm:$0x3] %vm878, %v874
    $region29: #{pcn_encoder.2} parent=1 // pred_fallthru
      _
    // Predicated region
    $region30: #{pcn_encoder.2} parent=1 // pred_check
      _
    $region31: #{pcn_encoder.2} parent=1 // pred_check_branch
      %882 = sbr.rel (0) target = $region33
    $region32: #{pcn_encoder.2} parent=1 // pred_region
      _
    $region33: #{pcn_encoder.2} parent=1 // pred_fallthru
      _
    // Predicated region
    $region34: #{pcn_encoder.2} parent=1 // pred_check
      _
    $region35: #{pcn_encoder.2} parent=1 // pred_check_branch
      %884 = sbr.rel (0) target = $region37
    $region36: #{pcn_encoder.2} parent=1 // pred_region
      _
    $region37: #{pcn_encoder.2} parent=1 // pred_fallthru
      _
    %885 = vsyncpa [#allocation3], 1

// kernel: pcn_encoder.3
$region0: #{pcn_encoder.3}
  #allocation0 [shape = 'u32[]', space=smem, size = 0x4, offset = 0x4, fixed_abs, tag = 'smem constant byte address 0x4 - core index']
  #allocation1 [shape = 'u32[144,128]{1,0:T(1,128)}', space=vmem, size = 0x12000, scoped, tag = 'internal scratch']
  %s0 = inlined_call_operand.vmem [shape: bf16[2,128,8], index: 0, kind: input, shape index: {}]
  %s1 = inlined_call_operand.vmem [shape: bf16[8,128], index: 1, kind: input, shape index: {}]
  %s2 = inlined_call_operand.vmem [shape: f32[1,128], index: 2, kind: input, shape index: {}]
  %s3 = inlined_call_operand.vmem [shape: bf16[128,256], index: 3, kind: input, shape index: {}]
  %s4 = inlined_call_operand.vmem [shape: f32[1,256], index: 4, kind: input, shape index: {}]
  %s5 = inlined_call_operand.vmem [shape: bf16[256,512], index: 5, kind: input, shape index: {}]
  %s6 = inlined_call_operand.vmem [shape: f32[2,1,512], index: 6, kind: input, shape index: {}]
  %s7 = inlined_call_operand.vmem [shape: bf16[512,1024], index: 7, kind: input, shape index: {}]
  %s8 = inlined_call_operand.vmem [shape: f32[2,1,1024], index: 8, kind: output, shape index: {}]
  %s9 = sld [smem:[#allocation0]]
  $region50: #{pcn_encoder.3} parent=0
    _
  %s11 = ssub.s32 1, %s9
  %s12 = scalar_select 0, %s11, %s9
  // Predicated region
  $region2: #{pcn_encoder.3} parent=0 // pred_check
    _
  $region3: #{pcn_encoder.3} parent=0 // pred_check_branch
    %14 = sbr.rel (0) target = $region5
  $region4: #{pcn_encoder.3} parent=0 // pred_region
    _
  $region5: #{pcn_encoder.3} parent=0 // pred_fallthru
    _
  // Predicated region
  $region6: #{pcn_encoder.3} parent=0 // pred_check
    _
  $region7: #{pcn_encoder.3} parent=0 // pred_check_branch
    %16 = sbr.rel (0) target = $region9
  $region8: #{pcn_encoder.3} parent=0 // pred_region
    _
  $region9: #{pcn_encoder.3} parent=0 // pred_fallthru
    _
  // Predicated region
  $region10: #{pcn_encoder.3} parent=0 // pred_check
    _
  $region11: #{pcn_encoder.3} parent=0 // pred_check_branch
    %18 = sbr.rel (0) target = $region13
  $region12: #{pcn_encoder.3} parent=0 // pred_region
    _
  $region13: #{pcn_encoder.3} parent=0 // pred_fallthru
    _
  // Predicated region
  $region14: #{pcn_encoder.3} parent=0 // pred_check
    _
  $region15: #{pcn_encoder.3} parent=0 // pred_check_branch
    %20 = sbr.rel (0) target = $region17
  $region16: #{pcn_encoder.3} parent=0 // pred_region
    _
  $region17: #{pcn_encoder.3} parent=0 // pred_fallthru
    _
  // Predicated region
  $region18: #{pcn_encoder.3} parent=0 // pred_check
    _
  $region19: #{pcn_encoder.3} parent=0 // pred_check_branch
    %22 = sbr.rel (0) target = $region21
  $region20: #{pcn_encoder.3} parent=0 // pred_region
    _
  $region21: #{pcn_encoder.3} parent=0 // pred_fallthru
    _
  // Predicated region
  $region22: #{pcn_encoder.3} parent=0 // pred_check
    _
  $region23: #{pcn_encoder.3} parent=0 // pred_check_branch
    %24 = sbr.rel (0) target = $region25
  $region24: #{pcn_encoder.3} parent=0 // pred_region
    _
  $region25: #{pcn_encoder.3} parent=0 // pred_fallthru
    _
  // Predicated region
  $region26: #{pcn_encoder.3} parent=0 // pred_check
    _
  $region27: #{pcn_encoder.3} parent=0 // pred_check_branch
    %26 = sbr.rel (0) target = $region29
  $region28: #{pcn_encoder.3} parent=0 // pred_region
    _
  $region29: #{pcn_encoder.3} parent=0 // pred_fallthru
    _
  // Predicated region
  $region30: #{pcn_encoder.3} parent=0 // pred_check
    _
  $region31: #{pcn_encoder.3} parent=0 // pred_check_branch
    %28 = sbr.rel (0) target = $region33
  $region32: #{pcn_encoder.3} parent=0 // pred_region
    _
  $region33: #{pcn_encoder.3} parent=0 // pred_fallthru
    _
  %v30 = vld [vmem:[%s0] sm:$0xf]
  %v31 = vld [vmem:[%s0 + $0x4] sm:$0xf]
  %v32 = vld [vmem:[%s0 + $0x8] sm:$0xf]
  %v33 = vld [vmem:[%s0 + $0xc] sm:$0xf]
  %v34 = vld [vmem:[%s0 + $0x10] sm:$0xf]
  %v35 = vld [vmem:[%s0 + $0x14] sm:$0xf]
  %v36 = vld [vmem:[%s0 + $0x18] sm:$0xf]
  %v37 = vld [vmem:[%s0 + $0x1c] sm:$0xf]
  %v38 = vld [vmem:[%s0 + $0x20] sm:$0xf]
  %v39 = vld [vmem:[%s0 + $0x24] sm:$0xf]
  %v40 = vld [vmem:[%s0 + $0x28] sm:$0xf]
  %v41 = vld [vmem:[%s0 + $0x2c] sm:$0xf]
  %v42 = vld [vmem:[%s0 + $0x30] sm:$0xf]
  %v43 = vld [vmem:[%s0 + $0x34] sm:$0xf]
  %v44 = vld [vmem:[%s0 + $0x38] sm:$0xf]
  %v45 = vld [vmem:[%s0 + $0x3c] sm:$0xf]
  %v46 = vld [vmem:[%s0 + $0x40] sm:$0xf]
  %v47 = vld [vmem:[%s0 + $0x44] sm:$0xf]
  %v48 = vld [vmem:[%s0 + $0x48] sm:$0xf]
  %v49 = vld [vmem:[%s0 + $0x4c] sm:$0xf]
  %v50 = vld [vmem:[%s0 + $0x50] sm:$0xf]
  %v51 = vld [vmem:[%s0 + $0x54] sm:$0xf]
  %v52 = vld [vmem:[%s0 + $0x58] sm:$0xf]
  %v53 = vld [vmem:[%s0 + $0x5c] sm:$0xf]
  %v54 = vld [vmem:[%s0 + $0x60] sm:$0xf]
  %v55 = vld [vmem:[%s0 + $0x64] sm:$0xf]
  %v56 = vld [vmem:[%s0 + $0x68] sm:$0xf]
  %v57 = vld [vmem:[%s0 + $0x6c] sm:$0xf]
  %v58 = vld [vmem:[%s0 + $0x70] sm:$0xf]
  %v59 = vld [vmem:[%s0 + $0x74] sm:$0xf]
  %v60 = vld [vmem:[%s0 + $0x78] sm:$0xf]
  %v61 = vld [vmem:[%s0 + $0x7c] sm:$0xf]
  %v62 = vld [vmem:[%s1] sm:$0xf]
  %v63 = vld [vmem:[%s2] sm:$0x1]
  %v65 = vlaneseq
  %v66 = vshrl.u32 %v65, 7
  %v67 = vsub.s32 0, %v66
  %v68 = vrot.slane %v63, %v67
  %v102 = vunpack.c.l.b16 %v30
  %v103 = vunpack.c.l.b16 %v31
  %v104 = vunpack.c.l.b16 %v32
  %v105 = vunpack.c.l.b16 %v33
  %v106 = vunpack.c.l.b16 %v34
  %v107 = vunpack.c.l.b16 %v35
  %v108 = vunpack.c.l.b16 %v36
  %v109 = vunpack.c.l.b16 %v37
  %v110 = vunpack.c.l.b16 %v38
  %v111 = vunpack.c.l.b16 %v39
  %v112 = vunpack.c.l.b16 %v40
  %v113 = vunpack.c.l.b16 %v41
  %v114 = vunpack.c.l.b16 %v42
  %v115 = vunpack.c.l.b16 %v43
  %v116 = vunpack.c.l.b16 %v44
  %v117 = vunpack.c.l.b16 %v45
  %v118 = vunpack.c.l.b16 %v46
  %v119 = vunpack.c.l.b16 %v47
  %v120 = vunpack.c.l.b16 %v48
  %v121 = vunpack.c.l.b16 %v49
  %v122 = vunpack.c.l.b16 %v50
  %v123 = vunpack.c.l.b16 %v51
  %v124 = vunpack.c.l.b16 %v52
  %v125 = vunpack.c.l.b16 %v53
  %v126 = vunpack.c.l.b16 %v54
  %v127 = vunpack.c.l.b16 %v55
  %v128 = vunpack.c.l.b16 %v56
  %v129 = vunpack.c.l.b16 %v57
  %v130 = vunpack.c.l.b16 %v58
  %v131 = vunpack.c.l.b16 %v59
  %v132 = vunpack.c.l.b16 %v60
  %v133 = vunpack.c.l.b16 %v61
  %v134 = vpack.c.b16 %v103, %v102
  %v135 = vpack.c.b16 %v105, %v104
  %v136 = vpack.c.b16 %v107, %v106
  %v137 = vpack.c.b16 %v109, %v108
  %v138 = vpack.c.b16 %v111, %v110
  %v139 = vpack.c.b16 %v113, %v112
  %v140 = vpack.c.b16 %v115, %v114
  %v141 = vpack.c.b16 %v117, %v116
  %v142 = vpack.c.b16 %v119, %v118
  %v143 = vpack.c.b16 %v121, %v120
  %v144 = vpack.c.b16 %v123, %v122
  %v145 = vpack.c.b16 %v125, %v124
  %v146 = vpack.c.b16 %v127, %v126
  %v147 = vpack.c.b16 %v129, %v128
  %v148 = vpack.c.b16 %v131, %v130
  %v149 = vpack.c.b16 %v133, %v132
  %vm150 = vcmask 64512
  %v152 = vsel %vm150, %v134, 0
  %v155 = vsel %vm150, %v135, 0
  %v158 = vsel %vm150, %v136, 0
  %v161 = vsel %vm150, %v137, 0
  %v164 = vsel %vm150, %v138, 0
  %v167 = vsel %vm150, %v139, 0
  %v170 = vsel %vm150, %v140, 0
  %v173 = vsel %vm150, %v141, 0
  %v176 = vsel %vm150, %v142, 0
  %v179 = vsel %vm150, %v143, 0
  %v182 = vsel %vm150, %v144, 0
  %v185 = vsel %vm150, %v145, 0
  %v188 = vsel %vm150, %v146, 0
  %v191 = vsel %vm150, %v147, 0
  %v194 = vsel %vm150, %v148, 0
  %v197 = vsel %vm150, %v149, 0
  %vm199 = vcmask 1043456
  %v201 = vsel %vm199, %v62, 0
  %203 = vmatprep.subr.bf16.mxu0 0
  %204 = vmatpush1.bf16.msra.mxu0 %v201
  %205 = vmatprep.subr.bf16.mxu0 0
  %206 = vmatpush1.bf16.msra.mxu0 0
  %207 = vmatprep.subr.bf16.mxu0 0
  %208 = vmatpush1.bf16.msra.mxu0 0
  %209 = vmatprep.subr.bf16.mxu0 0
  %210 = vmatpush1.bf16.msra.mxu0 0
  %211 = vmatprep.subr.bf16.mxu0 0
  %212 = vmatpush1.bf16.msra.mxu0 0
  %213 = vmatprep.subr.bf16.mxu0 0
  %214 = vmatpush1.bf16.msra.mxu0 0
  %215 = vmatprep.subr.bf16.mxu0 0
  %216 = vmatpush1.bf16.msra.mxu0 0
  %217 = vmatprep.subr.bf16.mxu0 0
  %218 = vmatpush1.bf16.msra.mxu0 0
  %219 = vmatprep.subr.bf16.mxu0 0
  %220 = vmatpush1.bf16.msra.mxu0 0
  %221 = vmatprep.subr.bf16.mxu0 0
  %222 = vmatpush1.bf16.msra.mxu0 0
  %223 = vmatprep.subr.bf16.mxu0 0
  %224 = vmatpush1.bf16.msra.mxu0 0
  %225 = vmatprep.subr.bf16.mxu0 0
  %226 = vmatpush1.bf16.msra.mxu0 0
  %227 = vmatprep.subr.bf16.mxu0 0
  %228 = vmatpush1.bf16.msra.mxu0 0
  %229 = vmatprep.subr.bf16.mxu0 0
  %230 = vmatpush1.bf16.msra.mxu0 0
  %231 = vmatprep.subr.bf16.mxu0 0
  %232 = vmatpush1.bf16.msra.mxu0 0
  %233 = vmatprep.subr.bf16.mxu0 0
  %234 = vmatpush1.bf16.msra.mxu0 0
  %235 = vmatprep.mubr.bf16.mxu0 0
  %236 = vmatmul.mubr.bf16.gmra.mrb[0].mxu0 %v152
  %v237 = vpop.f32.mrb[0].mxu0
  %v238 = vadd.f32 %v68, %v237
  %v239 = vpop.f32.mrb[0].mxu0
  %v240 = vpop.f32.mrb[0].mxu0
  %v241 = vadd.f32 %v68, %v240
  %v242 = vpop.f32.mrb[0].mxu0
  %243 = vmatprep.mubr.bf16.mxu0 0
  %244 = vmatmul.mubr.bf16.gmra.mrb[0].mxu0 %v155
  %v245 = vpop.f32.mrb[0].mxu0
  %v246 = vadd.f32 %v68, %v245
  %v247 = vpop.f32.mrb[0].mxu0
  %v248 = vpop.f32.mrb[0].mxu0
  %v249 = vadd.f32 %v68, %v248
  %v250 = vpop.f32.mrb[0].mxu0
  %251 = vmatprep.mubr.bf16.mxu0 0
  %252 = vmatmul.mubr.bf16.gmra.mrb[0].mxu0 %v158
  %v253 = vpop.f32.mrb[0].mxu0
  %v254 = vadd.f32 %v68, %v253
  %v255 = vpop.f32.mrb[0].mxu0
  %v256 = vpop.f32.mrb[0].mxu0
  %v257 = vadd.f32 %v68, %v256
  %v258 = vpop.f32.mrb[0].mxu0
  %259 = vmatprep.mubr.bf16.mxu0 0
  %260 = vmatmul.mubr.bf16.gmra.mrb[0].mxu0 %v161
  %v261 = vpop.f32.mrb[0].mxu0
  %v262 = vadd.f32 %v68, %v261
  %v263 = vpop.f32.mrb[0].mxu0
  %v264 = vpop.f32.mrb[0].mxu0
  %v265 = vadd.f32 %v68, %v264
  %v266 = vpop.f32.mrb[0].mxu0
  %267 = vmatprep.mubr.bf16.mxu0 0
  %268 = vmatmul.mubr.bf16.gmra.mrb[0].mxu0 %v164
  %v269 = vpop.f32.mrb[0].mxu0
  %v270 = vadd.f32 %v68, %v269
  %v271 = vpop.f32.mrb[0].mxu0
  %v272 = vpop.f32.mrb[0].mxu0
  %v273 = vadd.f32 %v68, %v272
  %v274 = vpop.f32.mrb[0].mxu0
  %275 = vmatprep.mubr.bf16.mxu0 0
  %276 = vmatmul.mubr.bf16.gmra.mrb[0].mxu0 %v167
  %v277 = vpop.f32.mrb[0].mxu0
  %v278 = vadd.f32 %v68, %v277
  %v279 = vpop.f32.mrb[0].mxu0
  %v280 = vpop.f32.mrb[0].mxu0
  %v281 = vadd.f32 %v68, %v280
  %v282 = vpop.f32.mrb[0].mxu0
  %283 = vmatprep.mubr.bf16.mxu0 0
  %284 = vmatmul.mubr.bf16.gmra.mrb[0].mxu0 %v170
  %v285 = vpop.f32.mrb[0].mxu0
  %v286 = vadd.f32 %v68, %v285
  %v287 = vpop.f32.mrb[0].mxu0
  %v288 = vpop.f32.mrb[0].mxu0
  %v289 = vadd.f32 %v68, %v288
  %v290 = vpop.f32.mrb[0].mxu0
  %291 = vmatprep.mubr.bf16.mxu0 0
  %292 = vmatmul.mubr.bf16.gmra.mrb[0].mxu0 %v173
  %v293 = vpop.f32.mrb[0].mxu0
  %v294 = vadd.f32 %v68, %v293
  %v295 = vpop.f32.mrb[0].mxu0
  %v296 = vpop.f32.mrb[0].mxu0
  %v297 = vadd.f32 %v68, %v296
  %v298 = vpop.f32.mrb[0].mxu0
  %299 = vmatprep.mubr.bf16.mxu0 0
  %300 = vmatmul.mubr.bf16.gmra.mrb[0].mxu0 %v176
  %v301 = vpop.f32.mrb[0].mxu0
  %v302 = vadd.f32 %v68, %v301
  %v303 = vpop.f32.mrb[0].mxu0
  %v304 = vpop.f32.mrb[0].mxu0
  %v305 = vadd.f32 %v68, %v304
  %v306 = vpop.f32.mrb[0].mxu0
  %307 = vmatprep.mubr.bf16.mxu0 0
  %308 = vmatmul.mubr.bf16.gmra.mrb[0].mxu0 %v179
  %v309 = vpop.f32.mrb[0].mxu0
  %v310 = vadd.f32 %v68, %v309
  %v311 = vpop.f32.mrb[0].mxu0
  %v312 = vpop.f32.mrb[0].mxu0
  %v313 = vadd.f32 %v68, %v312
  %v314 = vpop.f32.mrb[0].mxu0
  %315 = vmatprep.mubr.bf16.mxu0 0
  %316 = vmatmul.mubr.bf16.gmra.mrb[0].mxu0 %v182
  %v317 = vpop.f32.mrb[0].mxu0
  %v318 = vadd.f32 %v68, %v317
  %v319 = vpop.f32.mrb[0].mxu0
  %v320 = vpop.f32.mrb[0].mxu0
  %v321 = vadd.f32 %v68, %v320
  %v322 = vpop.f32.mrb[0].mxu0
  %323 = vmatprep.mubr.bf16.mxu0 0
  %324 = vmatmul.mubr.bf16.gmra.mrb[0].mxu0 %v185
  %v325 = vpop.f32.mrb[0].mxu0
  %v326 = vadd.f32 %v68, %v325
  %v327 = vpop.f32.mrb[0].mxu0
  %v328 = vpop.f32.mrb[0].mxu0
  %v329 = vadd.f32 %v68, %v328
  %v330 = vpop.f32.mrb[0].mxu0
  %331 = vmatprep.mubr.bf16.mxu0 0
  %332 = vmatmul.mubr.bf16.gmra.mrb[0].mxu0 %v188
  %v333 = vpop.f32.mrb[0].mxu0
  %v334 = vadd.f32 %v68, %v333
  %v335 = vpop.f32.mrb[0].mxu0
  %v336 = vpop.f32.mrb[0].mxu0
  %v337 = vadd.f32 %v68, %v336
  %v338 = vpop.f32.mrb[0].mxu0
  %339 = vmatprep.mubr.bf16.mxu0 0
  %340 = vmatmul.mubr.bf16.gmra.mrb[0].mxu0 %v191
  %v341 = vpop.f32.mrb[0].mxu0
  %v342 = vadd.f32 %v68, %v341
  %v343 = vpop.f32.mrb[0].mxu0
  %v344 = vpop.f32.mrb[0].mxu0
  %v345 = vadd.f32 %v68, %v344
  %v346 = vpop.f32.mrb[0].mxu0
  %347 = vmatprep.mubr.bf16.mxu0 0
  %348 = vmatmul.mubr.bf16.gmra.mrb[0].mxu0 %v194
  %v349 = vpop.f32.mrb[0].mxu0
  %v350 = vadd.f32 %v68, %v349
  %v351 = vpop.f32.mrb[0].mxu0
  %v352 = vpop.f32.mrb[0].mxu0
  %v353 = vadd.f32 %v68, %v352
  %v354 = vpop.f32.mrb[0].mxu0
  %355 = vmatprep.mubr.bf16.mxu0 0
  %356 = vmatmul.mubr.bf16.gmra.mrb[0].mxu0 %v197
  %v357 = vpop.f32.mrb[0].mxu0
  %v358 = vadd.f32 %v68, %v357
  %v359 = vpop.f32.mrb[0].mxu0
  %v360 = vpop.f32.mrb[0].mxu0
  %v361 = vadd.f32 %v68, %v360
  %v362 = vpop.f32.mrb[0].mxu0
  %363 = vdwg.mxu0
  %v364 = vmax.f32 %v238, 0.0
  %v365 = vmax.f32 %v241, 0.0
  %v366 = vmax.f32 %v246, 0.0
  %v367 = vmax.f32 %v249, 0.0
  %v368 = vmax.f32 %v254, 0.0
  %v369 = vmax.f32 %v257, 0.0
  %v370 = vmax.f32 %v262, 0.0
  %v371 = vmax.f32 %v265, 0.0
  %v372 = vmax.f32 %v270, 0.0
  %v373 = vmax.f32 %v273, 0.0
  %v374 = vmax.f32 %v278, 0.0
  %v375 = vmax.f32 %v281, 0.0
  %v376 = vmax.f32 %v286, 0.0
  %v377 = vmax.f32 %v289, 0.0
  %v378 = vmax.f32 %v294, 0.0
  %v379 = vmax.f32 %v297, 0.0
  %v380 = vmax.f32 %v302, 0.0
  %v381 = vmax.f32 %v305, 0.0
  %v382 = vmax.f32 %v310, 0.0
  %v383 = vmax.f32 %v313, 0.0
  %v384 = vmax.f32 %v318, 0.0
  %v385 = vmax.f32 %v321, 0.0
  %v386 = vmax.f32 %v326, 0.0
  %v387 = vmax.f32 %v329, 0.0
  %v388 = vmax.f32 %v334, 0.0
  %v389 = vmax.f32 %v337, 0.0
  %v390 = vmax.f32 %v342, 0.0
  %v391 = vmax.f32 %v345, 0.0
  %v392 = vmax.f32 %v350, 0.0
  %v393 = vmax.f32 %v353, 0.0
  %v394 = vmax.f32 %v358, 0.0
  %v395 = vmax.f32 %v361, 0.0
  %v396 = vpack.c.bf16 %v365, %v364
  %v397 = vpack.c.bf16 %v367, %v366
  %v398 = vpack.c.bf16 %v369, %v368
  %v399 = vpack.c.bf16 %v371, %v370
  %v400 = vpack.c.bf16 %v373, %v372
  %v401 = vpack.c.bf16 %v375, %v374
  %v402 = vpack.c.bf16 %v377, %v376
  %v403 = vpack.c.bf16 %v379, %v378
  %v404 = vpack.c.bf16 %v381, %v380
  %v405 = vpack.c.bf16 %v383, %v382
  %v406 = vpack.c.bf16 %v385, %v384
  %v407 = vpack.c.bf16 %v387, %v386
  %v408 = vpack.c.bf16 %v389, %v388
  %v409 = vpack.c.bf16 %v391, %v390
  %v410 = vpack.c.bf16 %v393, %v392
  %v411 = vpack.c.bf16 %v395, %v394
  %v412 = vld [vmem:[%s3] sm:$0xff]
  %v413 = vld [vmem:[%s3 + $0x8] sm:$0xff]
  %v414 = vld [vmem:[%s3 + $0x10] sm:$0xff]
  %v415 = vld [vmem:[%s3 + $0x18] sm:$0xff]
  %v416 = vld [vmem:[%s3 + $0x20] sm:$0xff]
  %v417 = vld [vmem:[%s3 + $0x28] sm:$0xff]
  %v418 = vld [vmem:[%s3 + $0x30] sm:$0xff]
  %v419 = vld [vmem:[%s3 + $0x38] sm:$0xff]
  %v420 = vld [vmem:[%s3 + $0x40] sm:$0xff]
  %v421 = vld [vmem:[%s3 + $0x48] sm:$0xff]
  %v422 = vld [vmem:[%s3 + $0x50] sm:$0xff]
  %v423 = vld [vmem:[%s3 + $0x58] sm:$0xff]
  %v424 = vld [vmem:[%s3 + $0x60] sm:$0xff]
  %v425 = vld [vmem:[%s3 + $0x68] sm:$0xff]
  %v426 = vld [vmem:[%s3 + $0x70] sm:$0xff]
  %v427 = vld [vmem:[%s3 + $0x78] sm:$0xff]
  %v428 = vld [vmem:[%s4] sm:$0x3]
  %v430 = vlaneseq
  %v431 = vshrl.u32 %v430, 7
  %v432 = vsub.s32 0, %v431
  %v433 = vrot.slane %v428, %v432
  %v434 = vlaneseq
  %v435 = vshrl.u32 %v434, 7
  %v436 = vsub.s32 1, %v435
  %v437 = vrot.slane %v428, %v436
  %v456 = vunpack.c.l.b16 %v412
  %v457 = vunpack.c.h.b16 %v412
  %v458 = vunpack.c.l.b16 %v413
  %v459 = vunpack.c.h.b16 %v413
  %v460 = vunpack.c.l.b16 %v414
  %v461 = vunpack.c.h.b16 %v414
  %v462 = vunpack.c.l.b16 %v415
  %v463 = vunpack.c.h.b16 %v415
  %v464 = vunpack.c.l.b16 %v416
  %v465 = vunpack.c.h.b16 %v416
  %v466 = vunpack.c.l.b16 %v417
  %v467 = vunpack.c.h.b16 %v417
  %v468 = vunpack.c.l.b16 %v418
  %v469 = vunpack.c.h.b16 %v418
  %v470 = vunpack.c.l.b16 %v419
  %v471 = vunpack.c.h.b16 %v419
  %v472 = vunpack.c.l.b16 %v420
  %v473 = vunpack.c.h.b16 %v420
  %v474 = vunpack.c.l.b16 %v421
  %v475 = vunpack.c.h.b16 %v421
  %v476 = vunpack.c.l.b16 %v422
  %v477 = vunpack.c.h.b16 %v422
  %v478 = vunpack.c.l.b16 %v423
  %v479 = vunpack.c.h.b16 %v423
  %v480 = vunpack.c.l.b16 %v424
  %v481 = vunpack.c.h.b16 %v424
  %v482 = vunpack.c.l.b16 %v425
  %v483 = vunpack.c.h.b16 %v425
  %v484 = vunpack.c.l.b16 %v426
  %v485 = vunpack.c.h.b16 %v426
  %v486 = vunpack.c.l.b16 %v427
  %v487 = vunpack.c.h.b16 %v427
  %v488 = vpack.c.b16 %v458, %v456
  %v489 = vpack.c.b16 %v459, %v457
  %v490 = vpack.c.b16 %v462, %v460
  %v491 = vpack.c.b16 %v463, %v461
  %v492 = vpack.c.b16 %v466, %v464
  %v493 = vpack.c.b16 %v467, %v465
  %v494 = vpack.c.b16 %v470, %v468
  %v495 = vpack.c.b16 %v471, %v469
  %v496 = vpack.c.b16 %v474, %v472
  %v497 = vpack.c.b16 %v475, %v473
  %v498 = vpack.c.b16 %v478, %v476
  %v499 = vpack.c.b16 %v479, %v477
  %v500 = vpack.c.b16 %v482, %v480
  %v501 = vpack.c.b16 %v483, %v481
  %v502 = vpack.c.b16 %v486, %v484
  %v503 = vpack.c.b16 %v487, %v485
  %520 = vmatprep.subr.bf16.mxu0 %v489
  %521 = vmatpush1.bf16.msra.mxu0 %v488
  %522 = vmatprep.subr.bf16.mxu0 %v491
  %523 = vmatpush1.bf16.msra.mxu0 %v490
  %524 = vmatprep.subr.bf16.mxu0 %v493
  %525 = vmatpush1.bf16.msra.mxu0 %v492
  %526 = vmatprep.subr.bf16.mxu0 %v495
  %527 = vmatpush1.bf16.msra.mxu0 %v494
  %528 = vmatprep.subr.bf16.mxu0 %v497
  %529 = vmatpush1.bf16.msra.mxu0 %v496
  %530 = vmatprep.subr.bf16.mxu0 %v499
  %531 = vmatpush1.bf16.msra.mxu0 %v498
  %532 = vmatprep.subr.bf16.mxu0 %v501
  %533 = vmatpush1.bf16.msra.mxu0 %v500
  %534 = vmatprep.subr.bf16.mxu0 %v503
  %535 = vmatpush1.bf16.msra.mxu0 %v502
  %536 = vmatprep.subr.bf16.mxu0 0
  %537 = vmatpush1.bf16.msra.mxu0 0
  %538 = vmatprep.subr.bf16.mxu0 0
  %539 = vmatpush1.bf16.msra.mxu0 0
  %540 = vmatprep.subr.bf16.mxu0 0
  %541 = vmatpush1.bf16.msra.mxu0 0
  %542 = vmatprep.subr.bf16.mxu0 0
  %543 = vmatpush1.bf16.msra.mxu0 0
  %544 = vmatprep.subr.bf16.mxu0 0
  %545 = vmatpush1.bf16.msra.mxu0 0
  %546 = vmatprep.subr.bf16.mxu0 0
  %547 = vmatpush1.bf16.msra.mxu0 0
  %548 = vmatprep.subr.bf16.mxu0 0
  %549 = vmatpush1.bf16.msra.mxu0 0
  %550 = vmatprep.subr.bf16.mxu0 0
  %551 = vmatpush1.bf16.msra.mxu0 0
  %552 = vmatprep.mubr.bf16.mxu0 0
  %553 = vmatmul.mubr.bf16.gmra.mrb[0].mxu0 %v396
  %v554 = vpop.f32.mrb[0].mxu0
  %v555 = vadd.f32 %v433, %v554
  %v556 = vpop.f32.mrb[0].mxu0
  %v557 = vadd.f32 %v437, %v556
  %v558 = vpop.f32.mrb[0].mxu0
  %v559 = vadd.f32 %v433, %v558
  %v560 = vpop.f32.mrb[0].mxu0
  %v561 = vadd.f32 %v437, %v560
  %562 = vmatprep.mubr.bf16.mxu0 0
  %563 = vmatmul.mubr.bf16.gmra.mrb[0].mxu0 %v397
  %v564 = vpop.f32.mrb[0].mxu0
  %v565 = vadd.f32 %v433, %v564
  %v566 = vpop.f32.mrb[0].mxu0
  %v567 = vadd.f32 %v437, %v566
  %v568 = vpop.f32.mrb[0].mxu0
  %v569 = vadd.f32 %v433, %v568
  %v570 = vpop.f32.mrb[0].mxu0
  %v571 = vadd.f32 %v437, %v570
  %572 = vmatprep.mubr.bf16.mxu0 0
  %573 = vmatmul.mubr.bf16.gmra.mrb[0].mxu0 %v398
  %v574 = vpop.f32.mrb[0].mxu0
  %v575 = vadd.f32 %v433, %v574
  %v576 = vpop.f32.mrb[0].mxu0
  %v577 = vadd.f32 %v437, %v576
  %v578 = vpop.f32.mrb[0].mxu0
  %v579 = vadd.f32 %v433, %v578
  %v580 = vpop.f32.mrb[0].mxu0
  %v581 = vadd.f32 %v437, %v580
  %582 = vmatprep.mubr.bf16.mxu0 0
  %583 = vmatmul.mubr.bf16.gmra.mrb[0].mxu0 %v399
  %v584 = vpop.f32.mrb[0].mxu0
  %v585 = vadd.f32 %v433, %v584
  %v586 = vpop.f32.mrb[0].mxu0
  %v587 = vadd.f32 %v437, %v586
  %v588 = vpop.f32.mrb[0].mxu0
  %v589 = vadd.f32 %v433, %v588
  %v590 = vpop.f32.mrb[0].mxu0
  %v591 = vadd.f32 %v437, %v590
  %592 = vmatprep.mubr.bf16.mxu0 0
  %593 = vmatmul.mubr.bf16.gmra.mrb[0].mxu0 %v400
  %v594 = vpop.f32.mrb[0].mxu0
  %v595 = vadd.f32 %v433, %v594
  %v596 = vpop.f32.mrb[0].mxu0
  %v597 = vadd.f32 %v437, %v596
  %v598 = vpop.f32.mrb[0].mxu0
  %v599 = vadd.f32 %v433, %v598
  %v600 = vpop.f32.mrb[0].mxu0
  %v601 = vadd.f32 %v437, %v600
  %602 = vmatprep.mubr.bf16.mxu0 0
  %603 = vmatmul.mubr.bf16.gmra.mrb[0].mxu0 %v401
  %v604 = vpop.f32.mrb[0].mxu0
  %v605 = vadd.f32 %v433, %v604
  %v606 = vpop.f32.mrb[0].mxu0
  %v607 = vadd.f32 %v437, %v606
  %v608 = vpop.f32.mrb[0].mxu0
  %v609 = vadd.f32 %v433, %v608
  %v610 = vpop.f32.mrb[0].mxu0
  %v611 = vadd.f32 %v437, %v610
  %612 = vmatprep.mubr.bf16.mxu0 0
  %613 = vmatmul.mubr.bf16.gmra.mrb[0].mxu0 %v402
  %v614 = vpop.f32.mrb[0].mxu0
  %v615 = vadd.f32 %v433, %v614
  %v616 = vpop.f32.mrb[0].mxu0
  %v617 = vadd.f32 %v437, %v616
  %v618 = vpop.f32.mrb[0].mxu0
  %v619 = vadd.f32 %v433, %v618
  %v620 = vpop.f32.mrb[0].mxu0
  %v621 = vadd.f32 %v437, %v620
  %622 = vmatprep.mubr.bf16.mxu0 0
  %623 = vmatmul.mubr.bf16.gmra.mrb[0].mxu0 %v403
  %v624 = vpop.f32.mrb[0].mxu0
  %v625 = vadd.f32 %v433, %v624
  %v626 = vpop.f32.mrb[0].mxu0
  %v627 = vadd.f32 %v437, %v626
  %v628 = vpop.f32.mrb[0].mxu0
  %v629 = vadd.f32 %v433, %v628
  %v630 = vpop.f32.mrb[0].mxu0
  %v631 = vadd.f32 %v437, %v630
  %632 = vmatprep.mubr.bf16.mxu0 0
  %633 = vmatmul.mubr.bf16.gmra.mrb[0].mxu0 %v404
  %v634 = vpop.f32.mrb[0].mxu0
  %v635 = vadd.f32 %v433, %v634
  %v636 = vpop.f32.mrb[0].mxu0
  %v637 = vadd.f32 %v437, %v636
  %v638 = vpop.f32.mrb[0].mxu0
  %v639 = vadd.f32 %v433, %v638
  %v640 = vpop.f32.mrb[0].mxu0
  %v641 = vadd.f32 %v437, %v640
  %642 = vmatprep.mubr.bf16.mxu0 0
  %643 = vmatmul.mubr.bf16.gmra.mrb[0].mxu0 %v405
  %v644 = vpop.f32.mrb[0].mxu0
  %v645 = vadd.f32 %v433, %v644
  %v646 = vpop.f32.mrb[0].mxu0
  %v647 = vadd.f32 %v437, %v646
  %v648 = vpop.f32.mrb[0].mxu0
  %v649 = vadd.f32 %v433, %v648
  %v650 = vpop.f32.mrb[0].mxu0
  %v651 = vadd.f32 %v437, %v650
  %652 = vmatprep.mubr.bf16.mxu0 0
  %653 = vmatmul.mubr.bf16.gmra.mrb[0].mxu0 %v406
  %v654 = vpop.f32.mrb[0].mxu0
  %v655 = vadd.f32 %v433, %v654
  %v656 = vpop.f32.mrb[0].mxu0
  %v657 = vadd.f32 %v437, %v656
  %v658 = vpop.f32.mrb[0].mxu0
  %v659 = vadd.f32 %v433, %v658
  %v660 = vpop.f32.mrb[0].mxu0
  %v661 = vadd.f32 %v437, %v660
  %662 = vmatprep.mubr.bf16.mxu0 0
  %663 = vmatmul.mubr.bf16.gmra.mrb[0].mxu0 %v407
  %v664 = vpop.f32.mrb[0].mxu0
  %v665 = vadd.f32 %v433, %v664
  %v666 = vpop.f32.mrb[0].mxu0
  %v667 = vadd.f32 %v437, %v666
  %v668 = vpop.f32.mrb[0].mxu0
  %v669 = vadd.f32 %v433, %v668
  %v670 = vpop.f32.mrb[0].mxu0
  %v671 = vadd.f32 %v437, %v670
  %672 = vmatprep.mubr.bf16.mxu0 0
  %673 = vmatmul.mubr.bf16.gmra.mrb[0].mxu0 %v408
  %v674 = vpop.f32.mrb[0].mxu0
  %v675 = vadd.f32 %v433, %v674
  %v676 = vpop.f32.mrb[0].mxu0
  %v677 = vadd.f32 %v437, %v676
  %v678 = vpop.f32.mrb[0].mxu0
  %v679 = vadd.f32 %v433, %v678
  %v680 = vpop.f32.mrb[0].mxu0
  %v681 = vadd.f32 %v437, %v680
  %682 = vmatprep.mubr.bf16.mxu0 0
  %683 = vmatmul.mubr.bf16.gmra.mrb[0].mxu0 %v409
  %v684 = vpop.f32.mrb[0].mxu0
  %v685 = vadd.f32 %v433, %v684
  %v686 = vpop.f32.mrb[0].mxu0
  %v687 = vadd.f32 %v437, %v686
  %v688 = vpop.f32.mrb[0].mxu0
  %v689 = vadd.f32 %v433, %v688
  %v690 = vpop.f32.mrb[0].mxu0
  %v691 = vadd.f32 %v437, %v690
  %692 = vmatprep.mubr.bf16.mxu0 0
  %693 = vmatmul.mubr.bf16.gmra.mrb[0].mxu0 %v410
  %v694 = vpop.f32.mrb[0].mxu0
  %v695 = vadd.f32 %v433, %v694
  %v696 = vpop.f32.mrb[0].mxu0
  %v697 = vadd.f32 %v437, %v696
  %v698 = vpop.f32.mrb[0].mxu0
  %v699 = vadd.f32 %v433, %v698
  %v700 = vpop.f32.mrb[0].mxu0
  %v701 = vadd.f32 %v437, %v700
  %702 = vmatprep.mubr.bf16.mxu0 0
  %703 = vmatmul.mubr.bf16.gmra.mrb[0].mxu0 %v411
  %v704 = vpop.f32.mrb[0].mxu0
  %v705 = vadd.f32 %v433, %v704
  %v706 = vpop.f32.mrb[0].mxu0
  %v707 = vadd.f32 %v437, %v706
  %v708 = vpop.f32.mrb[0].mxu0
  %v709 = vadd.f32 %v433, %v708
  %v710 = vpop.f32.mrb[0].mxu0
  %v711 = vadd.f32 %v437, %v710
  %712 = vdwg.mxu0
  %v713 = vmax.f32 %v555, 0.0
  %v714 = vmax.f32 %v557, 0.0
  %v715 = vmax.f32 %v559, 0.0
  %v716 = vmax.f32 %v561, 0.0
  %v717 = vmax.f32 %v565, 0.0
  %v718 = vmax.f32 %v567, 0.0
  %v719 = vmax.f32 %v569, 0.0
  %v720 = vmax.f32 %v571, 0.0
  %v721 = vmax.f32 %v575, 0.0
  %v722 = vmax.f32 %v577, 0.0
  %v723 = vmax.f32 %v579, 0.0
  %v724 = vmax.f32 %v581, 0.0
  %v725 = vmax.f32 %v585, 0.0
  %v726 = vmax.f32 %v587, 0.0
  %v727 = vmax.f32 %v589, 0.0
  %v728 = vmax.f32 %v591, 0.0
  %v729 = vmax.f32 %v595, 0.0
  %v730 = vmax.f32 %v597, 0.0
  %v731 = vmax.f32 %v599, 0.0
  %v732 = vmax.f32 %v601, 0.0
  %v733 = vmax.f32 %v605, 0.0
  %v734 = vmax.f32 %v607, 0.0
  %v735 = vmax.f32 %v609, 0.0
  %v736 = vmax.f32 %v611, 0.0
  %v737 = vmax.f32 %v615, 0.0
  %v738 = vmax.f32 %v617, 0.0
  %v739 = vmax.f32 %v619, 0.0
  %v740 = vmax.f32 %v621, 0.0
  %v741 = vmax.f32 %v625, 0.0
  %v742 = vmax.f32 %v627, 0.0
  %v743 = vmax.f32 %v629, 0.0
  %v744 = vmax.f32 %v631, 0.0
  %v745 = vmax.f32 %v635, 0.0
  %v746 = vmax.f32 %v637, 0.0
  %v747 = vmax.f32 %v639, 0.0
  %v748 = vmax.f32 %v641, 0.0
  %v749 = vmax.f32 %v645, 0.0
  %v750 = vmax.f32 %v647, 0.0
  %v751 = vmax.f32 %v649, 0.0
  %v752 = vmax.f32 %v651, 0.0
  %v753 = vmax.f32 %v655, 0.0
  %v754 = vmax.f32 %v657, 0.0
  %v755 = vmax.f32 %v659, 0.0
  %v756 = vmax.f32 %v661, 0.0
  %v757 = vmax.f32 %v665, 0.0
  %v758 = vmax.f32 %v667, 0.0
  %v759 = vmax.f32 %v669, 0.0
  %v760 = vmax.f32 %v671, 0.0
  %v761 = vmax.f32 %v675, 0.0
  %v762 = vmax.f32 %v677, 0.0
  %v763 = vmax.f32 %v679, 0.0
  %v764 = vmax.f32 %v681, 0.0
  %v765 = vmax.f32 %v685, 0.0
  %v766 = vmax.f32 %v687, 0.0
  %v767 = vmax.f32 %v689, 0.0
  %v768 = vmax.f32 %v691, 0.0
  %v769 = vmax.f32 %v695, 0.0
  %v770 = vmax.f32 %v697, 0.0
  %v771 = vmax.f32 %v699, 0.0
  %v772 = vmax.f32 %v701, 0.0
  %v773 = vmax.f32 %v705, 0.0
  %v774 = vmax.f32 %v707, 0.0
  %v775 = vmax.f32 %v709, 0.0
  %v776 = vmax.f32 %v711, 0.0
  %v777 = vpack.c.bf16 %v715, %v713
  %v778 = vpack.c.bf16 %v716, %v714
  %v779 = vpack.c.bf16 %v719, %v717
  %v780 = vpack.c.bf16 %v720, %v718
  %v781 = vpack.c.bf16 %v723, %v721
  %v782 = vpack.c.bf16 %v724, %v722
  %v783 = vpack.c.bf16 %v727, %v725
  %v784 = vpack.c.bf16 %v728, %v726
  %v785 = vpack.c.bf16 %v731, %v729
  %v786 = vpack.c.bf16 %v732, %v730
  %v787 = vpack.c.bf16 %v735, %v733
  %v788 = vpack.c.bf16 %v736, %v734
  %v789 = vpack.c.bf16 %v739, %v737
  %v790 = vpack.c.bf16 %v740, %v738
  %v791 = vpack.c.bf16 %v743, %v741
  %v792 = vpack.c.bf16 %v744, %v742
  %v793 = vpack.c.bf16 %v747, %v745
  %v794 = vpack.c.bf16 %v748, %v746
  %v795 = vpack.c.bf16 %v751, %v749
  %v796 = vpack.c.bf16 %v752, %v750
  %v797 = vpack.c.bf16 %v755, %v753
  %v798 = vpack.c.bf16 %v756, %v754
  %v799 = vpack.c.bf16 %v759, %v757
  %v800 = vpack.c.bf16 %v760, %v758
  %v801 = vpack.c.bf16 %v763, %v761
  %v802 = vpack.c.bf16 %v764, %v762
  %v803 = vpack.c.bf16 %v767, %v765
  %v804 = vpack.c.bf16 %v768, %v766
  %v805 = vpack.c.bf16 %v771, %v769
  %v806 = vpack.c.bf16 %v772, %v770
  %v807 = vpack.c.bf16 %v775, %v773
  %v808 = vpack.c.bf16 %v776, %v774
  %v809 = vld [vmem:[%s5] sm:$0xff]
  %v810 = vld [vmem:[%s5 + $0x8] sm:$0xff]
  %v811 = vld [vmem:[%s5 + $0x10] sm:$0xff]
  %v812 = vld [vmem:[%s5 + $0x18] sm:$0xff]
  %v813 = vld [vmem:[%s5 + $0x20] sm:$0xff]
  %v814 = vld [vmem:[%s5 + $0x28] sm:$0xff]
  %v815 = vld [vmem:[%s5 + $0x30] sm:$0xff]
  %v816 = vld [vmem:[%s5 + $0x38] sm:$0xff]
  %v817 = vld [vmem:[%s5 + $0x40] sm:$0xff]
  %v818 = vld [vmem:[%s5 + $0x48] sm:$0xff]
  %v819 = vld [vmem:[%s5 + $0x50] sm:$0xff]
  %v820 = vld [vmem:[%s5 + $0x58] sm:$0xff]
  %v821 = vld [vmem:[%s5 + $0x60] sm:$0xff]
  %v822 = vld [vmem:[%s5 + $0x68] sm:$0xff]
  %v823 = vld [vmem:[%s5 + $0x70] sm:$0xff]
  %v824 = vld [vmem:[%s5 + $0x78] sm:$0xff]
  %v825 = vld [vmem:[%s5 + $0x80] sm:$0xff]
  %v826 = vld [vmem:[%s5 + $0x88] sm:$0xff]
  %v827 = vld [vmem:[%s5 + $0x90] sm:$0xff]
  %v828 = vld [vmem:[%s5 + $0x98] sm:$0xff]
  %v829 = vld [vmem:[%s5 + $0xa0] sm:$0xff]
  %v830 = vld [vmem:[%s5 + $0xa8] sm:$0xff]
  %v831 = vld [vmem:[%s5 + $0xb0] sm:$0xff]
  %v832 = vld [vmem:[%s5 + $0xb8] sm:$0xff]
  %v833 = vld [vmem:[%s5 + $0xc0] sm:$0xff]
  %v834 = vld [vmem:[%s5 + $0xc8] sm:$0xff]
  %v835 = vld [vmem:[%s5 + $0xd0] sm:$0xff]
  %v836 = vld [vmem:[%s5 + $0xd8] sm:$0xff]
  %v837 = vld [vmem:[%s5 + $0xe0] sm:$0xff]
  %v838 = vld [vmem:[%s5 + $0xe8] sm:$0xff]
  %v839 = vld [vmem:[%s5 + $0xf0] sm:$0xff]
  %v840 = vld [vmem:[%s5 + $0xf8] sm:$0xff]
  %v841 = vld [vmem:[%s5 + $0x100] sm:$0xff]
  %v842 = vld [vmem:[%s5 + $0x108] sm:$0xff]
  %v843 = vld [vmem:[%s5 + $0x110] sm:$0xff]
  %v844 = vld [vmem:[%s5 + $0x118] sm:$0xff]
  %v845 = vld [vmem:[%s5 + $0x120] sm:$0xff]
  %v846 = vld [vmem:[%s5 + $0x128] sm:$0xff]
  %v847 = vld [vmem:[%s5 + $0x130] sm:$0xff]
  %v848 = vld [vmem:[%s5 + $0x138] sm:$0xff]
  %v849 = vld [vmem:[%s5 + $0x140] sm:$0xff]
  %v850 = vld [vmem:[%s5 + $0x148] sm:$0xff]
  %v851 = vld [vmem:[%s5 + $0x150] sm:$0xff]
  %v852 = vld [vmem:[%s5 + $0x158] sm:$0xff]
  %v853 = vld [vmem:[%s5 + $0x160] sm:$0xff]
  %v854 = vld [vmem:[%s5 + $0x168] sm:$0xff]
  %v855 = vld [vmem:[%s5 + $0x170] sm:$0xff]
  %v856 = vld [vmem:[%s5 + $0x178] sm:$0xff]
  %v857 = vld [vmem:[%s5 + $0x180] sm:$0xff]
  %v858 = vld [vmem:[%s5 + $0x188] sm:$0xff]
  %v859 = vld [vmem:[%s5 + $0x190] sm:$0xff]
  %v860 = vld [vmem:[%s5 + $0x198] sm:$0xff]
  %v861 = vld [vmem:[%s5 + $0x1a0] sm:$0xff]
  %v862 = vld [vmem:[%s5 + $0x1a8] sm:$0xff]
  %v863 = vld [vmem:[%s5 + $0x1b0] sm:$0xff]
  %v864 = vld [vmem:[%s5 + $0x1b8] sm:$0xff]
  %v865 = vld [vmem:[%s5 + $0x1c0] sm:$0xff]
  %v866 = vld [vmem:[%s5 + $0x1c8] sm:$0xff]
  %v867 = vld [vmem:[%s5 + $0x1d0] sm:$0xff]
  %v868 = vld [vmem:[%s5 + $0x1d8] sm:$0xff]
  %v869 = vld [vmem:[%s5 + $0x1e0] sm:$0xff]
  %v870 = vld [vmem:[%s5 + $0x1e8] sm:$0xff]
  %v871 = vld [vmem:[%s5 + $0x1f0] sm:$0xff]
  %v872 = vld [vmem:[%s5 + $0x1f8] sm:$0xff]
  %v937 = vunpack.c.l.b16 %v809
  %v938 = vunpack.c.h.b16 %v809
  %v939 = vunpack.c.l.b16 %v810
  %v940 = vunpack.c.h.b16 %v810
  %v941 = vunpack.c.l.b16 %v811
  %v942 = vunpack.c.h.b16 %v811
  %v943 = vunpack.c.l.b16 %v812
  %v944 = vunpack.c.h.b16 %v812
  %v945 = vunpack.c.l.b16 %v813
  %v946 = vunpack.c.h.b16 %v813
  %v947 = vunpack.c.l.b16 %v814
  %v948 = vunpack.c.h.b16 %v814
  %v949 = vunpack.c.l.b16 %v815
  %v950 = vunpack.c.h.b16 %v815
  %v951 = vunpack.c.l.b16 %v816
  %v952 = vunpack.c.h.b16 %v816
  %v953 = vunpack.c.l.b16 %v817
  %v954 = vunpack.c.h.b16 %v817
  %v955 = vunpack.c.l.b16 %v818
  %v956 = vunpack.c.h.b16 %v818
  %v957 = vunpack.c.l.b16 %v819
  %v958 = vunpack.c.h.b16 %v819
  %v959 = vunpack.c.l.b16 %v820
  %v960 = vunpack.c.h.b16 %v820
  %v961 = vunpack.c.l.b16 %v821
  %v962 = vunpack.c.h.b16 %v821
  %v963 = vunpack.c.l.b16 %v822
  %v964 = vunpack.c.h.b16 %v822
  %v965 = vunpack.c.l.b16 %v823
  %v966 = vunpack.c.h.b16 %v823
  %v967 = vunpack.c.l.b16 %v824
  %v968 = vunpack.c.h.b16 %v824
  %v969 = vunpack.c.l.b16 %v825
  %v970 = vunpack.c.h.b16 %v825
  %v971 = vunpack.c.l.b16 %v826
  %v972 = vunpack.c.h.b16 %v826
  %v973 = vunpack.c.l.b16 %v827
  %v974 = vunpack.c.h.b16 %v827
  %v975 = vunpack.c.l.b16 %v828
  %v976 = vunpack.c.h.b16 %v828
  %v977 = vunpack.c.l.b16 %v829
  %v978 = vunpack.c.h.b16 %v829
  %v979 = vunpack.c.l.b16 %v830
  %v980 = vunpack.c.h.b16 %v830
  %v981 = vunpack.c.l.b16 %v831
  %v982 = vunpack.c.h.b16 %v831
  %v983 = vunpack.c.l.b16 %v832
  %v984 = vunpack.c.h.b16 %v832
  %v985 = vunpack.c.l.b16 %v833
  %v986 = vunpack.c.h.b16 %v833
  %v987 = vunpack.c.l.b16 %v834
  %v988 = vunpack.c.h.b16 %v834
  %v989 = vunpack.c.l.b16 %v835
  %v990 = vunpack.c.h.b16 %v835
  %v991 = vunpack.c.l.b16 %v836
  %v992 = vunpack.c.h.b16 %v836
  %v993 = vunpack.c.l.b16 %v837
  %v994 = vunpack.c.h.b16 %v837
  %v995 = vunpack.c.l.b16 %v838
  %v996 = vunpack.c.h.b16 %v838
  %v997 = vunpack.c.l.b16 %v839
  %v998 = vunpack.c.h.b16 %v839
  %v999 = vunpack.c.l.b16 %v840
  %v1000 = vunpack.c.h.b16 %v840
  %v1001 = vunpack.c.l.b16 %v841
  %v1002 = vunpack.c.h.b16 %v841
  %v1003 = vunpack.c.l.b16 %v842
  %v1004 = vunpack.c.h.b16 %v842
  %v1005 = vunpack.c.l.b16 %v843
  %v1006 = vunpack.c.h.b16 %v843
  %v1007 = vunpack.c.l.b16 %v844
  %v1008 = vunpack.c.h.b16 %v844
  %v1009 = vunpack.c.l.b16 %v845
  %v1010 = vunpack.c.h.b16 %v845
  %v1011 = vunpack.c.l.b16 %v846
  %v1012 = vunpack.c.h.b16 %v846
  %v1013 = vunpack.c.l.b16 %v847
  %v1014 = vunpack.c.h.b16 %v847
  %v1015 = vunpack.c.l.b16 %v848
  %v1016 = vunpack.c.h.b16 %v848
  %v1017 = vunpack.c.l.b16 %v849
  %v1018 = vunpack.c.h.b16 %v849
  %v1019 = vunpack.c.l.b16 %v850
  %v1020 = vunpack.c.h.b16 %v850
  %v1021 = vunpack.c.l.b16 %v851
  %v1022 = vunpack.c.h.b16 %v851
  %v1023 = vunpack.c.l.b16 %v852
  %v1024 = vunpack.c.h.b16 %v852
  %v1025 = vunpack.c.l.b16 %v853
  %v1026 = vunpack.c.h.b16 %v853
  %v1027 = vunpack.c.l.b16 %v854
  %v1028 = vunpack.c.h.b16 %v854
  %v1029 = vunpack.c.l.b16 %v855
  %v1030 = vunpack.c.h.b16 %v855
  %v1031 = vunpack.c.l.b16 %v856
  %v1032 = vunpack.c.h.b16 %v856
  %v1033 = vunpack.c.l.b16 %v857
  %v1034 = vunpack.c.h.b16 %v857
  %v1035 = vunpack.c.l.b16 %v858
  %v1036 = vunpack.c.h.b16 %v858
  %v1037 = vunpack.c.l.b16 %v859
  %v1038 = vunpack.c.h.b16 %v859
  %v1039 = vunpack.c.l.b16 %v860
  %v1040 = vunpack.c.h.b16 %v860
  %v1041 = vunpack.c.l.b16 %v861
  %v1042 = vunpack.c.h.b16 %v861
  %v1043 = vunpack.c.l.b16 %v862
  %v1044 = vunpack.c.h.b16 %v862
  %v1045 = vunpack.c.l.b16 %v863
  %v1046 = vunpack.c.h.b16 %v863
  %v1047 = vunpack.c.l.b16 %v864
  %v1048 = vunpack.c.h.b16 %v864
  %v1049 = vunpack.c.l.b16 %v865
  %v1050 = vunpack.c.h.b16 %v865
  %v1051 = vunpack.c.l.b16 %v866
  %v1052 = vunpack.c.h.b16 %v866
  %v1053 = vunpack.c.l.b16 %v867
  %v1054 = vunpack.c.h.b16 %v867
  %v1055 = vunpack.c.l.b16 %v868
  %v1056 = vunpack.c.h.b16 %v868
  %v1057 = vunpack.c.l.b16 %v869
  %v1058 = vunpack.c.h.b16 %v869
  %v1059 = vunpack.c.l.b16 %v870
  %v1060 = vunpack.c.h.b16 %v870
  %v1061 = vunpack.c.l.b16 %v871
  %v1062 = vunpack.c.h.b16 %v871
  %v1063 = vunpack.c.l.b16 %v872
  %v1064 = vunpack.c.h.b16 %v872
  %v1065 = vpack.c.b16 %v941, %v937
  %v1066 = vpack.c.b16 %v942, %v938
  %v1067 = vpack.c.b16 %v943, %v939
  %v1068 = vpack.c.b16 %v944, %v940
  %v1069 = vpack.c.b16 %v949, %v945
  %v1070 = vpack.c.b16 %v950, %v946
  %v1071 = vpack.c.b16 %v951, %v947
  %v1072 = vpack.c.b16 %v952, %v948
  %v1073 = vpack.c.b16 %v957, %v953
  %v1074 = vpack.c.b16 %v958, %v954
  %v1075 = vpack.c.b16 %v959, %v955
  %v1076 = vpack.c.b16 %v960, %v956
  %v1077 = vpack.c.b16 %v965, %v961
  %v1078 = vpack.c.b16 %v966, %v962
  %v1079 = vpack.c.b16 %v967, %v963
  %v1080 = vpack.c.b16 %v968, %v964
  %v1081 = vpack.c.b16 %v973, %v969
  %v1082 = vpack.c.b16 %v974, %v970
  %v1083 = vpack.c.b16 %v975, %v971
  %v1084 = vpack.c.b16 %v976, %v972
  %v1085 = vpack.c.b16 %v981, %v977
  %v1086 = vpack.c.b16 %v982, %v978
  %v1087 = vpack.c.b16 %v983, %v979
  %v1088 = vpack.c.b16 %v984, %v980
  %v1089 = vpack.c.b16 %v989, %v985
  %v1090 = vpack.c.b16 %v990, %v986
  %v1091 = vpack.c.b16 %v991, %v987
  %v1092 = vpack.c.b16 %v992, %v988
  %v1093 = vpack.c.b16 %v997, %v993
  %v1094 = vpack.c.b16 %v998, %v994
  %v1095 = vpack.c.b16 %v999, %v995
  %v1096 = vpack.c.b16 %v1000, %v996
  %v1097 = vpack.c.b16 %v1005, %v1001
  %v1098 = vpack.c.b16 %v1006, %v1002
  %v1099 = vpack.c.b16 %v1007, %v1003
  %v1100 = vpack.c.b16 %v1008, %v1004
  %v1101 = vpack.c.b16 %v1013, %v1009
  %v1102 = vpack.c.b16 %v1014, %v1010
  %v1103 = vpack.c.b16 %v1015, %v1011
  %v1104 = vpack.c.b16 %v1016, %v1012
  %v1105 = vpack.c.b16 %v1021, %v1017
  %v1106 = vpack.c.b16 %v1022, %v1018
  %v1107 = vpack.c.b16 %v1023, %v1019
  %v1108 = vpack.c.b16 %v1024, %v1020
  %v1109 = vpack.c.b16 %v1029, %v1025
  %v1110 = vpack.c.b16 %v1030, %v1026
  %v1111 = vpack.c.b16 %v1031, %v1027
  %v1112 = vpack.c.b16 %v1032, %v1028
  %v1113 = vpack.c.b16 %v1037, %v1033
  %v1114 = vpack.c.b16 %v1038, %v1034
  %v1115 = vpack.c.b16 %v1039, %v1035
  %v1116 = vpack.c.b16 %v1040, %v1036
  %v1117 = vpack.c.b16 %v1045, %v1041
  %v1118 = vpack.c.b16 %v1046, %v1042
  %v1119 = vpack.c.b16 %v1047, %v1043
  %v1120 = vpack.c.b16 %v1048, %v1044
  %v1121 = vpack.c.b16 %v1053, %v1049
  %v1122 = vpack.c.b16 %v1054, %v1050
  %v1123 = vpack.c.b16 %v1055, %v1051
  %v1124 = vpack.c.b16 %v1056, %v1052
  %v1125 = vpack.c.b16 %v1061, %v1057
  %v1126 = vpack.c.b16 %v1062, %v1058
  %v1127 = vpack.c.b16 %v1063, %v1059
  %v1128 = vpack.c.b16 %v1064, %v1060
  %1193 = vmatprep.subr.bf16.mxu0 %v1066
  %1194 = vmatpush1.bf16.msra.mxu0 %v1065
  %1195 = vmatprep.subr.bf16.mxu0 %v1070
  %1196 = vmatpush1.bf16.msra.mxu0 %v1069
  %1197 = vmatprep.subr.bf16.mxu0 %v1074
  %1198 = vmatpush1.bf16.msra.mxu0 %v1073
  %1199 = vmatprep.subr.bf16.mxu0 %v1078
  %1200 = vmatpush1.bf16.msra.mxu0 %v1077
  %1201 = vmatprep.subr.bf16.mxu0 %v1082
  %1202 = vmatpush1.bf16.msra.mxu0 %v1081
  %1203 = vmatprep.subr.bf16.mxu0 %v1086
  %1204 = vmatpush1.bf16.msra.mxu0 %v1085
  %1205 = vmatprep.subr.bf16.mxu0 %v1090
  %1206 = vmatpush1.bf16.msra.mxu0 %v1089
  %1207 = vmatprep.subr.bf16.mxu0 %v1094
  %1208 = vmatpush1.bf16.msra.mxu0 %v1093
  %1209 = vmatprep.subr.bf16.mxu0 %v1098
  %1210 = vmatpush1.bf16.msra.mxu0 %v1097
  %1211 = vmatprep.subr.bf16.mxu0 %v1102
  %1212 = vmatpush1.bf16.msra.mxu0 %v1101
  %1213 = vmatprep.subr.bf16.mxu0 %v1106
  %1214 = vmatpush1.bf16.msra.mxu0 %v1105
  %1215 = vmatprep.subr.bf16.mxu0 %v1110
  %1216 = vmatpush1.bf16.msra.mxu0 %v1109
  %1217 = vmatprep.subr.bf16.mxu0 %v1114
  %1218 = vmatpush1.bf16.msra.mxu0 %v1113
  %1219 = vmatprep.subr.bf16.mxu0 %v1118
  %1220 = vmatpush1.bf16.msra.mxu0 %v1117
  %1221 = vmatprep.subr.bf16.mxu0 %v1122
  %1222 = vmatpush1.bf16.msra.mxu0 %v1121
  %1223 = vmatprep.subr.bf16.mxu0 %v1126
  %1224 = vmatpush1.bf16.msra.mxu0 %v1125
  %1225 = vmatprep.mubr.bf16.mxu0 %v778
  %1226 = vmatmul.mubr.bf16.gmra.mrb[0].mxu0 %v777
  %v1227 = vpop.f32.mrb[0].mxu0
  %v1228 = vadd.f32 0.0, %v1227
  %v1229 = vpop.f32.mrb[0].mxu0
  %v1230 = vadd.f32 0.0, %v1229
  %v1231 = vpop.f32.mrb[0].mxu0
  %v1232 = vadd.f32 0.0, %v1231
  %v1233 = vpop.f32.mrb[0].mxu0
  %v1234 = vadd.f32 0.0, %v1233
  %1235 = vmatprep.mubr.bf16.mxu0 %v780
  %1236 = vmatmul.mubr.bf16.gmra.mrb[0].mxu0 %v779
  %v1237 = vpop.f32.mrb[0].mxu0
  %v1238 = vadd.f32 0.0, %v1237
  %v1239 = vpop.f32.mrb[0].mxu0
  %v1240 = vadd.f32 0.0, %v1239
  %v1241 = vpop.f32.mrb[0].mxu0
  %v1242 = vadd.f32 0.0, %v1241
  %v1243 = vpop.f32.mrb[0].mxu0
  %v1244 = vadd.f32 0.0, %v1243
  %1245 = vmatprep.mubr.bf16.mxu0 %v782
  %1246 = vmatmul.mubr.bf16.gmra.mrb[0].mxu0 %v781
  %v1247 = vpop.f32.mrb[0].mxu0
  %v1248 = vadd.f32 0.0, %v1247
  %v1249 = vpop.f32.mrb[0].mxu0
  %v1250 = vadd.f32 0.0, %v1249
  %v1251 = vpop.f32.mrb[0].mxu0
  %v1252 = vadd.f32 0.0, %v1251
  %v1253 = vpop.f32.mrb[0].mxu0
  %v1254 = vadd.f32 0.0, %v1253
  %1255 = vmatprep.mubr.bf16.mxu0 %v784
  %1256 = vmatmul.mubr.bf16.gmra.mrb[0].mxu0 %v783
  %v1257 = vpop.f32.mrb[0].mxu0
  %v1258 = vadd.f32 0.0, %v1257
  %v1259 = vpop.f32.mrb[0].mxu0
  %v1260 = vadd.f32 0.0, %v1259
  %v1261 = vpop.f32.mrb[0].mxu0
  %v1262 = vadd.f32 0.0, %v1261
  %v1263 = vpop.f32.mrb[0].mxu0
  %v1264 = vadd.f32 0.0, %v1263
  %1265 = vmatprep.mubr.bf16.mxu0 %v786
  %1266 = vmatmul.mubr.bf16.gmra.mrb[0].mxu0 %v785
  %v1267 = vpop.f32.mrb[0].mxu0
  %v1268 = vadd.f32 0.0, %v1267
  %v1269 = vpop.f32.mrb[0].mxu0
  %v1270 = vadd.f32 0.0, %v1269
  %v1271 = vpop.f32.mrb[0].mxu0
  %v1272 = vadd.f32 0.0, %v1271
  %v1273 = vpop.f32.mrb[0].mxu0
  %v1274 = vadd.f32 0.0, %v1273
  %1275 = vmatprep.mubr.bf16.mxu0 %v788
  %1276 = vmatmul.mubr.bf16.gmra.mrb[0].mxu0 %v787
  %v1277 = vpop.f32.mrb[0].mxu0
  %v1278 = vadd.f32 0.0, %v1277
  %v1279 = vpop.f32.mrb[0].mxu0
  %v1280 = vadd.f32 0.0, %v1279
  %v1281 = vpop.f32.mrb[0].mxu0
  %v1282 = vadd.f32 0.0, %v1281
  %v1283 = vpop.f32.mrb[0].mxu0
  %v1284 = vadd.f32 0.0, %v1283
  %1285 = vmatprep.mubr.bf16.mxu0 %v790
  %1286 = vmatmul.mubr.bf16.gmra.mrb[0].mxu0 %v789
  %v1287 = vpop.f32.mrb[0].mxu0
  %v1288 = vadd.f32 0.0, %v1287
  %v1289 = vpop.f32.mrb[0].mxu0
  %v1290 = vadd.f32 0.0, %v1289
  %v1291 = vpop.f32.mrb[0].mxu0
  %v1292 = vadd.f32 0.0, %v1291
  %v1293 = vpop.f32.mrb[0].mxu0
  %v1294 = vadd.f32 0.0, %v1293
  %1295 = vmatprep.mubr.bf16.mxu0 %v792
  %1296 = vmatmul.mubr.bf16.gmra.mrb[0].mxu0 %v791
  %v1297 = vpop.f32.mrb[0].mxu0
  %v1298 = vadd.f32 0.0, %v1297
  %v1299 = vpop.f32.mrb[0].mxu0
  %v1300 = vadd.f32 0.0, %v1299
  %v1301 = vpop.f32.mrb[0].mxu0
  %v1302 = vadd.f32 0.0, %v1301
  %v1303 = vpop.f32.mrb[0].mxu0
  %v1304 = vadd.f32 0.0, %v1303
  %1305 = vmatprep.mubr.bf16.mxu0 %v794
  %1306 = vmatmul.mubr.bf16.gmra.mrb[0].mxu0 %v793
  %v1307 = vpop.f32.mrb[0].mxu0
  %v1308 = vadd.f32 0.0, %v1307
  %v1309 = vpop.f32.mrb[0].mxu0
  %v1310 = vadd.f32 0.0, %v1309
  %v1311 = vpop.f32.mrb[0].mxu0
  %v1312 = vadd.f32 0.0, %v1311
  %v1313 = vpop.f32.mrb[0].mxu0
  %v1314 = vadd.f32 0.0, %v1313
  %1315 = vmatprep.mubr.bf16.mxu0 %v796
  %1316 = vmatmul.mubr.bf16.gmra.mrb[0].mxu0 %v795
  %v1317 = vpop.f32.mrb[0].mxu0
  %v1318 = vadd.f32 0.0, %v1317
  %v1319 = vpop.f32.mrb[0].mxu0
  %v1320 = vadd.f32 0.0, %v1319
  %v1321 = vpop.f32.mrb[0].mxu0
  %v1322 = vadd.f32 0.0, %v1321
  %v1323 = vpop.f32.mrb[0].mxu0
  %v1324 = vadd.f32 0.0, %v1323
  %1325 = vmatprep.mubr.bf16.mxu0 %v798
  %1326 = vmatmul.mubr.bf16.gmra.mrb[0].mxu0 %v797
  %v1327 = vpop.f32.mrb[0].mxu0
  %v1328 = vadd.f32 0.0, %v1327
  %v1329 = vpop.f32.mrb[0].mxu0
  %v1330 = vadd.f32 0.0, %v1329
  %v1331 = vpop.f32.mrb[0].mxu0
  %v1332 = vadd.f32 0.0, %v1331
  %v1333 = vpop.f32.mrb[0].mxu0
  %v1334 = vadd.f32 0.0, %v1333
  %1335 = vmatprep.mubr.bf16.mxu0 %v800
  %1336 = vmatmul.mubr.bf16.gmra.mrb[0].mxu0 %v799
  %v1337 = vpop.f32.mrb[0].mxu0
  %v1338 = vadd.f32 0.0, %v1337
  %v1339 = vpop.f32.mrb[0].mxu0
  %v1340 = vadd.f32 0.0, %v1339
  %v1341 = vpop.f32.mrb[0].mxu0
  %v1342 = vadd.f32 0.0, %v1341
  %v1343 = vpop.f32.mrb[0].mxu0
  %v1344 = vadd.f32 0.0, %v1343
  %1345 = vmatprep.mubr.bf16.mxu0 %v802
  %1346 = vmatmul.mubr.bf16.gmra.mrb[0].mxu0 %v801
  %v1347 = vpop.f32.mrb[0].mxu0
  %v1348 = vadd.f32 0.0, %v1347
  %v1349 = vpop.f32.mrb[0].mxu0
  %v1350 = vadd.f32 0.0, %v1349
  %v1351 = vpop.f32.mrb[0].mxu0
  %v1352 = vadd.f32 0.0, %v1351
  %v1353 = vpop.f32.mrb[0].mxu0
  %v1354 = vadd.f32 0.0, %v1353
  %1355 = vmatprep.mubr.bf16.mxu0 %v804
  %1356 = vmatmul.mubr.bf16.gmra.mrb[0].mxu0 %v803
  %v1357 = vpop.f32.mrb[0].mxu0
  %v1358 = vadd.f32 0.0, %v1357
  %v1359 = vpop.f32.mrb[0].mxu0
  %v1360 = vadd.f32 0.0, %v1359
  %v1361 = vpop.f32.mrb[0].mxu0
  %v1362 = vadd.f32 0.0, %v1361
  %v1363 = vpop.f32.mrb[0].mxu0
  %v1364 = vadd.f32 0.0, %v1363
  %1365 = vmatprep.mubr.bf16.mxu0 %v806
  %1366 = vmatmul.mubr.bf16.gmra.mrb[0].mxu0 %v805
  %v1367 = vpop.f32.mrb[0].mxu0
  %v1368 = vadd.f32 0.0, %v1367
  %v1369 = vpop.f32.mrb[0].mxu0
  %v1370 = vadd.f32 0.0, %v1369
  %v1371 = vpop.f32.mrb[0].mxu0
  %v1372 = vadd.f32 0.0, %v1371
  %v1373 = vpop.f32.mrb[0].mxu0
  %v1374 = vadd.f32 0.0, %v1373
  %1375 = vmatprep.mubr.bf16.mxu0 %v808
  %1376 = vmatmul.mubr.bf16.gmra.mrb[0].mxu0 %v807
  %v1377 = vpop.f32.mrb[0].mxu0
  %v1378 = vadd.f32 0.0, %v1377
  %v1379 = vpop.f32.mrb[0].mxu0
  %v1380 = vadd.f32 0.0, %v1379
  %v1381 = vpop.f32.mrb[0].mxu0
  %v1382 = vadd.f32 0.0, %v1381
  %v1383 = vpop.f32.mrb[0].mxu0
  %v1384 = vadd.f32 0.0, %v1383
  %1385 = vdwg.mxu0
  %1386 = vmatprep.subr.bf16.mxu0 %v1068
  %1387 = vmatpush1.bf16.msra.mxu0 %v1067
  %1388 = vmatprep.subr.bf16.mxu0 %v1072
  %1389 = vmatpush1.bf16.msra.mxu0 %v1071
  %1390 = vmatprep.subr.bf16.mxu0 %v1076
  %1391 = vmatpush1.bf16.msra.mxu0 %v1075
  %1392 = vmatprep.subr.bf16.mxu0 %v1080
  %1393 = vmatpush1.bf16.msra.mxu0 %v1079
  %1394 = vmatprep.subr.bf16.mxu0 %v1084
  %1395 = vmatpush1.bf16.msra.mxu0 %v1083
  %1396 = vmatprep.subr.bf16.mxu0 %v1088
  %1397 = vmatpush1.bf16.msra.mxu0 %v1087
  %1398 = vmatprep.subr.bf16.mxu0 %v1092
  %1399 = vmatpush1.bf16.msra.mxu0 %v1091
  %1400 = vmatprep.subr.bf16.mxu0 %v1096
  %1401 = vmatpush1.bf16.msra.mxu0 %v1095
  %1402 = vmatprep.subr.bf16.mxu0 %v1100
  %1403 = vmatpush1.bf16.msra.mxu0 %v1099
  %1404 = vmatprep.subr.bf16.mxu0 %v1104
  %1405 = vmatpush1.bf16.msra.mxu0 %v1103
  %1406 = vmatprep.subr.bf16.mxu0 %v1108
  %1407 = vmatpush1.bf16.msra.mxu0 %v1107
  %1408 = vmatprep.subr.bf16.mxu0 %v1112
  %1409 = vmatpush1.bf16.msra.mxu0 %v1111
  %1410 = vmatprep.subr.bf16.mxu0 %v1116
  %1411 = vmatpush1.bf16.msra.mxu0 %v1115
  %1412 = vmatprep.subr.bf16.mxu0 %v1120
  %1413 = vmatpush1.bf16.msra.mxu0 %v1119
  %1414 = vmatprep.subr.bf16.mxu0 %v1124
  %1415 = vmatpush1.bf16.msra.mxu0 %v1123
  %1416 = vmatprep.subr.bf16.mxu0 %v1128
  %1417 = vmatpush1.bf16.msra.mxu0 %v1127
  %1418 = vmatprep.mubr.bf16.mxu0 %v778
  %1419 = vmatmul.mubr.bf16.gmra.mrb[0].mxu0 %v777
  %v1420 = vpop.f32.mrb[0].mxu0
  %v1421 = vadd.f32 0.0, %v1420
  %v1422 = vpop.f32.mrb[0].mxu0
  %v1423 = vadd.f32 0.0, %v1422
  %v1424 = vpop.f32.mrb[0].mxu0
  %v1425 = vadd.f32 0.0, %v1424
  %v1426 = vpop.f32.mrb[0].mxu0
  %v1427 = vadd.f32 0.0, %v1426
  %1428 = vmatprep.mubr.bf16.mxu0 %v780
  %1429 = vmatmul.mubr.bf16.gmra.mrb[0].mxu0 %v779
  %v1430 = vpop.f32.mrb[0].mxu0
  %v1431 = vadd.f32 0.0, %v1430
  %v1432 = vpop.f32.mrb[0].mxu0
  %v1433 = vadd.f32 0.0, %v1432
  %v1434 = vpop.f32.mrb[0].mxu0
  %v1435 = vadd.f32 0.0, %v1434
  %v1436 = vpop.f32.mrb[0].mxu0
  %v1437 = vadd.f32 0.0, %v1436
  %1438 = vmatprep.mubr.bf16.mxu0 %v782
  %1439 = vmatmul.mubr.bf16.gmra.mrb[0].mxu0 %v781
  %v1440 = vpop.f32.mrb[0].mxu0
  %v1441 = vadd.f32 0.0, %v1440
  %v1442 = vpop.f32.mrb[0].mxu0
  %v1443 = vadd.f32 0.0, %v1442
  %v1444 = vpop.f32.mrb[0].mxu0
  %v1445 = vadd.f32 0.0, %v1444
  %v1446 = vpop.f32.mrb[0].mxu0
  %v1447 = vadd.f32 0.0, %v1446
  %1448 = vmatprep.mubr.bf16.mxu0 %v784
  %1449 = vmatmul.mubr.bf16.gmra.mrb[0].mxu0 %v783
  %v1450 = vpop.f32.mrb[0].mxu0
  %v1451 = vadd.f32 0.0, %v1450
  %v1452 = vpop.f32.mrb[0].mxu0
  %v1453 = vadd.f32 0.0, %v1452
  %v1454 = vpop.f32.mrb[0].mxu0
  %v1455 = vadd.f32 0.0, %v1454
  %v1456 = vpop.f32.mrb[0].mxu0
  %v1457 = vadd.f32 0.0, %v1456
  %1458 = vmatprep.mubr.bf16.mxu0 %v786
  %1459 = vmatmul.mubr.bf16.gmra.mrb[0].mxu0 %v785
  %v1460 = vpop.f32.mrb[0].mxu0
  %v1461 = vadd.f32 0.0, %v1460
  %v1462 = vpop.f32.mrb[0].mxu0
  %v1463 = vadd.f32 0.0, %v1462
  %v1464 = vpop.f32.mrb[0].mxu0
  %v1465 = vadd.f32 0.0, %v1464
  %v1466 = vpop.f32.mrb[0].mxu0
  %v1467 = vadd.f32 0.0, %v1466
  %1468 = vmatprep.mubr.bf16.mxu0 %v788
  %1469 = vmatmul.mubr.bf16.gmra.mrb[0].mxu0 %v787
  %v1470 = vpop.f32.mrb[0].mxu0
  %v1471 = vadd.f32 0.0, %v1470
  %v1472 = vpop.f32.mrb[0].mxu0
  %v1473 = vadd.f32 0.0, %v1472
  %v1474 = vpop.f32.mrb[0].mxu0
  %v1475 = vadd.f32 0.0, %v1474
  %v1476 = vpop.f32.mrb[0].mxu0
  %v1477 = vadd.f32 0.0, %v1476
  %1478 = vmatprep.mubr.bf16.mxu0 %v790
  %1479 = vmatmul.mubr.bf16.gmra.mrb[0].mxu0 %v789
  %v1480 = vpop.f32.mrb[0].mxu0
  %v1481 = vadd.f32 0.0, %v1480
  %v1482 = vpop.f32.mrb[0].mxu0
  %v1483 = vadd.f32 0.0, %v1482
  %v1484 = vpop.f32.mrb[0].mxu0
  %v1485 = vadd.f32 0.0, %v1484
  %v1486 = vpop.f32.mrb[0].mxu0
  %v1487 = vadd.f32 0.0, %v1486
  %1488 = vmatprep.mubr.bf16.mxu0 %v792
  %1489 = vmatmul.mubr.bf16.gmra.mrb[0].mxu0 %v791
  %v1490 = vpop.f32.mrb[0].mxu0
  %v1491 = vadd.f32 0.0, %v1490
  %v1492 = vpop.f32.mrb[0].mxu0
  %v1493 = vadd.f32 0.0, %v1492
  %v1494 = vpop.f32.mrb[0].mxu0
  %v1495 = vadd.f32 0.0, %v1494
  %v1496 = vpop.f32.mrb[0].mxu0
  %v1497 = vadd.f32 0.0, %v1496
  %1498 = vmatprep.mubr.bf16.mxu0 %v794
  %1499 = vmatmul.mubr.bf16.gmra.mrb[0].mxu0 %v793
  %v1500 = vpop.f32.mrb[0].mxu0
  %v1501 = vadd.f32 0.0, %v1500
  %v1502 = vpop.f32.mrb[0].mxu0
  %v1503 = vadd.f32 0.0, %v1502
  %v1504 = vpop.f32.mrb[0].mxu0
  %v1505 = vadd.f32 0.0, %v1504
  %v1506 = vpop.f32.mrb[0].mxu0
  %v1507 = vadd.f32 0.0, %v1506
  %1508 = vmatprep.mubr.bf16.mxu0 %v796
  %1509 = vmatmul.mubr.bf16.gmra.mrb[0].mxu0 %v795
  %v1510 = vpop.f32.mrb[0].mxu0
  %v1511 = vadd.f32 0.0, %v1510
  %v1512 = vpop.f32.mrb[0].mxu0
  %v1513 = vadd.f32 0.0, %v1512
  %v1514 = vpop.f32.mrb[0].mxu0
  %v1515 = vadd.f32 0.0, %v1514
  %v1516 = vpop.f32.mrb[0].mxu0
  %v1517 = vadd.f32 0.0, %v1516
  %1518 = vmatprep.mubr.bf16.mxu0 %v798
  %1519 = vmatmul.mubr.bf16.gmra.mrb[0].mxu0 %v797
  %v1520 = vpop.f32.mrb[0].mxu0
  %v1521 = vadd.f32 0.0, %v1520
  %v1522 = vpop.f32.mrb[0].mxu0
  %v1523 = vadd.f32 0.0, %v1522
  %v1524 = vpop.f32.mrb[0].mxu0
  %v1525 = vadd.f32 0.0, %v1524
  %v1526 = vpop.f32.mrb[0].mxu0
  %v1527 = vadd.f32 0.0, %v1526
  %1528 = vmatprep.mubr.bf16.mxu0 %v800
  %1529 = vmatmul.mubr.bf16.gmra.mrb[0].mxu0 %v799
  %v1530 = vpop.f32.mrb[0].mxu0
  %v1531 = vadd.f32 0.0, %v1530
  %v1532 = vpop.f32.mrb[0].mxu0
  %v1533 = vadd.f32 0.0, %v1532
  %v1534 = vpop.f32.mrb[0].mxu0
  %v1535 = vadd.f32 0.0, %v1534
  %v1536 = vpop.f32.mrb[0].mxu0
  %v1537 = vadd.f32 0.0, %v1536
  %1538 = vmatprep.mubr.bf16.mxu0 %v802
  %1539 = vmatmul.mubr.bf16.gmra.mrb[0].mxu0 %v801
  %v1540 = vpop.f32.mrb[0].mxu0
  %v1541 = vadd.f32 0.0, %v1540
  %v1542 = vpop.f32.mrb[0].mxu0
  %v1543 = vadd.f32 0.0, %v1542
  %v1544 = vpop.f32.mrb[0].mxu0
  %v1545 = vadd.f32 0.0, %v1544
  %v1546 = vpop.f32.mrb[0].mxu0
  %v1547 = vadd.f32 0.0, %v1546
  %1548 = vmatprep.mubr.bf16.mxu0 %v804
  %1549 = vmatmul.mubr.bf16.gmra.mrb[0].mxu0 %v803
  %v1550 = vpop.f32.mrb[0].mxu0
  %v1551 = vadd.f32 0.0, %v1550
  %v1552 = vpop.f32.mrb[0].mxu0
  %v1553 = vadd.f32 0.0, %v1552
  %v1554 = vpop.f32.mrb[0].mxu0
  %v1555 = vadd.f32 0.0, %v1554
  %v1556 = vpop.f32.mrb[0].mxu0
  %v1557 = vadd.f32 0.0, %v1556
  %1558 = vmatprep.mubr.bf16.mxu0 %v806
  %1559 = vmatmul.mubr.bf16.gmra.mrb[0].mxu0 %v805
  %v1560 = vpop.f32.mrb[0].mxu0
  %v1561 = vadd.f32 0.0, %v1560
  %v1562 = vpop.f32.mrb[0].mxu0
  %v1563 = vadd.f32 0.0, %v1562
  %v1564 = vpop.f32.mrb[0].mxu0
  %v1565 = vadd.f32 0.0, %v1564
  %v1566 = vpop.f32.mrb[0].mxu0
  %v1567 = vadd.f32 0.0, %v1566
  %1568 = vmatprep.mubr.bf16.mxu0 %v808
  %1569 = vmatmul.mubr.bf16.gmra.mrb[0].mxu0 %v807
  %v1570 = vpop.f32.mrb[0].mxu0
  %v1571 = vadd.f32 0.0, %v1570
  %v1572 = vpop.f32.mrb[0].mxu0
  %v1573 = vadd.f32 0.0, %v1572
  %v1574 = vpop.f32.mrb[0].mxu0
  %v1575 = vadd.f32 0.0, %v1574
  %v1576 = vpop.f32.mrb[0].mxu0
  %v1577 = vadd.f32 0.0, %v1576
  %1578 = vdwg.mxu0
  %v1579 = vld [vmem:[%s6] sm:$0xf]
  %v1580 = vld [vmem:[%s6 + $0x4] sm:$0xf]
  %v1583 = vlaneseq
  %v1584 = vshrl.u32 %v1583, 7
  %v1585 = vsub.s32 0, %v1584
  %v1586 = vrot.slane %v1579, %v1585
  %v1587 = vlaneseq
  %v1588 = vshrl.u32 %v1587, 7
  %v1589 = vsub.s32 1, %v1588
  %v1590 = vrot.slane %v1579, %v1589
  %v1591 = vlaneseq
  %v1592 = vshrl.u32 %v1591, 7
  %v1593 = vsub.s32 2, %v1592
  %v1594 = vrot.slane %v1579, %v1593
  %v1595 = vlaneseq
  %v1596 = vshrl.u32 %v1595, 7
  %v1597 = vsub.s32 3, %v1596
  %v1598 = vrot.slane %v1579, %v1597
  %v1599 = vlaneseq
  %v1600 = vshrl.u32 %v1599, 7
  %v1601 = vsub.s32 0, %v1600
  %v1602 = vrot.slane %v1580, %v1601
  %v1603 = vlaneseq
  %v1604 = vshrl.u32 %v1603, 7
  %v1605 = vsub.s32 1, %v1604
  %v1606 = vrot.slane %v1580, %v1605
  %v1607 = vlaneseq
  %v1608 = vshrl.u32 %v1607, 7
  %v1609 = vsub.s32 2, %v1608
  %v1610 = vrot.slane %v1580, %v1609
  %v1611 = vlaneseq
  %v1612 = vshrl.u32 %v1611, 7
  %v1613 = vsub.s32 3, %v1612
  %v1614 = vrot.slane %v1580, %v1613
  %v1623 = vadd.f32 %v1228, %v1586
  %v1624 = vadd.f32 %v1230, %v1590
  %v1625 = vadd.f32 %v1421, %v1594
  %v1626 = vadd.f32 %v1423, %v1598
  %v1627 = vadd.f32 %v1232, %v1586
  %v1628 = vadd.f32 %v1234, %v1590
  %v1629 = vadd.f32 %v1425, %v1594
  %v1630 = vadd.f32 %v1427, %v1598
  %v1631 = vadd.f32 %v1238, %v1586
  %v1632 = vadd.f32 %v1240, %v1590
  %v1633 = vadd.f32 %v1431, %v1594
  %v1634 = vadd.f32 %v1433, %v1598
  %v1635 = vadd.f32 %v1242, %v1586
  %v1636 = vadd.f32 %v1244, %v1590
  %v1637 = vadd.f32 %v1435, %v1594
  %v1638 = vadd.f32 %v1437, %v1598
  %v1639 = vadd.f32 %v1248, %v1586
  %v1640 = vadd.f32 %v1250, %v1590
  %v1641 = vadd.f32 %v1441, %v1594
  %v1642 = vadd.f32 %v1443, %v1598
  %v1643 = vadd.f32 %v1252, %v1586
  %v1644 = vadd.f32 %v1254, %v1590
  %v1645 = vadd.f32 %v1445, %v1594
  %v1646 = vadd.f32 %v1447, %v1598
  %v1647 = vadd.f32 %v1258, %v1586
  %v1648 = vadd.f32 %v1260, %v1590
  %v1649 = vadd.f32 %v1451, %v1594
  %v1650 = vadd.f32 %v1453, %v1598
  %v1651 = vadd.f32 %v1262, %v1586
  %v1652 = vadd.f32 %v1264, %v1590
  %v1653 = vadd.f32 %v1455, %v1594
  %v1654 = vadd.f32 %v1457, %v1598
  %v1655 = vadd.f32 %v1268, %v1586
  %v1656 = vadd.f32 %v1270, %v1590
  %v1657 = vadd.f32 %v1461, %v1594
  %v1658 = vadd.f32 %v1463, %v1598
  %v1659 = vadd.f32 %v1272, %v1586
  %v1660 = vadd.f32 %v1274, %v1590
  %v1661 = vadd.f32 %v1465, %v1594
  %v1662 = vadd.f32 %v1467, %v1598
  %v1663 = vadd.f32 %v1278, %v1586
  %v1664 = vadd.f32 %v1280, %v1590
  %v1665 = vadd.f32 %v1471, %v1594
  %v1666 = vadd.f32 %v1473, %v1598
  %v1667 = vadd.f32 %v1282, %v1586
  %v1668 = vadd.f32 %v1284, %v1590
  %v1669 = vadd.f32 %v1475, %v1594
  %v1670 = vadd.f32 %v1477, %v1598
  %v1671 = vadd.f32 %v1288, %v1586
  %v1672 = vadd.f32 %v1290, %v1590
  %v1673 = vadd.f32 %v1481, %v1594
  %v1674 = vadd.f32 %v1483, %v1598
  %v1675 = vadd.f32 %v1292, %v1586
  %v1676 = vadd.f32 %v1294, %v1590
  %v1677 = vadd.f32 %v1485, %v1594
  %v1678 = vadd.f32 %v1487, %v1598
  %v1679 = vadd.f32 %v1298, %v1586
  %v1680 = vadd.f32 %v1300, %v1590
  %v1681 = vadd.f32 %v1491, %v1594
  %v1682 = vadd.f32 %v1493, %v1598
  %v1683 = vadd.f32 %v1302, %v1586
  %v1684 = vadd.f32 %v1304, %v1590
  %v1685 = vadd.f32 %v1495, %v1594
  %v1686 = vadd.f32 %v1497, %v1598
  %v1687 = vadd.f32 %v1308, %v1602
  %v1688 = vadd.f32 %v1310, %v1606
  %v1689 = vadd.f32 %v1501, %v1610
  %v1690 = vadd.f32 %v1503, %v1614
  %v1691 = vadd.f32 %v1312, %v1602
  %v1692 = vadd.f32 %v1314, %v1606
  %v1693 = vadd.f32 %v1505, %v1610
  %v1694 = vadd.f32 %v1507, %v1614
  %v1695 = vadd.f32 %v1318, %v1602
  %v1696 = vadd.f32 %v1320, %v1606
  %v1697 = vadd.f32 %v1511, %v1610
  %v1698 = vadd.f32 %v1513, %v1614
  %v1699 = vadd.f32 %v1322, %v1602
  %v1700 = vadd.f32 %v1324, %v1606
  %v1701 = vadd.f32 %v1515, %v1610
  %v1702 = vadd.f32 %v1517, %v1614
  %v1703 = vadd.f32 %v1328, %v1602
  %v1704 = vadd.f32 %v1330, %v1606
  %v1705 = vadd.f32 %v1521, %v1610
  %v1706 = vadd.f32 %v1523, %v1614
  %v1707 = vadd.f32 %v1332, %v1602
  %v1708 = vadd.f32 %v1334, %v1606
  %v1709 = vadd.f32 %v1525, %v1610
  %v1710 = vadd.f32 %v1527, %v1614
  %v1711 = vadd.f32 %v1338, %v1602
  %v1712 = vadd.f32 %v1340, %v1606
  %v1713 = vadd.f32 %v1531, %v1610
  %v1714 = vadd.f32 %v1533, %v1614
  %v1715 = vadd.f32 %v1342, %v1602
  %v1716 = vadd.f32 %v1344, %v1606
  %v1717 = vadd.f32 %v1535, %v1610
  %v1718 = vadd.f32 %v1537, %v1614
  %v1719 = vadd.f32 %v1348, %v1602
  %v1720 = vadd.f32 %v1350, %v1606
  %v1721 = vadd.f32 %v1541, %v1610
  %v1722 = vadd.f32 %v1543, %v1614
  %v1723 = vadd.f32 %v1352, %v1602
  %v1724 = vadd.f32 %v1354, %v1606
  %v1725 = vadd.f32 %v1545, %v1610
  %v1726 = vadd.f32 %v1547, %v1614
  %v1727 = vadd.f32 %v1358, %v1602
  %v1728 = vadd.f32 %v1360, %v1606
  %v1729 = vadd.f32 %v1551, %v1610
  %v1730 = vadd.f32 %v1553, %v1614
  %v1731 = vadd.f32 %v1362, %v1602
  %v1732 = vadd.f32 %v1364, %v1606
  %v1733 = vadd.f32 %v1555, %v1610
  %v1734 = vadd.f32 %v1557, %v1614
  %v1735 = vadd.f32 %v1368, %v1602
  %v1736 = vadd.f32 %v1370, %v1606
  %v1737 = vadd.f32 %v1561, %v1610
  %v1738 = vadd.f32 %v1563, %v1614
  %v1739 = vadd.f32 %v1372, %v1602
  %v1740 = vadd.f32 %v1374, %v1606
  %v1741 = vadd.f32 %v1565, %v1610
  %v1742 = vadd.f32 %v1567, %v1614
  %v1743 = vadd.f32 %v1378, %v1602
  %v1744 = vadd.f32 %v1380, %v1606
  %v1745 = vadd.f32 %v1571, %v1610
  %v1746 = vadd.f32 %v1573, %v1614
  %v1747 = vadd.f32 %v1382, %v1602
  %v1748 = vadd.f32 %v1384, %v1606
  %v1749 = vadd.f32 %v1575, %v1610
  %v1750 = vadd.f32 %v1577, %v1614
  %v1751 = vmax.f32 %v1623, 0.0
  %v1752 = vmax.f32 %v1624, 0.0
  %v1753 = vmax.f32 %v1625, 0.0
  %v1754 = vmax.f32 %v1626, 0.0
  %v1755 = vmax.f32 %v1627, 0.0
  %v1756 = vmax.f32 %v1628, 0.0
  %v1757 = vmax.f32 %v1629, 0.0
  %v1758 = vmax.f32 %v1630, 0.0
  %v1759 = vmax.f32 %v1631, 0.0
  %v1760 = vmax.f32 %v1632, 0.0
  %v1761 = vmax.f32 %v1633, 0.0
  %v1762 = vmax.f32 %v1634, 0.0
  %v1763 = vmax.f32 %v1635, 0.0
  %v1764 = vmax.f32 %v1636, 0.0
  %v1765 = vmax.f32 %v1637, 0.0
  %v1766 = vmax.f32 %v1638, 0.0
  %v1767 = vmax.f32 %v1639, 0.0
  %v1768 = vmax.f32 %v1640, 0.0
  %v1769 = vmax.f32 %v1641, 0.0
  %v1770 = vmax.f32 %v1642, 0.0
  %v1771 = vmax.f32 %v1643, 0.0
  %v1772 = vmax.f32 %v1644, 0.0
  %v1773 = vmax.f32 %v1645, 0.0
  %v1774 = vmax.f32 %v1646, 0.0
  %v1775 = vmax.f32 %v1647, 0.0
  %v1776 = vmax.f32 %v1648, 0.0
  %v1777 = vmax.f32 %v1649, 0.0
  %v1778 = vmax.f32 %v1650, 0.0
  %v1779 = vmax.f32 %v1651, 0.0
  %v1780 = vmax.f32 %v1652, 0.0
  %v1781 = vmax.f32 %v1653, 0.0
  %v1782 = vmax.f32 %v1654, 0.0
  %v1783 = vmax.f32 %v1655, 0.0
  %v1784 = vmax.f32 %v1656, 0.0
  %v1785 = vmax.f32 %v1657, 0.0
  %v1786 = vmax.f32 %v1658, 0.0
  %v1787 = vmax.f32 %v1659, 0.0
  %v1788 = vmax.f32 %v1660, 0.0
  %v1789 = vmax.f32 %v1661, 0.0
  %v1790 = vmax.f32 %v1662, 0.0
  %v1791 = vmax.f32 %v1663, 0.0
  %v1792 = vmax.f32 %v1664, 0.0
  %v1793 = vmax.f32 %v1665, 0.0
  %v1794 = vmax.f32 %v1666, 0.0
  %v1795 = vmax.f32 %v1667, 0.0
  %v1796 = vmax.f32 %v1668, 0.0
  %v1797 = vmax.f32 %v1669, 0.0
  %v1798 = vmax.f32 %v1670, 0.0
  %v1799 = vmax.f32 %v1671, 0.0
  %v1800 = vmax.f32 %v1672, 0.0
  %v1801 = vmax.f32 %v1673, 0.0
  %v1802 = vmax.f32 %v1674, 0.0
  %v1803 = vmax.f32 %v1675, 0.0
  %v1804 = vmax.f32 %v1676, 0.0
  %v1805 = vmax.f32 %v1677, 0.0
  %v1806 = vmax.f32 %v1678, 0.0
  %v1807 = vmax.f32 %v1679, 0.0
  %v1808 = vmax.f32 %v1680, 0.0
  %v1809 = vmax.f32 %v1681, 0.0
  %v1810 = vmax.f32 %v1682, 0.0
  %v1811 = vmax.f32 %v1683, 0.0
  %v1812 = vmax.f32 %v1684, 0.0
  %v1813 = vmax.f32 %v1685, 0.0
  %v1814 = vmax.f32 %v1686, 0.0
  %v1815 = vmax.f32 %v1687, 0.0
  %v1816 = vmax.f32 %v1688, 0.0
  %v1817 = vmax.f32 %v1689, 0.0
  %v1818 = vmax.f32 %v1690, 0.0
  %v1819 = vmax.f32 %v1691, 0.0
  %v1820 = vmax.f32 %v1692, 0.0
  %v1821 = vmax.f32 %v1693, 0.0
  %v1822 = vmax.f32 %v1694, 0.0
  %v1823 = vmax.f32 %v1695, 0.0
  %v1824 = vmax.f32 %v1696, 0.0
  %v1825 = vmax.f32 %v1697, 0.0
  %v1826 = vmax.f32 %v1698, 0.0
  %v1827 = vmax.f32 %v1699, 0.0
  %v1828 = vmax.f32 %v1700, 0.0
  %v1829 = vmax.f32 %v1701, 0.0
  %v1830 = vmax.f32 %v1702, 0.0
  %v1831 = vmax.f32 %v1703, 0.0
  %v1832 = vmax.f32 %v1704, 0.0
  %v1833 = vmax.f32 %v1705, 0.0
  %v1834 = vmax.f32 %v1706, 0.0
  %v1835 = vmax.f32 %v1707, 0.0
  %v1836 = vmax.f32 %v1708, 0.0
  %v1837 = vmax.f32 %v1709, 0.0
  %v1838 = vmax.f32 %v1710, 0.0
  %v1839 = vmax.f32 %v1711, 0.0
  %v1840 = vmax.f32 %v1712, 0.0
  %v1841 = vmax.f32 %v1713, 0.0
  %v1842 = vmax.f32 %v1714, 0.0
  %v1843 = vmax.f32 %v1715, 0.0
  %v1844 = vmax.f32 %v1716, 0.0
  %v1845 = vmax.f32 %v1717, 0.0
  %v1846 = vmax.f32 %v1718, 0.0
  %v1847 = vmax.f32 %v1719, 0.0
  %v1848 = vmax.f32 %v1720, 0.0
  %v1849 = vmax.f32 %v1721, 0.0
  %v1850 = vmax.f32 %v1722, 0.0
  %v1851 = vmax.f32 %v1723, 0.0
  %v1852 = vmax.f32 %v1724, 0.0
  %v1853 = vmax.f32 %v1725, 0.0
  %v1854 = vmax.f32 %v1726, 0.0
  %v1855 = vmax.f32 %v1727, 0.0
  %v1856 = vmax.f32 %v1728, 0.0
  %v1857 = vmax.f32 %v1729, 0.0
  %v1858 = vmax.f32 %v1730, 0.0
  %v1859 = vmax.f32 %v1731, 0.0
  %v1860 = vmax.f32 %v1732, 0.0
  %v1861 = vmax.f32 %v1733, 0.0
  %v1862 = vmax.f32 %v1734, 0.0
  %v1863 = vmax.f32 %v1735, 0.0
  %v1864 = vmax.f32 %v1736, 0.0
  %v1865 = vmax.f32 %v1737, 0.0
  %v1866 = vmax.f32 %v1738, 0.0
  %v1867 = vmax.f32 %v1739, 0.0
  %v1868 = vmax.f32 %v1740, 0.0
  %v1869 = vmax.f32 %v1741, 0.0
  %v1870 = vmax.f32 %v1742, 0.0
  %v1871 = vmax.f32 %v1743, 0.0
  %v1872 = vmax.f32 %v1744, 0.0
  %v1873 = vmax.f32 %v1745, 0.0
  %v1874 = vmax.f32 %v1746, 0.0
  %v1875 = vmax.f32 %v1747, 0.0
  %v1876 = vmax.f32 %v1748, 0.0
  %v1877 = vmax.f32 %v1749, 0.0
  %v1878 = vmax.f32 %v1750, 0.0
  %v1879 = vpack.c.bf16 %v1755, %v1751
  %v1880 = vpack.c.bf16 %v1756, %v1752
  %v1881 = vpack.c.bf16 %v1757, %v1753
  %v1882 = vpack.c.bf16 %v1758, %v1754
  %v1883 = vpack.c.bf16 %v1763, %v1759
  %v1884 = vpack.c.bf16 %v1764, %v1760
  %v1885 = vpack.c.bf16 %v1765, %v1761
  %v1886 = vpack.c.bf16 %v1766, %v1762
  %v1887 = vpack.c.bf16 %v1771, %v1767
  %v1888 = vpack.c.bf16 %v1772, %v1768
  %v1889 = vpack.c.bf16 %v1773, %v1769
  %v1890 = vpack.c.bf16 %v1774, %v1770
  %v1891 = vpack.c.bf16 %v1779, %v1775
  %v1892 = vpack.c.bf16 %v1780, %v1776
  %v1893 = vpack.c.bf16 %v1781, %v1777
  %v1894 = vpack.c.bf16 %v1782, %v1778
  %v1895 = vpack.c.bf16 %v1787, %v1783
  %v1896 = vpack.c.bf16 %v1788, %v1784
  %v1897 = vpack.c.bf16 %v1789, %v1785
  %v1898 = vpack.c.bf16 %v1790, %v1786
  %v1899 = vpack.c.bf16 %v1795, %v1791
  %v1900 = vpack.c.bf16 %v1796, %v1792
  %v1901 = vpack.c.bf16 %v1797, %v1793
  %v1902 = vpack.c.bf16 %v1798, %v1794
  %v1903 = vpack.c.bf16 %v1803, %v1799
  %v1904 = vpack.c.bf16 %v1804, %v1800
  %v1905 = vpack.c.bf16 %v1805, %v1801
  %v1906 = vpack.c.bf16 %v1806, %v1802
  %v1907 = vpack.c.bf16 %v1811, %v1807
  %v1908 = vpack.c.bf16 %v1812, %v1808
  %v1909 = vpack.c.bf16 %v1813, %v1809
  %v1910 = vpack.c.bf16 %v1814, %v1810
  %v1911 = vpack.c.bf16 %v1819, %v1815
  %v1912 = vpack.c.bf16 %v1820, %v1816
  %v1913 = vpack.c.bf16 %v1821, %v1817
  %v1914 = vpack.c.bf16 %v1822, %v1818
  %v1915 = vpack.c.bf16 %v1827, %v1823
  %v1916 = vpack.c.bf16 %v1828, %v1824
  %v1917 = vpack.c.bf16 %v1829, %v1825
  %v1918 = vpack.c.bf16 %v1830, %v1826
  %v1919 = vpack.c.bf16 %v1835, %v1831
  %v1920 = vpack.c.bf16 %v1836, %v1832
  %v1921 = vpack.c.bf16 %v1837, %v1833
  %v1922 = vpack.c.bf16 %v1838, %v1834
  %v1923 = vpack.c.bf16 %v1843, %v1839
  %v1924 = vpack.c.bf16 %v1844, %v1840
  %v1925 = vpack.c.bf16 %v1845, %v1841
  %v1926 = vpack.c.bf16 %v1846, %v1842
  %v1927 = vpack.c.bf16 %v1851, %v1847
  %v1928 = vpack.c.bf16 %v1852, %v1848
  %v1929 = vpack.c.bf16 %v1853, %v1849
  %v1930 = vpack.c.bf16 %v1854, %v1850
  %v1931 = vpack.c.bf16 %v1859, %v1855
  %v1932 = vpack.c.bf16 %v1860, %v1856
  %v1933 = vpack.c.bf16 %v1861, %v1857
  %v1934 = vpack.c.bf16 %v1862, %v1858
  %v1935 = vpack.c.bf16 %v1867, %v1863
  %v1936 = vpack.c.bf16 %v1868, %v1864
  %v1937 = vpack.c.bf16 %v1869, %v1865
  %v1938 = vpack.c.bf16 %v1870, %v1866
  %v1939 = vpack.c.bf16 %v1875, %v1871
  %v1940 = vpack.c.bf16 %v1876, %v1872
  %v1941 = vpack.c.bf16 %v1877, %v1873
  %v1942 = vpack.c.bf16 %v1878, %v1874
  %v1943 = vld [vmem:[%s7] sm:$0xff]
  %v1944 = vld [vmem:[%s7 + $0x8] sm:$0xff]
  %v1945 = vld [vmem:[%s7 + $0x10] sm:$0xff]
  %v1946 = vld [vmem:[%s7 + $0x18] sm:$0xff]
  %v1947 = vld [vmem:[%s7 + $0x20] sm:$0xff]
  %v1948 = vld [vmem:[%s7 + $0x28] sm:$0xff]
  %v1949 = vld [vmem:[%s7 + $0x30] sm:$0xff]
  %v1950 = vld [vmem:[%s7 + $0x38] sm:$0xff]
  %v1951 = vld [vmem:[%s7 + $0x40] sm:$0xff]
  %v1952 = vld [vmem:[%s7 + $0x48] sm:$0xff]
  %v1953 = vld [vmem:[%s7 + $0x50] sm:$0xff]
  %v1954 = vld [vmem:[%s7 + $0x58] sm:$0xff]
  %v1955 = vld [vmem:[%s7 + $0x60] sm:$0xff]
  %v1956 = vld [vmem:[%s7 + $0x68] sm:$0xff]
  %v1957 = vld [vmem:[%s7 + $0x70] sm:$0xff]
  %v1958 = vld [vmem:[%s7 + $0x78] sm:$0xff]
  %v1959 = vld [vmem:[%s7 + $0x80] sm:$0xff]
  %v1960 = vld [vmem:[%s7 + $0x88] sm:$0xff]
  %v1961 = vld [vmem:[%s7 + $0x90] sm:$0xff]
  %v1962 = vld [vmem:[%s7 + $0x98] sm:$0xff]
  %v1963 = vld [vmem:[%s7 + $0xa0] sm:$0xff]
  %v1964 = vld [vmem:[%s7 + $0xa8] sm:$0xff]
  %v1965 = vld [vmem:[%s7 + $0xb0] sm:$0xff]
  %v1966 = vld [vmem:[%s7 + $0xb8] sm:$0xff]
  %v1967 = vld [vmem:[%s7 + $0xc0] sm:$0xff]
  %v1968 = vld [vmem:[%s7 + $0xc8] sm:$0xff]
  %v1969 = vld [vmem:[%s7 + $0xd0] sm:$0xff]
  %v1970 = vld [vmem:[%s7 + $0xd8] sm:$0xff]
  %v1971 = vld [vmem:[%s7 + $0xe0] sm:$0xff]
  %v1972 = vld [vmem:[%s7 + $0xe8] sm:$0xff]
  %v1973 = vld [vmem:[%s7 + $0xf0] sm:$0xff]
  %v1974 = vld [vmem:[%s7 + $0xf8] sm:$0xff]
  %v1975 = vld [vmem:[%s7 + $0x100] sm:$0xff]
  %v1976 = vld [vmem:[%s7 + $0x108] sm:$0xff]
  %v1977 = vld [vmem:[%s7 + $0x110] sm:$0xff]
  %v1978 = vld [vmem:[%s7 + $0x118] sm:$0xff]
  %v1979 = vld [vmem:[%s7 + $0x120] sm:$0xff]
  %v1980 = vld [vmem:[%s7 + $0x128] sm:$0xff]
  %v1981 = vld [vmem:[%s7 + $0x130] sm:$0xff]
  %v1982 = vld [vmem:[%s7 + $0x138] sm:$0xff]
  %v1983 = vld [vmem:[%s7 + $0x140] sm:$0xff]
  %v1984 = vld [vmem:[%s7 + $0x148] sm:$0xff]
  %v1985 = vld [vmem:[%s7 + $0x150] sm:$0xff]
  %v1986 = vld [vmem:[%s7 + $0x158] sm:$0xff]
  %v1987 = vld [vmem:[%s7 + $0x160] sm:$0xff]
  %v1988 = vld [vmem:[%s7 + $0x168] sm:$0xff]
  %v1989 = vld [vmem:[%s7 + $0x170] sm:$0xff]
  %v1990 = vld [vmem:[%s7 + $0x178] sm:$0xff]
  %v1991 = vld [vmem:[%s7 + $0x180] sm:$0xff]
  %v1992 = vld [vmem:[%s7 + $0x188] sm:$0xff]
  %v1993 = vld [vmem:[%s7 + $0x190] sm:$0xff]
  %v1994 = vld [vmem:[%s7 + $0x198] sm:$0xff]
  %v1995 = vld [vmem:[%s7 + $0x1a0] sm:$0xff]
  %v1996 = vld [vmem:[%s7 + $0x1a8] sm:$0xff]
  %v1997 = vld [vmem:[%s7 + $0x1b0] sm:$0xff]
  %v1998 = vld [vmem:[%s7 + $0x1b8] sm:$0xff]
  %v1999 = vld [vmem:[%s7 + $0x1c0] sm:$0xff]
  %v2000 = vld [vmem:[%s7 + $0x1c8] sm:$0xff]
  %v2001 = vld [vmem:[%s7 + $0x1d0] sm:$0xff]
  %v2002 = vld [vmem:[%s7 + $0x1d8] sm:$0xff]
  %v2003 = vld [vmem:[%s7 + $0x1e0] sm:$0xff]
  %v2004 = vld [vmem:[%s7 + $0x1e8] sm:$0xff]
  %v2005 = vld [vmem:[%s7 + $0x1f0] sm:$0xff]
  %v2006 = vld [vmem:[%s7 + $0x1f8] sm:$0xff]
  %v2007 = vld [vmem:[%s7 + $0x200] sm:$0xff]
  %v2008 = vld [vmem:[%s7 + $0x208] sm:$0xff]
  %v2009 = vld [vmem:[%s7 + $0x210] sm:$0xff]
  %v2010 = vld [vmem:[%s7 + $0x218] sm:$0xff]
  %v2011 = vld [vmem:[%s7 + $0x220] sm:$0xff]
  %v2012 = vld [vmem:[%s7 + $0x228] sm:$0xff]
  %v2013 = vld [vmem:[%s7 + $0x230] sm:$0xff]
  %v2014 = vld [vmem:[%s7 + $0x238] sm:$0xff]
  %v2015 = vld [vmem:[%s7 + $0x240] sm:$0xff]
  %v2016 = vld [vmem:[%s7 + $0x248] sm:$0xff]
  %v2017 = vld [vmem:[%s7 + $0x250] sm:$0xff]
  %v2018 = vld [vmem:[%s7 + $0x258] sm:$0xff]
  %v2019 = vld [vmem:[%s7 + $0x260] sm:$0xff]
  %v2020 = vld [vmem:[%s7 + $0x268] sm:$0xff]
  %v2021 = vld [vmem:[%s7 + $0x270] sm:$0xff]
  %v2022 = vld [vmem:[%s7 + $0x278] sm:$0xff]
  %v2023 = vld [vmem:[%s7 + $0x280] sm:$0xff]
  %v2024 = vld [vmem:[%s7 + $0x288] sm:$0xff]
  %v2025 = vld [vmem:[%s7 + $0x290] sm:$0xff]
  %v2026 = vld [vmem:[%s7 + $0x298] sm:$0xff]
  %v2027 = vld [vmem:[%s7 + $0x2a0] sm:$0xff]
  %v2028 = vld [vmem:[%s7 + $0x2a8] sm:$0xff]
  %v2029 = vld [vmem:[%s7 + $0x2b0] sm:$0xff]
  %v2030 = vld [vmem:[%s7 + $0x2b8] sm:$0xff]
  %v2031 = vld [vmem:[%s7 + $0x2c0] sm:$0xff]
  %v2032 = vld [vmem:[%s7 + $0x2c8] sm:$0xff]
  %v2033 = vld [vmem:[%s7 + $0x2d0] sm:$0xff]
  %v2034 = vld [vmem:[%s7 + $0x2d8] sm:$0xff]
  %v2035 = vld [vmem:[%s7 + $0x2e0] sm:$0xff]
  %v2036 = vld [vmem:[%s7 + $0x2e8] sm:$0xff]
  %v2037 = vld [vmem:[%s7 + $0x2f0] sm:$0xff]
  %v2038 = vld [vmem:[%s7 + $0x2f8] sm:$0xff]
  %v2039 = vld [vmem:[%s7 + $0x300] sm:$0xff]
  %v2040 = vld [vmem:[%s7 + $0x308] sm:$0xff]
  %v2041 = vld [vmem:[%s7 + $0x310] sm:$0xff]
  %v2042 = vld [vmem:[%s7 + $0x318] sm:$0xff]
  %v2043 = vld [vmem:[%s7 + $0x320] sm:$0xff]
  %v2044 = vld [vmem:[%s7 + $0x328] sm:$0xff]
  %v2045 = vld [vmem:[%s7 + $0x330] sm:$0xff]
  %v2046 = vld [vmem:[%s7 + $0x338] sm:$0xff]
  %v2047 = vld [vmem:[%s7 + $0x340] sm:$0xff]
  %v2048 = vld [vmem:[%s7 + $0x348] sm:$0xff]
  %v2049 = vld [vmem:[%s7 + $0x350] sm:$0xff]
  %v2050 = vld [vmem:[%s7 + $0x358] sm:$0xff]
  %v2051 = vld [vmem:[%s7 + $0x360] sm:$0xff]
  %v2052 = vld [vmem:[%s7 + $0x368] sm:$0xff]
  %v2053 = vld [vmem:[%s7 + $0x370] sm:$0xff]
  %v2054 = vld [vmem:[%s7 + $0x378] sm:$0xff]
  %v2055 = vld [vmem:[%s7 + $0x380] sm:$0xff]
  %v2056 = vld [vmem:[%s7 + $0x388] sm:$0xff]
  %v2057 = vld [vmem:[%s7 + $0x390] sm:$0xff]
  %v2058 = vld [vmem:[%s7 + $0x398] sm:$0xff]
  %v2059 = vld [vmem:[%s7 + $0x3a0] sm:$0xff]
  %v2060 = vld [vmem:[%s7 + $0x3a8] sm:$0xff]
  %v2061 = vld [vmem:[%s7 + $0x3b0] sm:$0xff]
  %v2062 = vld [vmem:[%s7 + $0x3b8] sm:$0xff]
  %v2063 = vld [vmem:[%s7 + $0x3c0] sm:$0xff]
  %v2064 = vld [vmem:[%s7 + $0x3c8] sm:$0xff]
  %v2065 = vld [vmem:[%s7 + $0x3d0] sm:$0xff]
  %v2066 = vld [vmem:[%s7 + $0x3d8] sm:$0xff]
  %v2067 = vld [vmem:[%s7 + $0x3e0] sm:$0xff]
  %v2068 = vld [vmem:[%s7 + $0x3e8] sm:$0xff]
  %v2069 = vld [vmem:[%s7 + $0x3f0] sm:$0xff]
  %v2070 = vld [vmem:[%s7 + $0x3f8] sm:$0xff]
  %v2071 = vld [vmem:[%s7 + $0x400] sm:$0xff]
  %v2072 = vld [vmem:[%s7 + $0x408] sm:$0xff]
  %v2073 = vld [vmem:[%s7 + $0x410] sm:$0xff]
  %v2074 = vld [vmem:[%s7 + $0x418] sm:$0xff]
  %v2075 = vld [vmem:[%s7 + $0x420] sm:$0xff]
  %v2076 = vld [vmem:[%s7 + $0x428] sm:$0xff]
  %v2077 = vld [vmem:[%s7 + $0x430] sm:$0xff]
  %v2078 = vld [vmem:[%s7 + $0x438] sm:$0xff]
  %v2079 = vld [vmem:[%s7 + $0x440] sm:$0xff]
  %v2080 = vld [vmem:[%s7 + $0x448] sm:$0xff]
  %v2081 = vld [vmem:[%s7 + $0x450] sm:$0xff]
  %v2082 = vld [vmem:[%s7 + $0x458] sm:$0xff]
  %v2083 = vld [vmem:[%s7 + $0x460] sm:$0xff]
  %v2084 = vld [vmem:[%s7 + $0x468] sm:$0xff]
  %v2085 = vld [vmem:[%s7 + $0x470] sm:$0xff]
  %v2086 = vld [vmem:[%s7 + $0x478] sm:$0xff]
  %v2087 = vld [vmem:[%s7 + $0x480] sm:$0xff]
  %v2088 = vld [vmem:[%s7 + $0x488] sm:$0xff]
  %v2089 = vld [vmem:[%s7 + $0x490] sm:$0xff]
  %v2090 = vld [vmem:[%s7 + $0x498] sm:$0xff]
  %v2091 = vld [vmem:[%s7 + $0x4a0] sm:$0xff]
  %v2092 = vld [vmem:[%s7 + $0x4a8] sm:$0xff]
  %v2093 = vld [vmem:[%s7 + $0x4b0] sm:$0xff]
  %v2094 = vld [vmem:[%s7 + $0x4b8] sm:$0xff]
  %v2095 = vld [vmem:[%s7 + $0x4c0] sm:$0xff]
  %v2096 = vld [vmem:[%s7 + $0x4c8] sm:$0xff]
  %v2097 = vld [vmem:[%s7 + $0x4d0] sm:$0xff]
  %v2098 = vld [vmem:[%s7 + $0x4d8] sm:$0xff]
  %v2099 = vld [vmem:[%s7 + $0x4e0] sm:$0xff]
  %v2100 = vld [vmem:[%s7 + $0x4e8] sm:$0xff]
  %v2101 = vld [vmem:[%s7 + $0x4f0] sm:$0xff]
  %v2102 = vld [vmem:[%s7 + $0x4f8] sm:$0xff]
  %v2103 = vld [vmem:[%s7 + $0x500] sm:$0xff]
  %v2104 = vld [vmem:[%s7 + $0x508] sm:$0xff]
  %v2105 = vld [vmem:[%s7 + $0x510] sm:$0xff]
  %v2106 = vld [vmem:[%s7 + $0x518] sm:$0xff]
  %v2107 = vld [vmem:[%s7 + $0x520] sm:$0xff]
  %v2108 = vld [vmem:[%s7 + $0x528] sm:$0xff]
  %v2109 = vld [vmem:[%s7 + $0x530] sm:$0xff]
  %v2110 = vld [vmem:[%s7 + $0x538] sm:$0xff]
  %v2111 = vld [vmem:[%s7 + $0x540] sm:$0xff]
  %v2112 = vld [vmem:[%s7 + $0x548] sm:$0xff]
  %v2113 = vld [vmem:[%s7 + $0x550] sm:$0xff]
  %v2114 = vld [vmem:[%s7 + $0x558] sm:$0xff]
  %v2115 = vld [vmem:[%s7 + $0x560] sm:$0xff]
  %v2116 = vld [vmem:[%s7 + $0x568] sm:$0xff]
  %v2117 = vld [vmem:[%s7 + $0x570] sm:$0xff]
  %v2118 = vld [vmem:[%s7 + $0x578] sm:$0xff]
  %v2119 = vld [vmem:[%s7 + $0x580] sm:$0xff]
  %v2120 = vld [vmem:[%s7 + $0x588] sm:$0xff]
  %v2121 = vld [vmem:[%s7 + $0x590] sm:$0xff]
  %v2122 = vld [vmem:[%s7 + $0x598] sm:$0xff]
  %v2123 = vld [vmem:[%s7 + $0x5a0] sm:$0xff]
  %v2124 = vld [vmem:[%s7 + $0x5a8] sm:$0xff]
  %v2125 = vld [vmem:[%s7 + $0x5b0] sm:$0xff]
  %v2126 = vld [vmem:[%s7 + $0x5b8] sm:$0xff]
  %v2127 = vld [vmem:[%s7 + $0x5c0] sm:$0xff]
  %v2128 = vld [vmem:[%s7 + $0x5c8] sm:$0xff]
  %v2129 = vld [vmem:[%s7 + $0x5d0] sm:$0xff]
  %v2130 = vld [vmem:[%s7 + $0x5d8] sm:$0xff]
  %v2131 = vld [vmem:[%s7 + $0x5e0] sm:$0xff]
  %v2132 = vld [vmem:[%s7 + $0x5e8] sm:$0xff]
  %v2133 = vld [vmem:[%s7 + $0x5f0] sm:$0xff]
  %v2134 = vld [vmem:[%s7 + $0x5f8] sm:$0xff]
  %v2135 = vld [vmem:[%s7 + $0x600] sm:$0xff]
  %v2136 = vld [vmem:[%s7 + $0x608] sm:$0xff]
  %v2137 = vld [vmem:[%s7 + $0x610] sm:$0xff]
  %v2138 = vld [vmem:[%s7 + $0x618] sm:$0xff]
  %v2139 = vld [vmem:[%s7 + $0x620] sm:$0xff]
  %v2140 = vld [vmem:[%s7 + $0x628] sm:$0xff]
  %v2141 = vld [vmem:[%s7 + $0x630] sm:$0xff]
  %v2142 = vld [vmem:[%s7 + $0x638] sm:$0xff]
  %v2143 = vld [vmem:[%s7 + $0x640] sm:$0xff]
  %v2144 = vld [vmem:[%s7 + $0x648] sm:$0xff]
  %v2145 = vld [vmem:[%s7 + $0x650] sm:$0xff]
  %v2146 = vld [vmem:[%s7 + $0x658] sm:$0xff]
  %v2147 = vld [vmem:[%s7 + $0x660] sm:$0xff]
  %v2148 = vld [vmem:[%s7 + $0x668] sm:$0xff]
  %v2149 = vld [vmem:[%s7 + $0x670] sm:$0xff]
  %v2150 = vld [vmem:[%s7 + $0x678] sm:$0xff]
  %v2151 = vld [vmem:[%s7 + $0x680] sm:$0xff]
  %v2152 = vld [vmem:[%s7 + $0x688] sm:$0xff]
  %v2153 = vld [vmem:[%s7 + $0x690] sm:$0xff]
  %v2154 = vld [vmem:[%s7 + $0x698] sm:$0xff]
  %v2155 = vld [vmem:[%s7 + $0x6a0] sm:$0xff]
  %v2156 = vld [vmem:[%s7 + $0x6a8] sm:$0xff]
  %v2157 = vld [vmem:[%s7 + $0x6b0] sm:$0xff]
  %v2158 = vld [vmem:[%s7 + $0x6b8] sm:$0xff]
  %v2159 = vld [vmem:[%s7 + $0x6c0] sm:$0xff]
  %v2160 = vld [vmem:[%s7 + $0x6c8] sm:$0xff]
  %v2161 = vld [vmem:[%s7 + $0x6d0] sm:$0xff]
  %v2162 = vld [vmem:[%s7 + $0x6d8] sm:$0xff]
  %v2163 = vld [vmem:[%s7 + $0x6e0] sm:$0xff]
  %v2164 = vld [vmem:[%s7 + $0x6e8] sm:$0xff]
  %v2165 = vld [vmem:[%s7 + $0x6f0] sm:$0xff]
  %v2166 = vld [vmem:[%s7 + $0x6f8] sm:$0xff]
  %v2167 = vld [vmem:[%s7 + $0x700] sm:$0xff]
  %v2168 = vld [vmem:[%s7 + $0x708] sm:$0xff]
  %v2169 = vld [vmem:[%s7 + $0x710] sm:$0xff]
  %v2170 = vld [vmem:[%s7 + $0x718] sm:$0xff]
  %v2171 = vld [vmem:[%s7 + $0x720] sm:$0xff]
  %v2172 = vld [vmem:[%s7 + $0x728] sm:$0xff]
  %v2173 = vld [vmem:[%s7 + $0x730] sm:$0xff]
  %v2174 = vld [vmem:[%s7 + $0x738] sm:$0xff]
  %v2175 = vld [vmem:[%s7 + $0x740] sm:$0xff]
  %v2176 = vld [vmem:[%s7 + $0x748] sm:$0xff]
  %v2177 = vld [vmem:[%s7 + $0x750] sm:$0xff]
  %v2178 = vld [vmem:[%s7 + $0x758] sm:$0xff]
  %v2179 = vld [vmem:[%s7 + $0x760] sm:$0xff]
  %v2180 = vld [vmem:[%s7 + $0x768] sm:$0xff]
  %v2181 = vld [vmem:[%s7 + $0x770] sm:$0xff]
  %v2182 = vld [vmem:[%s7 + $0x778] sm:$0xff]
  %v2183 = vld [vmem:[%s7 + $0x780] sm:$0xff]
  %v2184 = vld [vmem:[%s7 + $0x788] sm:$0xff]
  %v2185 = vld [vmem:[%s7 + $0x790] sm:$0xff]
  %v2186 = vld [vmem:[%s7 + $0x798] sm:$0xff]
  %v2187 = vld [vmem:[%s7 + $0x7a0] sm:$0xff]
  %v2188 = vld [vmem:[%s7 + $0x7a8] sm:$0xff]
  %v2189 = vld [vmem:[%s7 + $0x7b0] sm:$0xff]
  %v2190 = vld [vmem:[%s7 + $0x7b8] sm:$0xff]
  %v2191 = vld [vmem:[%s7 + $0x7c0] sm:$0xff]
  %v2192 = vld [vmem:[%s7 + $0x7c8] sm:$0xff]
  %v2193 = vld [vmem:[%s7 + $0x7d0] sm:$0xff]
  %v2194 = vld [vmem:[%s7 + $0x7d8] sm:$0xff]
  %v2195 = vld [vmem:[%s7 + $0x7e0] sm:$0xff]
  %v2196 = vld [vmem:[%s7 + $0x7e8] sm:$0xff]
  %v2197 = vld [vmem:[%s7 + $0x7f0] sm:$0xff]
  %v2198 = vld [vmem:[%s7 + $0x7f8] sm:$0xff]
  %v2455 = vunpack.c.l.b16 %v1943
  %v2456 = vunpack.c.h.b16 %v1943
  %v2457 = vunpack.c.l.b16 %v1944
  %v2458 = vunpack.c.h.b16 %v1944
  %v2459 = vunpack.c.l.b16 %v1945
  %v2460 = vunpack.c.h.b16 %v1945
  %v2461 = vunpack.c.l.b16 %v1946
  %v2462 = vunpack.c.h.b16 %v1946
  %v2463 = vunpack.c.l.b16 %v1947
  %v2464 = vunpack.c.h.b16 %v1947
  %v2465 = vunpack.c.l.b16 %v1948
  %v2466 = vunpack.c.h.b16 %v1948
  %v2467 = vunpack.c.l.b16 %v1949
  %v2468 = vunpack.c.h.b16 %v1949
  %v2469 = vunpack.c.l.b16 %v1950
  %v2470 = vunpack.c.h.b16 %v1950
  %v2471 = vunpack.c.l.b16 %v1951
  %v2472 = vunpack.c.h.b16 %v1951
  %v2473 = vunpack.c.l.b16 %v1952
  %v2474 = vunpack.c.h.b16 %v1952
  %v2475 = vunpack.c.l.b16 %v1953
  %v2476 = vunpack.c.h.b16 %v1953
  %v2477 = vunpack.c.l.b16 %v1954
  %v2478 = vunpack.c.h.b16 %v1954
  %v2479 = vunpack.c.l.b16 %v1955
  %v2480 = vunpack.c.h.b16 %v1955
  %v2481 = vunpack.c.l.b16 %v1956
  %v2482 = vunpack.c.h.b16 %v1956
  %v2483 = vunpack.c.l.b16 %v1957
  %v2484 = vunpack.c.h.b16 %v1957
  %v2485 = vunpack.c.l.b16 %v1958
  %v2486 = vunpack.c.h.b16 %v1958
  %v2487 = vunpack.c.l.b16 %v1959
  %v2488 = vunpack.c.h.b16 %v1959
  %v2489 = vunpack.c.l.b16 %v1960
  %v2490 = vunpack.c.h.b16 %v1960
  %v2491 = vunpack.c.l.b16 %v1961
  %v2492 = vunpack.c.h.b16 %v1961
  %v2493 = vunpack.c.l.b16 %v1962
  %v2494 = vunpack.c.h.b16 %v1962
  %v2495 = vunpack.c.l.b16 %v1963
  %v2496 = vunpack.c.h.b16 %v1963
  %v2497 = vunpack.c.l.b16 %v1964
  %v2498 = vunpack.c.h.b16 %v1964
  %v2499 = vunpack.c.l.b16 %v1965
  %v2500 = vunpack.c.h.b16 %v1965
  %v2501 = vunpack.c.l.b16 %v1966
  %v2502 = vunpack.c.h.b16 %v1966
  %v2503 = vunpack.c.l.b16 %v1967
  %v2504 = vunpack.c.h.b16 %v1967
  %v2505 = vunpack.c.l.b16 %v1968
  %v2506 = vunpack.c.h.b16 %v1968
  %v2507 = vunpack.c.l.b16 %v1969
  %v2508 = vunpack.c.h.b16 %v1969
  %v2509 = vunpack.c.l.b16 %v1970
  %v2510 = vunpack.c.h.b16 %v1970
  %v2511 = vunpack.c.l.b16 %v1971
  %v2512 = vunpack.c.h.b16 %v1971
  %v2513 = vunpack.c.l.b16 %v1972
  %v2514 = vunpack.c.h.b16 %v1972
  %v2515 = vunpack.c.l.b16 %v1973
  %v2516 = vunpack.c.h.b16 %v1973
  %v2517 = vunpack.c.l.b16 %v1974
  %v2518 = vunpack.c.h.b16 %v1974
  %v2519 = vunpack.c.l.b16 %v1975
  %v2520 = vunpack.c.h.b16 %v1975
  %v2521 = vunpack.c.l.b16 %v1976
  %v2522 = vunpack.c.h.b16 %v1976
  %v2523 = vunpack.c.l.b16 %v1977
  %v2524 = vunpack.c.h.b16 %v1977
  %v2525 = vunpack.c.l.b16 %v1978
  %v2526 = vunpack.c.h.b16 %v1978
  %v2527 = vunpack.c.l.b16 %v1979
  %v2528 = vunpack.c.h.b16 %v1979
  %v2529 = vunpack.c.l.b16 %v1980
  %v2530 = vunpack.c.h.b16 %v1980
  %v2531 = vunpack.c.l.b16 %v1981
  %v2532 = vunpack.c.h.b16 %v1981
  %v2533 = vunpack.c.l.b16 %v1982
  %v2534 = vunpack.c.h.b16 %v1982
  %v2535 = vunpack.c.l.b16 %v1983
  %v2536 = vunpack.c.h.b16 %v1983
  %v2537 = vunpack.c.l.b16 %v1984
  %v2538 = vunpack.c.h.b16 %v1984
  %v2539 = vunpack.c.l.b16 %v1985
  %v2540 = vunpack.c.h.b16 %v1985
  %v2541 = vunpack.c.l.b16 %v1986
  %v2542 = vunpack.c.h.b16 %v1986
  %v2543 = vunpack.c.l.b16 %v1987
  %v2544 = vunpack.c.h.b16 %v1987
  %v2545 = vunpack.c.l.b16 %v1988
  %v2546 = vunpack.c.h.b16 %v1988
  %v2547 = vunpack.c.l.b16 %v1989
  %v2548 = vunpack.c.h.b16 %v1989
  %v2549 = vunpack.c.l.b16 %v1990
  %v2550 = vunpack.c.h.b16 %v1990
  %v2551 = vunpack.c.l.b16 %v1991
  %v2552 = vunpack.c.h.b16 %v1991
  %v2553 = vunpack.c.l.b16 %v1992
  %v2554 = vunpack.c.h.b16 %v1992
  %v2555 = vunpack.c.l.b16 %v1993
  %v2556 = vunpack.c.h.b16 %v1993
  %v2557 = vunpack.c.l.b16 %v1994
  %v2558 = vunpack.c.h.b16 %v1994
  %v2559 = vunpack.c.l.b16 %v1995
  %v2560 = vunpack.c.h.b16 %v1995
  %v2561 = vunpack.c.l.b16 %v1996
  %v2562 = vunpack.c.h.b16 %v1996
  %v2563 = vunpack.c.l.b16 %v1997
  %v2564 = vunpack.c.h.b16 %v1997
  %v2565 = vunpack.c.l.b16 %v1998
  %v2566 = vunpack.c.h.b16 %v1998
  %v2567 = vunpack.c.l.b16 %v1999
  %v2568 = vunpack.c.h.b16 %v1999
  %v2569 = vunpack.c.l.b16 %v2000
  %v2570 = vunpack.c.h.b16 %v2000
  %v2571 = vunpack.c.l.b16 %v2001
  %v2572 = vunpack.c.h.b16 %v2001
  %v2573 = vunpack.c.l.b16 %v2002
  %v2574 = vunpack.c.h.b16 %v2002
  %v2575 = vunpack.c.l.b16 %v2003
  %v2576 = vunpack.c.h.b16 %v2003
  %v2577 = vunpack.c.l.b16 %v2004
  %v2578 = vunpack.c.h.b16 %v2004
  %v2579 = vunpack.c.l.b16 %v2005
  %v2580 = vunpack.c.h.b16 %v2005
  %v2581 = vunpack.c.l.b16 %v2006
  %v2582 = vunpack.c.h.b16 %v2006
  %v2583 = vunpack.c.l.b16 %v2007
  %v2584 = vunpack.c.h.b16 %v2007
  %v2585 = vunpack.c.l.b16 %v2008
  %v2586 = vunpack.c.h.b16 %v2008
  %v2587 = vunpack.c.l.b16 %v2009
  %v2588 = vunpack.c.h.b16 %v2009
  %v2589 = vunpack.c.l.b16 %v2010
  %v2590 = vunpack.c.h.b16 %v2010
  %v2591 = vunpack.c.l.b16 %v2011
  %v2592 = vunpack.c.h.b16 %v2011
  %v2593 = vunpack.c.l.b16 %v2012
  %v2594 = vunpack.c.h.b16 %v2012
  %v2595 = vunpack.c.l.b16 %v2013
  %v2596 = vunpack.c.h.b16 %v2013
  %v2597 = vunpack.c.l.b16 %v2014
  %v2598 = vunpack.c.h.b16 %v2014
  %v2599 = vunpack.c.l.b16 %v2015
  %v2600 = vunpack.c.h.b16 %v2015
  %v2601 = vunpack.c.l.b16 %v2016
  %v2602 = vunpack.c.h.b16 %v2016
  %v2603 = vunpack.c.l.b16 %v2017
  %v2604 = vunpack.c.h.b16 %v2017
  %v2605 = vunpack.c.l.b16 %v2018
  %v2606 = vunpack.c.h.b16 %v2018
  %v2607 = vunpack.c.l.b16 %v2019
  %v2608 = vunpack.c.h.b16 %v2019
  %v2609 = vunpack.c.l.b16 %v2020
  %v2610 = vunpack.c.h.b16 %v2020
  %v2611 = vunpack.c.l.b16 %v2021
  %v2612 = vunpack.c.h.b16 %v2021
  %v2613 = vunpack.c.l.b16 %v2022
  %v2614 = vunpack.c.h.b16 %v2022
  %v2615 = vunpack.c.l.b16 %v2023
  %v2616 = vunpack.c.h.b16 %v2023
  %v2617 = vunpack.c.l.b16 %v2024
  %v2618 = vunpack.c.h.b16 %v2024
  %v2619 = vunpack.c.l.b16 %v2025
  %v2620 = vunpack.c.h.b16 %v2025
  %v2621 = vunpack.c.l.b16 %v2026
  %v2622 = vunpack.c.h.b16 %v2026
  %v2623 = vunpack.c.l.b16 %v2027
  %v2624 = vunpack.c.h.b16 %v2027
  %v2625 = vunpack.c.l.b16 %v2028
  %v2626 = vunpack.c.h.b16 %v2028
  %v2627 = vunpack.c.l.b16 %v2029
  %v2628 = vunpack.c.h.b16 %v2029
  %v2629 = vunpack.c.l.b16 %v2030
  %v2630 = vunpack.c.h.b16 %v2030
  %v2631 = vunpack.c.l.b16 %v2031
  %v2632 = vunpack.c.h.b16 %v2031
  %v2633 = vunpack.c.l.b16 %v2032
  %v2634 = vunpack.c.h.b16 %v2032
  %v2635 = vunpack.c.l.b16 %v2033
  %v2636 = vunpack.c.h.b16 %v2033
  %v2637 = vunpack.c.l.b16 %v2034
  %v2638 = vunpack.c.h.b16 %v2034
  %v2639 = vunpack.c.l.b16 %v2035
  %v2640 = vunpack.c.h.b16 %v2035
  %v2641 = vunpack.c.l.b16 %v2036
  %v2642 = vunpack.c.h.b16 %v2036
  %v2643 = vunpack.c.l.b16 %v2037
  %v2644 = vunpack.c.h.b16 %v2037
  %v2645 = vunpack.c.l.b16 %v2038
  %v2646 = vunpack.c.h.b16 %v2038
  %v2647 = vunpack.c.l.b16 %v2039
  %v2648 = vunpack.c.h.b16 %v2039
  %v2649 = vunpack.c.l.b16 %v2040
  %v2650 = vunpack.c.h.b16 %v2040
  %v2651 = vunpack.c.l.b16 %v2041
  %v2652 = vunpack.c.h.b16 %v2041
  %v2653 = vunpack.c.l.b16 %v2042
  %v2654 = vunpack.c.h.b16 %v2042
  %v2655 = vunpack.c.l.b16 %v2043
  %v2656 = vunpack.c.h.b16 %v2043
  %v2657 = vunpack.c.l.b16 %v2044
  %v2658 = vunpack.c.h.b16 %v2044
  %v2659 = vunpack.c.l.b16 %v2045
  %v2660 = vunpack.c.h.b16 %v2045
  %v2661 = vunpack.c.l.b16 %v2046
  %v2662 = vunpack.c.h.b16 %v2046
  %v2663 = vunpack.c.l.b16 %v2047
  %v2664 = vunpack.c.h.b16 %v2047
  %v2665 = vunpack.c.l.b16 %v2048
  %v2666 = vunpack.c.h.b16 %v2048
  %v2667 = vunpack.c.l.b16 %v2049
  %v2668 = vunpack.c.h.b16 %v2049
  %v2669 = vunpack.c.l.b16 %v2050
  %v2670 = vunpack.c.h.b16 %v2050
  %v2671 = vunpack.c.l.b16 %v2051
  %v2672 = vunpack.c.h.b16 %v2051
  %v2673 = vunpack.c.l.b16 %v2052
  %v2674 = vunpack.c.h.b16 %v2052
  %v2675 = vunpack.c.l.b16 %v2053
  %v2676 = vunpack.c.h.b16 %v2053
  %v2677 = vunpack.c.l.b16 %v2054
  %v2678 = vunpack.c.h.b16 %v2054
  %v2679 = vunpack.c.l.b16 %v2055
  %v2680 = vunpack.c.h.b16 %v2055
  %v2681 = vunpack.c.l.b16 %v2056
  %v2682 = vunpack.c.h.b16 %v2056
  %v2683 = vunpack.c.l.b16 %v2057
  %v2684 = vunpack.c.h.b16 %v2057
  %v2685 = vunpack.c.l.b16 %v2058
  %v2686 = vunpack.c.h.b16 %v2058
  %v2687 = vunpack.c.l.b16 %v2059
  %v2688 = vunpack.c.h.b16 %v2059
  %v2689 = vunpack.c.l.b16 %v2060
  %v2690 = vunpack.c.h.b16 %v2060
  %v2691 = vunpack.c.l.b16 %v2061
  %v2692 = vunpack.c.h.b16 %v2061
  %v2693 = vunpack.c.l.b16 %v2062
  %v2694 = vunpack.c.h.b16 %v2062
  %v2695 = vunpack.c.l.b16 %v2063
  %v2696 = vunpack.c.h.b16 %v2063
  %v2697 = vunpack.c.l.b16 %v2064
  %v2698 = vunpack.c.h.b16 %v2064
  %v2699 = vunpack.c.l.b16 %v2065
  %v2700 = vunpack.c.h.b16 %v2065
  %v2701 = vunpack.c.l.b16 %v2066
  %v2702 = vunpack.c.h.b16 %v2066
  %v2703 = vunpack.c.l.b16 %v2067
  %v2704 = vunpack.c.h.b16 %v2067
  %v2705 = vunpack.c.l.b16 %v2068
  %v2706 = vunpack.c.h.b16 %v2068
  %v2707 = vunpack.c.l.b16 %v2069
  %v2708 = vunpack.c.h.b16 %v2069
  %v2709 = vunpack.c.l.b16 %v2070
  %v2710 = vunpack.c.h.b16 %v2070
  %v2711 = vunpack.c.l.b16 %v2071
  %v2712 = vunpack.c.h.b16 %v2071
  %v2713 = vunpack.c.l.b16 %v2072
  %v2714 = vunpack.c.h.b16 %v2072
  %v2715 = vunpack.c.l.b16 %v2073
  %v2716 = vunpack.c.h.b16 %v2073
  %v2717 = vunpack.c.l.b16 %v2074
  %v2718 = vunpack.c.h.b16 %v2074
  %v2719 = vunpack.c.l.b16 %v2075
  %v2720 = vunpack.c.h.b16 %v2075
  %v2721 = vunpack.c.l.b16 %v2076
  %v2722 = vunpack.c.h.b16 %v2076
  %v2723 = vunpack.c.l.b16 %v2077
  %v2724 = vunpack.c.h.b16 %v2077
  %v2725 = vunpack.c.l.b16 %v2078
  %v2726 = vunpack.c.h.b16 %v2078
  %v2727 = vunpack.c.l.b16 %v2079
  %v2728 = vunpack.c.h.b16 %v2079
  %v2729 = vunpack.c.l.b16 %v2080
  %v2730 = vunpack.c.h.b16 %v2080
  %v2731 = vunpack.c.l.b16 %v2081
  %v2732 = vunpack.c.h.b16 %v2081
  %v2733 = vunpack.c.l.b16 %v2082
  %v2734 = vunpack.c.h.b16 %v2082
  %v2735 = vunpack.c.l.b16 %v2083
  %v2736 = vunpack.c.h.b16 %v2083
  %v2737 = vunpack.c.l.b16 %v2084
  %v2738 = vunpack.c.h.b16 %v2084
  %v2739 = vunpack.c.l.b16 %v2085
  %v2740 = vunpack.c.h.b16 %v2085
  %v2741 = vunpack.c.l.b16 %v2086
  %v2742 = vunpack.c.h.b16 %v2086
  %v2743 = vunpack.c.l.b16 %v2087
  %v2744 = vunpack.c.h.b16 %v2087
  %v2745 = vunpack.c.l.b16 %v2088
  %v2746 = vunpack.c.h.b16 %v2088
  %v2747 = vunpack.c.l.b16 %v2089
  %v2748 = vunpack.c.h.b16 %v2089
  %v2749 = vunpack.c.l.b16 %v2090
  %v2750 = vunpack.c.h.b16 %v2090
  %v2751 = vunpack.c.l.b16 %v2091
  %v2752 = vunpack.c.h.b16 %v2091
  %v2753 = vunpack.c.l.b16 %v2092
  %v2754 = vunpack.c.h.b16 %v2092
  %v2755 = vunpack.c.l.b16 %v2093
  %v2756 = vunpack.c.h.b16 %v2093
  %v2757 = vunpack.c.l.b16 %v2094
  %v2758 = vunpack.c.h.b16 %v2094
  %v2759 = vunpack.c.l.b16 %v2095
  %v2760 = vunpack.c.h.b16 %v2095
  %v2761 = vunpack.c.l.b16 %v2096
  %v2762 = vunpack.c.h.b16 %v2096
  %v2763 = vunpack.c.l.b16 %v2097
  %v2764 = vunpack.c.h.b16 %v2097
  %v2765 = vunpack.c.l.b16 %v2098
  %v2766 = vunpack.c.h.b16 %v2098
  %v2767 = vunpack.c.l.b16 %v2099
  %v2768 = vunpack.c.h.b16 %v2099
  %v2769 = vunpack.c.l.b16 %v2100
  %v2770 = vunpack.c.h.b16 %v2100
  %v2771 = vunpack.c.l.b16 %v2101
  %v2772 = vunpack.c.h.b16 %v2101
  %v2773 = vunpack.c.l.b16 %v2102
  %v2774 = vunpack.c.h.b16 %v2102
  %v2775 = vunpack.c.l.b16 %v2103
  %v2776 = vunpack.c.h.b16 %v2103
  %v2777 = vunpack.c.l.b16 %v2104
  %v2778 = vunpack.c.h.b16 %v2104
  %v2779 = vunpack.c.l.b16 %v2105
  %v2780 = vunpack.c.h.b16 %v2105
  %v2781 = vunpack.c.l.b16 %v2106
  %v2782 = vunpack.c.h.b16 %v2106
  %v2783 = vunpack.c.l.b16 %v2107
  %v2784 = vunpack.c.h.b16 %v2107
  %v2785 = vunpack.c.l.b16 %v2108
  %v2786 = vunpack.c.h.b16 %v2108
  %v2787 = vunpack.c.l.b16 %v2109
  %v2788 = vunpack.c.h.b16 %v2109
  %v2789 = vunpack.c.l.b16 %v2110
  %v2790 = vunpack.c.h.b16 %v2110
  %v2791 = vunpack.c.l.b16 %v2111
  %v2792 = vunpack.c.h.b16 %v2111
  %v2793 = vunpack.c.l.b16 %v2112
  %v2794 = vunpack.c.h.b16 %v2112
  %v2795 = vunpack.c.l.b16 %v2113
  %v2796 = vunpack.c.h.b16 %v2113
  %v2797 = vunpack.c.l.b16 %v2114
  %v2798 = vunpack.c.h.b16 %v2114
  %v2799 = vunpack.c.l.b16 %v2115
  %v2800 = vunpack.c.h.b16 %v2115
  %v2801 = vunpack.c.l.b16 %v2116
  %v2802 = vunpack.c.h.b16 %v2116
  %v2803 = vunpack.c.l.b16 %v2117
  %v2804 = vunpack.c.h.b16 %v2117
  %v2805 = vunpack.c.l.b16 %v2118
  %v2806 = vunpack.c.h.b16 %v2118
  %v2807 = vunpack.c.l.b16 %v2119
  %v2808 = vunpack.c.h.b16 %v2119
  %v2809 = vunpack.c.l.b16 %v2120
  %v2810 = vunpack.c.h.b16 %v2120
  %v2811 = vunpack.c.l.b16 %v2121
  %v2812 = vunpack.c.h.b16 %v2121
  %v2813 = vunpack.c.l.b16 %v2122
  %v2814 = vunpack.c.h.b16 %v2122
  %v2815 = vunpack.c.l.b16 %v2123
  %v2816 = vunpack.c.h.b16 %v2123
  %v2817 = vunpack.c.l.b16 %v2124
  %v2818 = vunpack.c.h.b16 %v2124
  %v2819 = vunpack.c.l.b16 %v2125
  %v2820 = vunpack.c.h.b16 %v2125
  %v2821 = vunpack.c.l.b16 %v2126
  %v2822 = vunpack.c.h.b16 %v2126
  %v2823 = vunpack.c.l.b16 %v2127
  %v2824 = vunpack.c.h.b16 %v2127
  %v2825 = vunpack.c.l.b16 %v2128
  %v2826 = vunpack.c.h.b16 %v2128
  %v2827 = vunpack.c.l.b16 %v2129
  %v2828 = vunpack.c.h.b16 %v2129
  %v2829 = vunpack.c.l.b16 %v2130
  %v2830 = vunpack.c.h.b16 %v2130
  %v2831 = vunpack.c.l.b16 %v2131
  %v2832 = vunpack.c.h.b16 %v2131
  %v2833 = vunpack.c.l.b16 %v2132
  %v2834 = vunpack.c.h.b16 %v2132
  %v2835 = vunpack.c.l.b16 %v2133
  %v2836 = vunpack.c.h.b16 %v2133
  %v2837 = vunpack.c.l.b16 %v2134
  %v2838 = vunpack.c.h.b16 %v2134
  %v2839 = vunpack.c.l.b16 %v2135
  %v2840 = vunpack.c.h.b16 %v2135
  %v2841 = vunpack.c.l.b16 %v2136
  %v2842 = vunpack.c.h.b16 %v2136
  %v2843 = vunpack.c.l.b16 %v2137
  %v2844 = vunpack.c.h.b16 %v2137
  %v2845 = vunpack.c.l.b16 %v2138
  %v2846 = vunpack.c.h.b16 %v2138
  %v2847 = vunpack.c.l.b16 %v2139
  %v2848 = vunpack.c.h.b16 %v2139
  %v2849 = vunpack.c.l.b16 %v2140
  %v2850 = vunpack.c.h.b16 %v2140
  %v2851 = vunpack.c.l.b16 %v2141
  %v2852 = vunpack.c.h.b16 %v2141
  %v2853 = vunpack.c.l.b16 %v2142
  %v2854 = vunpack.c.h.b16 %v2142
  %v2855 = vunpack.c.l.b16 %v2143
  %v2856 = vunpack.c.h.b16 %v2143
  %v2857 = vunpack.c.l.b16 %v2144
  %v2858 = vunpack.c.h.b16 %v2144
  %v2859 = vunpack.c.l.b16 %v2145
  %v2860 = vunpack.c.h.b16 %v2145
  %v2861 = vunpack.c.l.b16 %v2146
  %v2862 = vunpack.c.h.b16 %v2146
  %v2863 = vunpack.c.l.b16 %v2147
  %v2864 = vunpack.c.h.b16 %v2147
  %v2865 = vunpack.c.l.b16 %v2148
  %v2866 = vunpack.c.h.b16 %v2148
  %v2867 = vunpack.c.l.b16 %v2149
  %v2868 = vunpack.c.h.b16 %v2149
  %v2869 = vunpack.c.l.b16 %v2150
  %v2870 = vunpack.c.h.b16 %v2150
  %v2871 = vunpack.c.l.b16 %v2151
  %v2872 = vunpack.c.h.b16 %v2151
  %v2873 = vunpack.c.l.b16 %v2152
  %v2874 = vunpack.c.h.b16 %v2152
  %v2875 = vunpack.c.l.b16 %v2153
  %v2876 = vunpack.c.h.b16 %v2153
  %v2877 = vunpack.c.l.b16 %v2154
  %v2878 = vunpack.c.h.b16 %v2154
  %v2879 = vunpack.c.l.b16 %v2155
  %v2880 = vunpack.c.h.b16 %v2155
  %v2881 = vunpack.c.l.b16 %v2156
  %v2882 = vunpack.c.h.b16 %v2156
  %v2883 = vunpack.c.l.b16 %v2157
  %v2884 = vunpack.c.h.b16 %v2157
  %v2885 = vunpack.c.l.b16 %v2158
  %v2886 = vunpack.c.h.b16 %v2158
  %v2887 = vunpack.c.l.b16 %v2159
  %v2888 = vunpack.c.h.b16 %v2159
  %v2889 = vunpack.c.l.b16 %v2160
  %v2890 = vunpack.c.h.b16 %v2160
  %v2891 = vunpack.c.l.b16 %v2161
  %v2892 = vunpack.c.h.b16 %v2161
  %v2893 = vunpack.c.l.b16 %v2162
  %v2894 = vunpack.c.h.b16 %v2162
  %v2895 = vunpack.c.l.b16 %v2163
  %v2896 = vunpack.c.h.b16 %v2163
  %v2897 = vunpack.c.l.b16 %v2164
  %v2898 = vunpack.c.h.b16 %v2164
  %v2899 = vunpack.c.l.b16 %v2165
  %v2900 = vunpack.c.h.b16 %v2165
  %v2901 = vunpack.c.l.b16 %v2166
  %v2902 = vunpack.c.h.b16 %v2166
  %v2903 = vunpack.c.l.b16 %v2167
  %v2904 = vunpack.c.h.b16 %v2167
  %v2905 = vunpack.c.l.b16 %v2168
  %v2906 = vunpack.c.h.b16 %v2168
  %v2907 = vunpack.c.l.b16 %v2169
  %v2908 = vunpack.c.h.b16 %v2169
  %v2909 = vunpack.c.l.b16 %v2170
  %v2910 = vunpack.c.h.b16 %v2170
  %v2911 = vunpack.c.l.b16 %v2171
  %v2912 = vunpack.c.h.b16 %v2171
  %v2913 = vunpack.c.l.b16 %v2172
  %v2914 = vunpack.c.h.b16 %v2172
  %v2915 = vunpack.c.l.b16 %v2173
  %v2916 = vunpack.c.h.b16 %v2173
  %v2917 = vunpack.c.l.b16 %v2174
  %v2918 = vunpack.c.h.b16 %v2174
  %v2919 = vunpack.c.l.b16 %v2175
  %v2920 = vunpack.c.h.b16 %v2175
  %v2921 = vunpack.c.l.b16 %v2176
  %v2922 = vunpack.c.h.b16 %v2176
  %v2923 = vunpack.c.l.b16 %v2177
  %v2924 = vunpack.c.h.b16 %v2177
  %v2925 = vunpack.c.l.b16 %v2178
  %v2926 = vunpack.c.h.b16 %v2178
  %v2927 = vunpack.c.l.b16 %v2179
  %v2928 = vunpack.c.h.b16 %v2179
  %v2929 = vunpack.c.l.b16 %v2180
  %v2930 = vunpack.c.h.b16 %v2180
  %v2931 = vunpack.c.l.b16 %v2181
  %v2932 = vunpack.c.h.b16 %v2181
  %v2933 = vunpack.c.l.b16 %v2182
  %v2934 = vunpack.c.h.b16 %v2182
  %v2935 = vunpack.c.l.b16 %v2183
  %v2936 = vunpack.c.h.b16 %v2183
  %v2937 = vunpack.c.l.b16 %v2184
  %v2938 = vunpack.c.h.b16 %v2184
  %v2939 = vunpack.c.l.b16 %v2185
  %v2940 = vunpack.c.h.b16 %v2185
  %v2941 = vunpack.c.l.b16 %v2186
  %v2942 = vunpack.c.h.b16 %v2186
  %v2943 = vunpack.c.l.b16 %v2187
  %v2944 = vunpack.c.h.b16 %v2187
  %v2945 = vunpack.c.l.b16 %v2188
  %v2946 = vunpack.c.h.b16 %v2188
  %v2947 = vunpack.c.l.b16 %v2189
  %v2948 = vunpack.c.h.b16 %v2189
  %v2949 = vunpack.c.l.b16 %v2190
  %v2950 = vunpack.c.h.b16 %v2190
  %v2951 = vunpack.c.l.b16 %v2191
  %v2952 = vunpack.c.h.b16 %v2191
  %v2953 = vunpack.c.l.b16 %v2192
  %v2954 = vunpack.c.h.b16 %v2192
  %v2955 = vunpack.c.l.b16 %v2193
  %v2956 = vunpack.c.h.b16 %v2193
  %v2957 = vunpack.c.l.b16 %v2194
  %v2958 = vunpack.c.h.b16 %v2194
  %v2959 = vunpack.c.l.b16 %v2195
  %v2960 = vunpack.c.h.b16 %v2195
  %v2961 = vunpack.c.l.b16 %v2196
  %v2962 = vunpack.c.h.b16 %v2196
  %v2963 = vunpack.c.l.b16 %v2197
  %v2964 = vunpack.c.h.b16 %v2197
  %v2965 = vunpack.c.l.b16 %v2198
  %v2966 = vunpack.c.h.b16 %v2198
  %v2967 = vpack.c.b16 %v2463, %v2455
  %v2968 = vpack.c.b16 %v2464, %v2456
  %v2969 = vpack.c.b16 %v2465, %v2457
  %v2970 = vpack.c.b16 %v2466, %v2458
  %v2971 = vpack.c.b16 %v2467, %v2459
  %v2972 = vpack.c.b16 %v2468, %v2460
  %v2973 = vpack.c.b16 %v2469, %v2461
  %v2974 = vpack.c.b16 %v2470, %v2462
  %v2975 = vpack.c.b16 %v2479, %v2471
  %v2976 = vpack.c.b16 %v2480, %v2472
  %v2977 = vpack.c.b16 %v2481, %v2473
  %v2978 = vpack.c.b16 %v2482, %v2474
  %v2979 = vpack.c.b16 %v2483, %v2475
  %v2980 = vpack.c.b16 %v2484, %v2476
  %v2981 = vpack.c.b16 %v2485, %v2477
  %v2982 = vpack.c.b16 %v2486, %v2478
  %v2983 = vpack.c.b16 %v2495, %v2487
  %v2984 = vpack.c.b16 %v2496, %v2488
  %v2985 = vpack.c.b16 %v2497, %v2489
  %v2986 = vpack.c.b16 %v2498, %v2490
  %v2987 = vpack.c.b16 %v2499, %v2491
  %v2988 = vpack.c.b16 %v2500, %v2492
  %v2989 = vpack.c.b16 %v2501, %v2493
  %v2990 = vpack.c.b16 %v2502, %v2494
  %v2991 = vpack.c.b16 %v2511, %v2503
  %v2992 = vpack.c.b16 %v2512, %v2504
  %v2993 = vpack.c.b16 %v2513, %v2505
  %v2994 = vpack.c.b16 %v2514, %v2506
  %v2995 = vpack.c.b16 %v2515, %v2507
  %v2996 = vpack.c.b16 %v2516, %v2508
  %v2997 = vpack.c.b16 %v2517, %v2509
  %v2998 = vpack.c.b16 %v2518, %v2510
  %v2999 = vpack.c.b16 %v2527, %v2519
  %v3000 = vpack.c.b16 %v2528, %v2520
  %v3001 = vpack.c.b16 %v2529, %v2521
  %v3002 = vpack.c.b16 %v2530, %v2522
  %v3003 = vpack.c.b16 %v2531, %v2523
  %v3004 = vpack.c.b16 %v2532, %v2524
  %v3005 = vpack.c.b16 %v2533, %v2525
  %v3006 = vpack.c.b16 %v2534, %v2526
  %v3007 = vpack.c.b16 %v2543, %v2535
  %v3008 = vpack.c.b16 %v2544, %v2536
  %v3009 = vpack.c.b16 %v2545, %v2537
  %v3010 = vpack.c.b16 %v2546, %v2538
  %v3011 = vpack.c.b16 %v2547, %v2539
  %v3012 = vpack.c.b16 %v2548, %v2540
  %v3013 = vpack.c.b16 %v2549, %v2541
  %v3014 = vpack.c.b16 %v2550, %v2542
  %v3015 = vpack.c.b16 %v2559, %v2551
  %v3016 = vpack.c.b16 %v2560, %v2552
  %v3017 = vpack.c.b16 %v2561, %v2553
  %v3018 = vpack.c.b16 %v2562, %v2554
  %v3019 = vpack.c.b16 %v2563, %v2555
  %v3020 = vpack.c.b16 %v2564, %v2556
  %v3021 = vpack.c.b16 %v2565, %v2557
  %v3022 = vpack.c.b16 %v2566, %v2558
  %v3023 = vpack.c.b16 %v2575, %v2567
  %v3024 = vpack.c.b16 %v2576, %v2568
  %v3025 = vpack.c.b16 %v2577, %v2569
  %v3026 = vpack.c.b16 %v2578, %v2570
  %v3027 = vpack.c.b16 %v2579, %v2571
  %v3028 = vpack.c.b16 %v2580, %v2572
  %v3029 = vpack.c.b16 %v2581, %v2573
  %v3030 = vpack.c.b16 %v2582, %v2574
  %v3031 = vpack.c.b16 %v2591, %v2583
  %v3032 = vpack.c.b16 %v2592, %v2584
  %v3033 = vpack.c.b16 %v2593, %v2585
  %v3034 = vpack.c.b16 %v2594, %v2586
  %v3035 = vpack.c.b16 %v2595, %v2587
  %v3036 = vpack.c.b16 %v2596, %v2588
  %v3037 = vpack.c.b16 %v2597, %v2589
  %v3038 = vpack.c.b16 %v2598, %v2590
  %v3039 = vpack.c.b16 %v2607, %v2599
  %v3040 = vpack.c.b16 %v2608, %v2600
  %v3041 = vpack.c.b16 %v2609, %v2601
  %v3042 = vpack.c.b16 %v2610, %v2602
  %v3043 = vpack.c.b16 %v2611, %v2603
  %v3044 = vpack.c.b16 %v2612, %v2604
  %v3045 = vpack.c.b16 %v2613, %v2605
  %v3046 = vpack.c.b16 %v2614, %v2606
  %v3047 = vpack.c.b16 %v2623, %v2615
  %v3048 = vpack.c.b16 %v2624, %v2616
  %v3049 = vpack.c.b16 %v2625, %v2617
  %v3050 = vpack.c.b16 %v2626, %v2618
  %v3051 = vpack.c.b16 %v2627, %v2619
  %v3052 = vpack.c.b16 %v2628, %v2620
  %v3053 = vpack.c.b16 %v2629, %v2621
  %v3054 = vpack.c.b16 %v2630, %v2622
  %v3055 = vpack.c.b16 %v2639, %v2631
  %v3056 = vpack.c.b16 %v2640, %v2632
  %v3057 = vpack.c.b16 %v2641, %v2633
  %v3058 = vpack.c.b16 %v2642, %v2634
  %v3059 = vpack.c.b16 %v2643, %v2635
  %v3060 = vpack.c.b16 %v2644, %v2636
  %v3061 = vpack.c.b16 %v2645, %v2637
  %v3062 = vpack.c.b16 %v2646, %v2638
  %v3063 = vpack.c.b16 %v2655, %v2647
  %v3064 = vpack.c.b16 %v2656, %v2648
  %v3065 = vpack.c.b16 %v2657, %v2649
  %v3066 = vpack.c.b16 %v2658, %v2650
  %v3067 = vpack.c.b16 %v2659, %v2651
  %v3068 = vpack.c.b16 %v2660, %v2652
  %v3069 = vpack.c.b16 %v2661, %v2653
  %v3070 = vpack.c.b16 %v2662, %v2654
  %v3071 = vpack.c.b16 %v2671, %v2663
  %v3072 = vpack.c.b16 %v2672, %v2664
  %v3073 = vpack.c.b16 %v2673, %v2665
  %v3074 = vpack.c.b16 %v2674, %v2666
  %v3075 = vpack.c.b16 %v2675, %v2667
  %v3076 = vpack.c.b16 %v2676, %v2668
  %v3077 = vpack.c.b16 %v2677, %v2669
  %v3078 = vpack.c.b16 %v2678, %v2670
  %v3079 = vpack.c.b16 %v2687, %v2679
  %v3080 = vpack.c.b16 %v2688, %v2680
  %v3081 = vpack.c.b16 %v2689, %v2681
  %v3082 = vpack.c.b16 %v2690, %v2682
  %v3083 = vpack.c.b16 %v2691, %v2683
  %v3084 = vpack.c.b16 %v2692, %v2684
  %v3085 = vpack.c.b16 %v2693, %v2685
  %v3086 = vpack.c.b16 %v2694, %v2686
  %v3087 = vpack.c.b16 %v2703, %v2695
  %v3088 = vpack.c.b16 %v2704, %v2696
  %v3089 = vpack.c.b16 %v2705, %v2697
  %v3090 = vpack.c.b16 %v2706, %v2698
  %v3091 = vpack.c.b16 %v2707, %v2699
  %v3092 = vpack.c.b16 %v2708, %v2700
  %v3093 = vpack.c.b16 %v2709, %v2701
  %v3094 = vpack.c.b16 %v2710, %v2702
  %v3095 = vpack.c.b16 %v2719, %v2711
  %v3096 = vpack.c.b16 %v2720, %v2712
  %v3097 = vpack.c.b16 %v2721, %v2713
  %v3098 = vpack.c.b16 %v2722, %v2714
  %v3099 = vpack.c.b16 %v2723, %v2715
  %v3100 = vpack.c.b16 %v2724, %v2716
  %v3101 = vpack.c.b16 %v2725, %v2717
  %v3102 = vpack.c.b16 %v2726, %v2718
  %v3103 = vpack.c.b16 %v2735, %v2727
  %v3104 = vpack.c.b16 %v2736, %v2728
  %v3105 = vpack.c.b16 %v2737, %v2729
  %v3106 = vpack.c.b16 %v2738, %v2730
  %v3107 = vpack.c.b16 %v2739, %v2731
  %v3108 = vpack.c.b16 %v2740, %v2732
  %v3109 = vpack.c.b16 %v2741, %v2733
  %v3110 = vpack.c.b16 %v2742, %v2734
  %v3111 = vpack.c.b16 %v2751, %v2743
  %v3112 = vpack.c.b16 %v2752, %v2744
  %v3113 = vpack.c.b16 %v2753, %v2745
  %v3114 = vpack.c.b16 %v2754, %v2746
  %v3115 = vpack.c.b16 %v2755, %v2747
  %v3116 = vpack.c.b16 %v2756, %v2748
  %v3117 = vpack.c.b16 %v2757, %v2749
  %v3118 = vpack.c.b16 %v2758, %v2750
  %v3119 = vpack.c.b16 %v2767, %v2759
  %v3120 = vpack.c.b16 %v2768, %v2760
  %v3121 = vpack.c.b16 %v2769, %v2761
  %v3122 = vpack.c.b16 %v2770, %v2762
  %v3123 = vpack.c.b16 %v2771, %v2763
  %v3124 = vpack.c.b16 %v2772, %v2764
  %v3125 = vpack.c.b16 %v2773, %v2765
  %v3126 = vpack.c.b16 %v2774, %v2766
  %v3127 = vpack.c.b16 %v2783, %v2775
  %v3128 = vpack.c.b16 %v2784, %v2776
  %v3129 = vpack.c.b16 %v2785, %v2777
  %v3130 = vpack.c.b16 %v2786, %v2778
  %v3131 = vpack.c.b16 %v2787, %v2779
  %v3132 = vpack.c.b16 %v2788, %v2780
  %v3133 = vpack.c.b16 %v2789, %v2781
  %v3134 = vpack.c.b16 %v2790, %v2782
  %v3135 = vpack.c.b16 %v2799, %v2791
  %v3136 = vpack.c.b16 %v2800, %v2792
  %v3137 = vpack.c.b16 %v2801, %v2793
  %v3138 = vpack.c.b16 %v2802, %v2794
  %v3139 = vpack.c.b16 %v2803, %v2795
  %v3140 = vpack.c.b16 %v2804, %v2796
  %v3141 = vpack.c.b16 %v2805, %v2797
  %v3142 = vpack.c.b16 %v2806, %v2798
  %v3143 = vpack.c.b16 %v2815, %v2807
  %v3144 = vpack.c.b16 %v2816, %v2808
  %v3145 = vpack.c.b16 %v2817, %v2809
  %v3146 = vpack.c.b16 %v2818, %v2810
  %v3147 = vpack.c.b16 %v2819, %v2811
  %v3148 = vpack.c.b16 %v2820, %v2812
  %v3149 = vpack.c.b16 %v2821, %v2813
  %v3150 = vpack.c.b16 %v2822, %v2814
  %v3151 = vpack.c.b16 %v2831, %v2823
  %v3152 = vpack.c.b16 %v2832, %v2824
  %v3153 = vpack.c.b16 %v2833, %v2825
  %v3154 = vpack.c.b16 %v2834, %v2826
  %v3155 = vpack.c.b16 %v2835, %v2827
  %v3156 = vpack.c.b16 %v2836, %v2828
  %v3157 = vpack.c.b16 %v2837, %v2829
  %v3158 = vpack.c.b16 %v2838, %v2830
  %v3159 = vpack.c.b16 %v2847, %v2839
  %v3160 = vpack.c.b16 %v2848, %v2840
  %v3161 = vpack.c.b16 %v2849, %v2841
  %v3162 = vpack.c.b16 %v2850, %v2842
  %v3163 = vpack.c.b16 %v2851, %v2843
  %v3164 = vpack.c.b16 %v2852, %v2844
  %v3165 = vpack.c.b16 %v2853, %v2845
  %v3166 = vpack.c.b16 %v2854, %v2846
  %v3167 = vpack.c.b16 %v2863, %v2855
  %v3168 = vpack.c.b16 %v2864, %v2856
  %v3169 = vpack.c.b16 %v2865, %v2857
  %v3170 = vpack.c.b16 %v2866, %v2858
  %v3171 = vpack.c.b16 %v2867, %v2859
  %v3172 = vpack.c.b16 %v2868, %v2860
  %v3173 = vpack.c.b16 %v2869, %v2861
  %v3174 = vpack.c.b16 %v2870, %v2862
  %v3175 = vpack.c.b16 %v2879, %v2871
  %v3176 = vpack.c.b16 %v2880, %v2872
  %v3177 = vpack.c.b16 %v2881, %v2873
  %v3178 = vpack.c.b16 %v2882, %v2874
  %v3179 = vpack.c.b16 %v2883, %v2875
  %v3180 = vpack.c.b16 %v2884, %v2876
  %v3181 = vpack.c.b16 %v2885, %v2877
  %v3182 = vpack.c.b16 %v2886, %v2878
  %v3183 = vpack.c.b16 %v2895, %v2887
  %v3184 = vpack.c.b16 %v2896, %v2888
  %v3185 = vpack.c.b16 %v2897, %v2889
  %v3186 = vpack.c.b16 %v2898, %v2890
  %v3187 = vpack.c.b16 %v2899, %v2891
  %v3188 = vpack.c.b16 %v2900, %v2892
  %v3189 = vpack.c.b16 %v2901, %v2893
  %v3190 = vpack.c.b16 %v2902, %v2894
  %v3191 = vpack.c.b16 %v2911, %v2903
  %v3192 = vpack.c.b16 %v2912, %v2904
  %v3193 = vpack.c.b16 %v2913, %v2905
  %v3194 = vpack.c.b16 %v2914, %v2906
  %v3195 = vpack.c.b16 %v2915, %v2907
  %v3196 = vpack.c.b16 %v2916, %v2908
  %v3197 = vpack.c.b16 %v2917, %v2909
  %v3198 = vpack.c.b16 %v2918, %v2910
  %v3199 = vpack.c.b16 %v2927, %v2919
  %v3200 = vpack.c.b16 %v2928, %v2920
  %v3201 = vpack.c.b16 %v2929, %v2921
  %v3202 = vpack.c.b16 %v2930, %v2922
  %v3203 = vpack.c.b16 %v2931, %v2923
  %v3204 = vpack.c.b16 %v2932, %v2924
  %v3205 = vpack.c.b16 %v2933, %v2925
  %v3206 = vpack.c.b16 %v2934, %v2926
  %v3207 = vpack.c.b16 %v2943, %v2935
  %v3208 = vpack.c.b16 %v2944, %v2936
  %v3209 = vpack.c.b16 %v2945, %v2937
  %v3210 = vpack.c.b16 %v2946, %v2938
  %v3211 = vpack.c.b16 %v2947, %v2939
  %v3212 = vpack.c.b16 %v2948, %v2940
  %v3213 = vpack.c.b16 %v2949, %v2941
  %v3214 = vpack.c.b16 %v2950, %v2942
  %v3215 = vpack.c.b16 %v2959, %v2951
  %v3216 = vpack.c.b16 %v2960, %v2952
  %v3217 = vpack.c.b16 %v2961, %v2953
  %v3218 = vpack.c.b16 %v2962, %v2954
  %v3219 = vpack.c.b16 %v2963, %v2955
  %v3220 = vpack.c.b16 %v2964, %v2956
  %v3221 = vpack.c.b16 %v2965, %v2957
  %v3222 = vpack.c.b16 %v2966, %v2958
  %3479 = vmatprep.subr.bf16.mxu0 %v2968
  %3480 = vmatpush1.bf16.msra.mxu0 %v2967
  %3481 = vmatprep.subr.bf16.mxu0 %v2976
  %3482 = vmatpush1.bf16.msra.mxu0 %v2975
  %3483 = vmatprep.subr.bf16.mxu0 %v2984
  %3484 = vmatpush1.bf16.msra.mxu0 %v2983
  %3485 = vmatprep.subr.bf16.mxu0 %v2992
  %3486 = vmatpush1.bf16.msra.mxu0 %v2991
  %3487 = vmatprep.subr.bf16.mxu0 %v3000
  %3488 = vmatpush1.bf16.msra.mxu0 %v2999
  %3489 = vmatprep.subr.bf16.mxu0 %v3008
  %3490 = vmatpush1.bf16.msra.mxu0 %v3007
  %3491 = vmatprep.subr.bf16.mxu0 %v3016
  %3492 = vmatpush1.bf16.msra.mxu0 %v3015
  %3493 = vmatprep.subr.bf16.mxu0 %v3024
  %3494 = vmatpush1.bf16.msra.mxu0 %v3023
  %3495 = vmatprep.subr.bf16.mxu0 %v3032
  %3496 = vmatpush1.bf16.msra.mxu0 %v3031
  %3497 = vmatprep.subr.bf16.mxu0 %v3040
  %3498 = vmatpush1.bf16.msra.mxu0 %v3039
  %3499 = vmatprep.subr.bf16.mxu0 %v3048
  %3500 = vmatpush1.bf16.msra.mxu0 %v3047
  %3501 = vmatprep.subr.bf16.mxu0 %v3056
  %3502 = vmatpush1.bf16.msra.mxu0 %v3055
  %3503 = vmatprep.subr.bf16.mxu0 %v3064
  %3504 = vmatpush1.bf16.msra.mxu0 %v3063
  %3505 = vmatprep.subr.bf16.mxu0 %v3072
  %3506 = vmatpush1.bf16.msra.mxu0 %v3071
  %3507 = vmatprep.subr.bf16.mxu0 %v3080
  %3508 = vmatpush1.bf16.msra.mxu0 %v3079
  %3509 = vmatprep.subr.bf16.mxu0 %v3088
  %3510 = vmatpush1.bf16.msra.mxu0 %v3087
  %3511 = vmatprep.mubr.bf16.mxu0 %v1880
  %3512 = vmatmul.mubr.bf16.gmra.mrb[0].mxu0 %v1879
  %v3513 = vpop.f32.mrb[0].mxu0
  %v3514 = vadd.f32 0.0, %v3513
  %v3515 = vpop.f32.mrb[0].mxu0
  %v3516 = vadd.f32 0.0, %v3515
  %v3517 = vpop.f32.mrb[0].mxu0
  %v3518 = vadd.f32 0.0, %v3517
  %v3519 = vpop.f32.mrb[0].mxu0
  %v3520 = vadd.f32 0.0, %v3519
  %3521 = vmatprep.mubr.bf16.mxu0 %v1884
  %3522 = vmatmul.mubr.bf16.gmra.mrb[0].mxu0 %v1883
  %v3523 = vpop.f32.mrb[0].mxu0
  %v3524 = vadd.f32 0.0, %v3523
  %v3525 = vpop.f32.mrb[0].mxu0
  %v3526 = vadd.f32 0.0, %v3525
  %v3527 = vpop.f32.mrb[0].mxu0
  %v3528 = vadd.f32 0.0, %v3527
  %v3529 = vpop.f32.mrb[0].mxu0
  %v3530 = vadd.f32 0.0, %v3529
  %3531 = vmatprep.mubr.bf16.mxu0 %v1888
  %3532 = vmatmul.mubr.bf16.gmra.mrb[0].mxu0 %v1887
  %v3533 = vpop.f32.mrb[0].mxu0
  %v3534 = vadd.f32 0.0, %v3533
  %v3535 = vpop.f32.mrb[0].mxu0
  %v3536 = vadd.f32 0.0, %v3535
  %v3537 = vpop.f32.mrb[0].mxu0
  %v3538 = vadd.f32 0.0, %v3537
  %v3539 = vpop.f32.mrb[0].mxu0
  %v3540 = vadd.f32 0.0, %v3539
  %3541 = vmatprep.mubr.bf16.mxu0 %v1892
  %3542 = vmatmul.mubr.bf16.gmra.mrb[0].mxu0 %v1891
  %v3543 = vpop.f32.mrb[0].mxu0
  %v3544 = vadd.f32 0.0, %v3543
  %v3545 = vpop.f32.mrb[0].mxu0
  %v3546 = vadd.f32 0.0, %v3545
  %v3547 = vpop.f32.mrb[0].mxu0
  %v3548 = vadd.f32 0.0, %v3547
  %v3549 = vpop.f32.mrb[0].mxu0
  %v3550 = vadd.f32 0.0, %v3549
  %3551 = vmatprep.mubr.bf16.mxu0 %v1896
  %3552 = vmatmul.mubr.bf16.gmra.mrb[0].mxu0 %v1895
  %v3553 = vpop.f32.mrb[0].mxu0
  %v3554 = vadd.f32 0.0, %v3553
  %v3555 = vpop.f32.mrb[0].mxu0
  %v3556 = vadd.f32 0.0, %v3555
  %v3557 = vpop.f32.mrb[0].mxu0
  %v3558 = vadd.f32 0.0, %v3557
  %v3559 = vpop.f32.mrb[0].mxu0
  %v3560 = vadd.f32 0.0, %v3559
  %3561 = vmatprep.mubr.bf16.mxu0 %v1900
  %3562 = vmatmul.mubr.bf16.gmra.mrb[0].mxu0 %v1899
  %v3563 = vpop.f32.mrb[0].mxu0
  %v3564 = vadd.f32 0.0, %v3563
  %v3565 = vpop.f32.mrb[0].mxu0
  %v3566 = vadd.f32 0.0, %v3565
  %v3567 = vpop.f32.mrb[0].mxu0
  %v3568 = vadd.f32 0.0, %v3567
  %v3569 = vpop.f32.mrb[0].mxu0
  %v3570 = vadd.f32 0.0, %v3569
  %3571 = vmatprep.mubr.bf16.mxu0 %v1904
  %3572 = vmatmul.mubr.bf16.gmra.mrb[0].mxu0 %v1903
  %v3573 = vpop.f32.mrb[0].mxu0
  %v3574 = vadd.f32 0.0, %v3573
  %v3575 = vpop.f32.mrb[0].mxu0
  %v3576 = vadd.f32 0.0, %v3575
  %v3577 = vpop.f32.mrb[0].mxu0
  %v3578 = vadd.f32 0.0, %v3577
  %v3579 = vpop.f32.mrb[0].mxu0
  %v3580 = vadd.f32 0.0, %v3579
  %3581 = vmatprep.mubr.bf16.mxu0 %v1908
  %3582 = vmatmul.mubr.bf16.gmra.mrb[0].mxu0 %v1907
  %v3583 = vpop.f32.mrb[0].mxu0
  %v3584 = vadd.f32 0.0, %v3583
  %v3585 = vpop.f32.mrb[0].mxu0
  %v3586 = vadd.f32 0.0, %v3585
  %v3587 = vpop.f32.mrb[0].mxu0
  %v3588 = vadd.f32 0.0, %v3587
  %v3589 = vpop.f32.mrb[0].mxu0
  %v3590 = vadd.f32 0.0, %v3589
  %3591 = vmatprep.mubr.bf16.mxu0 %v1912
  %3592 = vmatmul.mubr.bf16.gmra.mrb[0].mxu0 %v1911
  %v3593 = vpop.f32.mrb[0].mxu0
  %v3594 = vadd.f32 0.0, %v3593
  %v3595 = vpop.f32.mrb[0].mxu0
  %v3596 = vadd.f32 0.0, %v3595
  %v3597 = vpop.f32.mrb[0].mxu0
  %v3598 = vadd.f32 0.0, %v3597
  %v3599 = vpop.f32.mrb[0].mxu0
  %v3600 = vadd.f32 0.0, %v3599
  %3601 = vmatprep.mubr.bf16.mxu0 %v1916
  %3602 = vmatmul.mubr.bf16.gmra.mrb[0].mxu0 %v1915
  %v3603 = vpop.f32.mrb[0].mxu0
  %v3604 = vadd.f32 0.0, %v3603
  %v3605 = vpop.f32.mrb[0].mxu0
  %v3606 = vadd.f32 0.0, %v3605
  %v3607 = vpop.f32.mrb[0].mxu0
  %v3608 = vadd.f32 0.0, %v3607
  %v3609 = vpop.f32.mrb[0].mxu0
  %v3610 = vadd.f32 0.0, %v3609
  %3611 = vmatprep.mubr.bf16.mxu0 %v1920
  %3612 = vmatmul.mubr.bf16.gmra.mrb[0].mxu0 %v1919
  %v3613 = vpop.f32.mrb[0].mxu0
  %v3614 = vadd.f32 0.0, %v3613
  %v3615 = vpop.f32.mrb[0].mxu0
  %v3616 = vadd.f32 0.0, %v3615
  %v3617 = vpop.f32.mrb[0].mxu0
  %v3618 = vadd.f32 0.0, %v3617
  %v3619 = vpop.f32.mrb[0].mxu0
  %v3620 = vadd.f32 0.0, %v3619
  %3621 = vmatprep.mubr.bf16.mxu0 %v1924
  %3622 = vmatmul.mubr.bf16.gmra.mrb[0].mxu0 %v1923
  %v3623 = vpop.f32.mrb[0].mxu0
  %v3624 = vadd.f32 0.0, %v3623
  %v3625 = vpop.f32.mrb[0].mxu0
  %v3626 = vadd.f32 0.0, %v3625
  %v3627 = vpop.f32.mrb[0].mxu0
  %v3628 = vadd.f32 0.0, %v3627
  %v3629 = vpop.f32.mrb[0].mxu0
  %v3630 = vadd.f32 0.0, %v3629
  %3631 = vmatprep.mubr.bf16.mxu0 %v1928
  %3632 = vmatmul.mubr.bf16.gmra.mrb[0].mxu0 %v1927
  %v3633 = vpop.f32.mrb[0].mxu0
  %v3634 = vadd.f32 0.0, %v3633
  %v3635 = vpop.f32.mrb[0].mxu0
  %v3636 = vadd.f32 0.0, %v3635
  %v3637 = vpop.f32.mrb[0].mxu0
  %v3638 = vadd.f32 0.0, %v3637
  %v3639 = vpop.f32.mrb[0].mxu0
  %v3640 = vadd.f32 0.0, %v3639
  %3641 = vmatprep.mubr.bf16.mxu0 %v1932
  %3642 = vmatmul.mubr.bf16.gmra.mrb[0].mxu0 %v1931
  %v3643 = vpop.f32.mrb[0].mxu0
  %v3644 = vadd.f32 0.0, %v3643
  %v3645 = vpop.f32.mrb[0].mxu0
  %v3646 = vadd.f32 0.0, %v3645
  %v3647 = vpop.f32.mrb[0].mxu0
  %v3648 = vadd.f32 0.0, %v3647
  %v3649 = vpop.f32.mrb[0].mxu0
  %v3650 = vadd.f32 0.0, %v3649
  %3651 = vmatprep.mubr.bf16.mxu0 %v1936
  %3652 = vmatmul.mubr.bf16.gmra.mrb[0].mxu0 %v1935
  %v3653 = vpop.f32.mrb[0].mxu0
  %v3654 = vadd.f32 0.0, %v3653
  %v3655 = vpop.f32.mrb[0].mxu0
  %v3656 = vadd.f32 0.0, %v3655
  %v3657 = vpop.f32.mrb[0].mxu0
  %v3658 = vadd.f32 0.0, %v3657
  %v3659 = vpop.f32.mrb[0].mxu0
  %v3660 = vadd.f32 0.0, %v3659
  %3661 = vmatprep.mubr.bf16.mxu0 %v1940
  %3662 = vmatmul.mubr.bf16.gmra.mrb[0].mxu0 %v1939
  %v3663 = vpop.f32.mrb[0].mxu0
  %v3664 = vadd.f32 0.0, %v3663
  %v3665 = vpop.f32.mrb[0].mxu0
  %v3666 = vadd.f32 0.0, %v3665
  %v3667 = vpop.f32.mrb[0].mxu0
  %v3668 = vadd.f32 0.0, %v3667
  %v3669 = vpop.f32.mrb[0].mxu0
  %v3670 = vadd.f32 0.0, %v3669
  %3671 = vdwg.mxu0
  %3672 = vmatprep.subr.bf16.mxu0 %v3096
  %3673 = vmatpush1.bf16.msra.mxu0 %v3095
  %3674 = vmatprep.subr.bf16.mxu0 %v3104
  %3675 = vmatpush1.bf16.msra.mxu0 %v3103
  %3676 = vmatprep.subr.bf16.mxu0 %v3112
  %3677 = vmatpush1.bf16.msra.mxu0 %v3111
  %3678 = vmatprep.subr.bf16.mxu0 %v3120
  %3679 = vmatpush1.bf16.msra.mxu0 %v3119
  %3680 = vmatprep.subr.bf16.mxu0 %v3128
  %3681 = vmatpush1.bf16.msra.mxu0 %v3127
  %3682 = vmatprep.subr.bf16.mxu0 %v3136
  %3683 = vmatpush1.bf16.msra.mxu0 %v3135
  %3684 = vmatprep.subr.bf16.mxu0 %v3144
  %3685 = vmatpush1.bf16.msra.mxu0 %v3143
  %3686 = vmatprep.subr.bf16.mxu0 %v3152
  %3687 = vmatpush1.bf16.msra.mxu0 %v3151
  %3688 = vmatprep.subr.bf16.mxu0 %v3160
  %3689 = vmatpush1.bf16.msra.mxu0 %v3159
  %3690 = vmatprep.subr.bf16.mxu0 %v3168
  %3691 = vmatpush1.bf16.msra.mxu0 %v3167
  %3692 = vmatprep.subr.bf16.mxu0 %v3176
  %3693 = vmatpush1.bf16.msra.mxu0 %v3175
  %3694 = vmatprep.subr.bf16.mxu0 %v3184
  %3695 = vmatpush1.bf16.msra.mxu0 %v3183
  %3696 = vmatprep.subr.bf16.mxu0 %v3192
  %3697 = vmatpush1.bf16.msra.mxu0 %v3191
  %3698 = vmatprep.subr.bf16.mxu0 %v3200
  %3699 = vmatpush1.bf16.msra.mxu0 %v3199
  %3700 = vmatprep.subr.bf16.mxu0 %v3208
  %3701 = vmatpush1.bf16.msra.mxu0 %v3207
  %3702 = vmatprep.subr.bf16.mxu0 %v3216
  %3703 = vmatpush1.bf16.msra.mxu0 %v3215
  %3704 = vmatprep.mubr.bf16.mxu0 %v1882
  %3705 = vmatmul.mubr.bf16.gmra.mrb[0].mxu0 %v1881
  %v3706 = vpop.f32.mrb[0].mxu0
  %v3707 = vadd.f32 %v3514, %v3706
  %v3708 = vpop.f32.mrb[0].mxu0
  %v3709 = vadd.f32 %v3516, %v3708
  %v3710 = vpop.f32.mrb[0].mxu0
  %v3711 = vadd.f32 %v3518, %v3710
  %v3712 = vpop.f32.mrb[0].mxu0
  %v3713 = vadd.f32 %v3520, %v3712
  %3714 = vmatprep.mubr.bf16.mxu0 %v1886
  %3715 = vmatmul.mubr.bf16.gmra.mrb[0].mxu0 %v1885
  %v3716 = vpop.f32.mrb[0].mxu0
  %v3717 = vadd.f32 %v3524, %v3716
  %v3718 = vpop.f32.mrb[0].mxu0
  %v3719 = vadd.f32 %v3526, %v3718
  %v3720 = vpop.f32.mrb[0].mxu0
  %v3721 = vadd.f32 %v3528, %v3720
  %v3722 = vpop.f32.mrb[0].mxu0
  %v3723 = vadd.f32 %v3530, %v3722
  %3724 = vmatprep.mubr.bf16.mxu0 %v1890
  %3725 = vmatmul.mubr.bf16.gmra.mrb[0].mxu0 %v1889
  %v3726 = vpop.f32.mrb[0].mxu0
  %v3727 = vadd.f32 %v3534, %v3726
  %v3728 = vpop.f32.mrb[0].mxu0
  %v3729 = vadd.f32 %v3536, %v3728
  %v3730 = vpop.f32.mrb[0].mxu0
  %v3731 = vadd.f32 %v3538, %v3730
  %v3732 = vpop.f32.mrb[0].mxu0
  %v3733 = vadd.f32 %v3540, %v3732
  %3734 = vmatprep.mubr.bf16.mxu0 %v1894
  %3735 = vmatmul.mubr.bf16.gmra.mrb[0].mxu0 %v1893
  %v3736 = vpop.f32.mrb[0].mxu0
  %v3737 = vadd.f32 %v3544, %v3736
  %v3738 = vpop.f32.mrb[0].mxu0
  %v3739 = vadd.f32 %v3546, %v3738
  %v3740 = vpop.f32.mrb[0].mxu0
  %v3741 = vadd.f32 %v3548, %v3740
  %v3742 = vpop.f32.mrb[0].mxu0
  %v3743 = vadd.f32 %v3550, %v3742
  %3744 = vmatprep.mubr.bf16.mxu0 %v1898
  %3745 = vmatmul.mubr.bf16.gmra.mrb[0].mxu0 %v1897
  %v3746 = vpop.f32.mrb[0].mxu0
  %v3747 = vadd.f32 %v3554, %v3746
  %v3748 = vpop.f32.mrb[0].mxu0
  %v3749 = vadd.f32 %v3556, %v3748
  %v3750 = vpop.f32.mrb[0].mxu0
  %v3751 = vadd.f32 %v3558, %v3750
  %v3752 = vpop.f32.mrb[0].mxu0
  %v3753 = vadd.f32 %v3560, %v3752
  %3754 = vmatprep.mubr.bf16.mxu0 %v1902
  %3755 = vmatmul.mubr.bf16.gmra.mrb[0].mxu0 %v1901
  %v3756 = vpop.f32.mrb[0].mxu0
  %v3757 = vadd.f32 %v3564, %v3756
  %v3758 = vpop.f32.mrb[0].mxu0
  %v3759 = vadd.f32 %v3566, %v3758
  %v3760 = vpop.f32.mrb[0].mxu0
  %v3761 = vadd.f32 %v3568, %v3760
  %v3762 = vpop.f32.mrb[0].mxu0
  %v3763 = vadd.f32 %v3570, %v3762
  %3764 = vmatprep.mubr.bf16.mxu0 %v1906
  %3765 = vmatmul.mubr.bf16.gmra.mrb[0].mxu0 %v1905
  %v3766 = vpop.f32.mrb[0].mxu0
  %v3767 = vadd.f32 %v3574, %v3766
  %v3768 = vpop.f32.mrb[0].mxu0
  %v3769 = vadd.f32 %v3576, %v3768
  %v3770 = vpop.f32.mrb[0].mxu0
  %v3771 = vadd.f32 %v3578, %v3770
  %v3772 = vpop.f32.mrb[0].mxu0
  %v3773 = vadd.f32 %v3580, %v3772
  %3774 = vmatprep.mubr.bf16.mxu0 %v1910
  %3775 = vmatmul.mubr.bf16.gmra.mrb[0].mxu0 %v1909
  %v3776 = vpop.f32.mrb[0].mxu0
  %v3777 = vadd.f32 %v3584, %v3776
  %v3778 = vpop.f32.mrb[0].mxu0
  %v3779 = vadd.f32 %v3586, %v3778
  %v3780 = vpop.f32.mrb[0].mxu0
  %v3781 = vadd.f32 %v3588, %v3780
  %v3782 = vpop.f32.mrb[0].mxu0
  %v3783 = vadd.f32 %v3590, %v3782
  %3784 = vmatprep.mubr.bf16.mxu0 %v1914
  %3785 = vmatmul.mubr.bf16.gmra.mrb[0].mxu0 %v1913
  %v3786 = vpop.f32.mrb[0].mxu0
  %v3787 = vadd.f32 %v3594, %v3786
  %v3788 = vpop.f32.mrb[0].mxu0
  %v3789 = vadd.f32 %v3596, %v3788
  %v3790 = vpop.f32.mrb[0].mxu0
  %v3791 = vadd.f32 %v3598, %v3790
  %v3792 = vpop.f32.mrb[0].mxu0
  %v3793 = vadd.f32 %v3600, %v3792
  %3794 = vmatprep.mubr.bf16.mxu0 %v1918
  %3795 = vmatmul.mubr.bf16.gmra.mrb[0].mxu0 %v1917
  %v3796 = vpop.f32.mrb[0].mxu0
  %v3797 = vadd.f32 %v3604, %v3796
  %v3798 = vpop.f32.mrb[0].mxu0
  %v3799 = vadd.f32 %v3606, %v3798
  %v3800 = vpop.f32.mrb[0].mxu0
  %v3801 = vadd.f32 %v3608, %v3800
  %v3802 = vpop.f32.mrb[0].mxu0
  %v3803 = vadd.f32 %v3610, %v3802
  %3804 = vmatprep.mubr.bf16.mxu0 %v1922
  %3805 = vmatmul.mubr.bf16.gmra.mrb[0].mxu0 %v1921
  %v3806 = vpop.f32.mrb[0].mxu0
  %v3807 = vadd.f32 %v3614, %v3806
  %v3808 = vpop.f32.mrb[0].mxu0
  %v3809 = vadd.f32 %v3616, %v3808
  %v3810 = vpop.f32.mrb[0].mxu0
  %v3811 = vadd.f32 %v3618, %v3810
  %v3812 = vpop.f32.mrb[0].mxu0
  %v3813 = vadd.f32 %v3620, %v3812
  %3814 = vmatprep.mubr.bf16.mxu0 %v1926
  %3815 = vmatmul.mubr.bf16.gmra.mrb[0].mxu0 %v1925
  %v3816 = vpop.f32.mrb[0].mxu0
  %v3817 = vadd.f32 %v3624, %v3816
  %v3818 = vpop.f32.mrb[0].mxu0
  %v3819 = vadd.f32 %v3626, %v3818
  %v3820 = vpop.f32.mrb[0].mxu0
  %v3821 = vadd.f32 %v3628, %v3820
  %v3822 = vpop.f32.mrb[0].mxu0
  %v3823 = vadd.f32 %v3630, %v3822
  %3824 = vmatprep.mubr.bf16.mxu0 %v1930
  %3825 = vmatmul.mubr.bf16.gmra.mrb[0].mxu0 %v1929
  %v3826 = vpop.f32.mrb[0].mxu0
  %v3827 = vadd.f32 %v3634, %v3826
  %v3828 = vpop.f32.mrb[0].mxu0
  %v3829 = vadd.f32 %v3636, %v3828
  %v3830 = vpop.f32.mrb[0].mxu0
  %v3831 = vadd.f32 %v3638, %v3830
  %v3832 = vpop.f32.mrb[0].mxu0
  %v3833 = vadd.f32 %v3640, %v3832
  %3834 = vmatprep.mubr.bf16.mxu0 %v1934
  %3835 = vmatmul.mubr.bf16.gmra.mrb[0].mxu0 %v1933
  %v3836 = vpop.f32.mrb[0].mxu0
  %v3837 = vadd.f32 %v3644, %v3836
  %v3838 = vpop.f32.mrb[0].mxu0
  %v3839 = vadd.f32 %v3646, %v3838
  %v3840 = vpop.f32.mrb[0].mxu0
  %v3841 = vadd.f32 %v3648, %v3840
  %v3842 = vpop.f32.mrb[0].mxu0
  %v3843 = vadd.f32 %v3650, %v3842
  %3844 = vmatprep.mubr.bf16.mxu0 %v1938
  %3845 = vmatmul.mubr.bf16.gmra.mrb[0].mxu0 %v1937
  %v3846 = vpop.f32.mrb[0].mxu0
  %v3847 = vadd.f32 %v3654, %v3846
  %v3848 = vpop.f32.mrb[0].mxu0
  %v3849 = vadd.f32 %v3656, %v3848
  %v3850 = vpop.f32.mrb[0].mxu0
  %v3851 = vadd.f32 %v3658, %v3850
  %v3852 = vpop.f32.mrb[0].mxu0
  %v3853 = vadd.f32 %v3660, %v3852
  %3854 = vmatprep.mubr.bf16.mxu0 %v1942
  %3855 = vmatmul.mubr.bf16.gmra.mrb[0].mxu0 %v1941
  %v3856 = vpop.f32.mrb[0].mxu0
  %v3857 = vadd.f32 %v3664, %v3856
  %v3858 = vpop.f32.mrb[0].mxu0
  %v3859 = vadd.f32 %v3666, %v3858
  %v3860 = vpop.f32.mrb[0].mxu0
  %v3861 = vadd.f32 %v3668, %v3860
  %v3862 = vpop.f32.mrb[0].mxu0
  %v3863 = vadd.f32 %v3670, %v3862
  %3864 = vdwg.mxu0
  %3865 = vmatprep.subr.bf16.mxu0 %v2970
  %3866 = vmatpush1.bf16.msra.mxu0 %v2969
  %3867 = vmatprep.subr.bf16.mxu0 %v2978
  %3868 = vmatpush1.bf16.msra.mxu0 %v2977
  %3869 = vmatprep.subr.bf16.mxu0 %v2986
  %3870 = vmatpush1.bf16.msra.mxu0 %v2985
  %3871 = vmatprep.subr.bf16.mxu0 %v2994
  %3872 = vmatpush1.bf16.msra.mxu0 %v2993
  %3873 = vmatprep.subr.bf16.mxu0 %v3002
  %3874 = vmatpush1.bf16.msra.mxu0 %v3001
  %3875 = vmatprep.subr.bf16.mxu0 %v3010
  %3876 = vmatpush1.bf16.msra.mxu0 %v3009
  %3877 = vmatprep.subr.bf16.mxu0 %v3018
  %3878 = vmatpush1.bf16.msra.mxu0 %v3017
  %3879 = vmatprep.subr.bf16.mxu0 %v3026
  %3880 = vmatpush1.bf16.msra.mxu0 %v3025
  %3881 = vmatprep.subr.bf16.mxu0 %v3034
  %3882 = vmatpush1.bf16.msra.mxu0 %v3033
  %3883 = vmatprep.subr.bf16.mxu0 %v3042
  %3884 = vmatpush1.bf16.msra.mxu0 %v3041
  %3885 = vmatprep.subr.bf16.mxu0 %v3050
  %3886 = vmatpush1.bf16.msra.mxu0 %v3049
  %3887 = vmatprep.subr.bf16.mxu0 %v3058
  %3888 = vmatpush1.bf16.msra.mxu0 %v3057
  %3889 = vmatprep.subr.bf16.mxu0 %v3066
  %3890 = vmatpush1.bf16.msra.mxu0 %v3065
  %3891 = vmatprep.subr.bf16.mxu0 %v3074
  %3892 = vmatpush1.bf16.msra.mxu0 %v3073
  %3893 = vmatprep.subr.bf16.mxu0 %v3082
  %3894 = vmatpush1.bf16.msra.mxu0 %v3081
  %3895 = vmatprep.subr.bf16.mxu0 %v3090
  %3896 = vmatpush1.bf16.msra.mxu0 %v3089
  %3897 = vmatprep.mubr.bf16.mxu0 %v1880
  %3898 = vmatmul.mubr.bf16.gmra.mrb[0].mxu0 %v1879
  %v3899 = vpop.f32.mrb[0].mxu0
  %v3900 = vadd.f32 0.0, %v3899
  %v3901 = vpop.f32.mrb[0].mxu0
  %v3902 = vadd.f32 0.0, %v3901
  %v3903 = vpop.f32.mrb[0].mxu0
  %v3904 = vadd.f32 0.0, %v3903
  %v3905 = vpop.f32.mrb[0].mxu0
  %v3906 = vadd.f32 0.0, %v3905
  %3907 = vmatprep.mubr.bf16.mxu0 %v1884
  %3908 = vmatmul.mubr.bf16.gmra.mrb[0].mxu0 %v1883
  %v3909 = vpop.f32.mrb[0].mxu0
  %v3910 = vadd.f32 0.0, %v3909
  %v3911 = vpop.f32.mrb[0].mxu0
  %v3912 = vadd.f32 0.0, %v3911
  %v3913 = vpop.f32.mrb[0].mxu0
  %v3914 = vadd.f32 0.0, %v3913
  %v3915 = vpop.f32.mrb[0].mxu0
  %v3916 = vadd.f32 0.0, %v3915
  %3917 = vmatprep.mubr.bf16.mxu0 %v1888
  %3918 = vmatmul.mubr.bf16.gmra.mrb[0].mxu0 %v1887
  %v3919 = vpop.f32.mrb[0].mxu0
  %v3920 = vadd.f32 0.0, %v3919
  %v3921 = vpop.f32.mrb[0].mxu0
  %v3922 = vadd.f32 0.0, %v3921
  %v3923 = vpop.f32.mrb[0].mxu0
  %v3924 = vadd.f32 0.0, %v3923
  %v3925 = vpop.f32.mrb[0].mxu0
  %v3926 = vadd.f32 0.0, %v3925
  %3927 = vmatprep.mubr.bf16.mxu0 %v1892
  %3928 = vmatmul.mubr.bf16.gmra.mrb[0].mxu0 %v1891
  %v3929 = vpop.f32.mrb[0].mxu0
  %v3930 = vadd.f32 0.0, %v3929
  %v3931 = vpop.f32.mrb[0].mxu0
  %v3932 = vadd.f32 0.0, %v3931
  %v3933 = vpop.f32.mrb[0].mxu0
  %v3934 = vadd.f32 0.0, %v3933
  %v3935 = vpop.f32.mrb[0].mxu0
  %v3936 = vadd.f32 0.0, %v3935
  %3937 = vmatprep.mubr.bf16.mxu0 %v1896
  %3938 = vmatmul.mubr.bf16.gmra.mrb[0].mxu0 %v1895
  %v3939 = vpop.f32.mrb[0].mxu0
  %v3940 = vadd.f32 0.0, %v3939
  %v3941 = vpop.f32.mrb[0].mxu0
  %v3942 = vadd.f32 0.0, %v3941
  %v3943 = vpop.f32.mrb[0].mxu0
  %v3944 = vadd.f32 0.0, %v3943
  %v3945 = vpop.f32.mrb[0].mxu0
  %v3946 = vadd.f32 0.0, %v3945
  %3947 = vmatprep.mubr.bf16.mxu0 %v1900
  %3948 = vmatmul.mubr.bf16.gmra.mrb[0].mxu0 %v1899
  %v3949 = vpop.f32.mrb[0].mxu0
  %v3950 = vadd.f32 0.0, %v3949
  %v3951 = vpop.f32.mrb[0].mxu0
  %v3952 = vadd.f32 0.0, %v3951
  %v3953 = vpop.f32.mrb[0].mxu0
  %v3954 = vadd.f32 0.0, %v3953
  %v3955 = vpop.f32.mrb[0].mxu0
  %v3956 = vadd.f32 0.0, %v3955
  %3957 = vmatprep.mubr.bf16.mxu0 %v1904
  %3958 = vmatmul.mubr.bf16.gmra.mrb[0].mxu0 %v1903
  %v3959 = vpop.f32.mrb[0].mxu0
  %v3960 = vadd.f32 0.0, %v3959
  %v3961 = vpop.f32.mrb[0].mxu0
  %v3962 = vadd.f32 0.0, %v3961
  %v3963 = vpop.f32.mrb[0].mxu0
  %v3964 = vadd.f32 0.0, %v3963
  %v3965 = vpop.f32.mrb[0].mxu0
  %v3966 = vadd.f32 0.0, %v3965
  %3967 = vmatprep.mubr.bf16.mxu0 %v1908
  %3968 = vmatmul.mubr.bf16.gmra.mrb[0].mxu0 %v1907
  %v3969 = vpop.f32.mrb[0].mxu0
  %v3970 = vadd.f32 0.0, %v3969
  %v3971 = vpop.f32.mrb[0].mxu0
  %v3972 = vadd.f32 0.0, %v3971
  %v3973 = vpop.f32.mrb[0].mxu0
  %v3974 = vadd.f32 0.0, %v3973
  %v3975 = vpop.f32.mrb[0].mxu0
  %v3976 = vadd.f32 0.0, %v3975
  %3977 = vmatprep.mubr.bf16.mxu0 %v1912
  %3978 = vmatmul.mubr.bf16.gmra.mrb[0].mxu0 %v1911
  %v3979 = vpop.f32.mrb[0].mxu0
  %v3980 = vadd.f32 0.0, %v3979
  %v3981 = vpop.f32.mrb[0].mxu0
  %v3982 = vadd.f32 0.0, %v3981
  %v3983 = vpop.f32.mrb[0].mxu0
  %v3984 = vadd.f32 0.0, %v3983
  %v3985 = vpop.f32.mrb[0].mxu0
  %v3986 = vadd.f32 0.0, %v3985
  %3987 = vmatprep.mubr.bf16.mxu0 %v1916
  %3988 = vmatmul.mubr.bf16.gmra.mrb[0].mxu0 %v1915
  %v3989 = vpop.f32.mrb[0].mxu0
  %v3990 = vadd.f32 0.0, %v3989
  %v3991 = vpop.f32.mrb[0].mxu0
  %v3992 = vadd.f32 0.0, %v3991
  %v3993 = vpop.f32.mrb[0].mxu0
  %v3994 = vadd.f32 0.0, %v3993
  %v3995 = vpop.f32.mrb[0].mxu0
  %v3996 = vadd.f32 0.0, %v3995
  %3997 = vmatprep.mubr.bf16.mxu0 %v1920
  %3998 = vmatmul.mubr.bf16.gmra.mrb[0].mxu0 %v1919
  %v3999 = vpop.f32.mrb[0].mxu0
  %v4000 = vadd.f32 0.0, %v3999
  %v4001 = vpop.f32.mrb[0].mxu0
  %v4002 = vadd.f32 0.0, %v4001
  %v4003 = vpop.f32.mrb[0].mxu0
  %v4004 = vadd.f32 0.0, %v4003
  %v4005 = vpop.f32.mrb[0].mxu0
  %v4006 = vadd.f32 0.0, %v4005
  %4007 = vmatprep.mubr.bf16.mxu0 %v1924
  %4008 = vmatmul.mubr.bf16.gmra.mrb[0].mxu0 %v1923
  %v4009 = vpop.f32.mrb[0].mxu0
  %v4010 = vadd.f32 0.0, %v4009
  %v4011 = vpop.f32.mrb[0].mxu0
  %v4012 = vadd.f32 0.0, %v4011
  %v4013 = vpop.f32.mrb[0].mxu0
  %v4014 = vadd.f32 0.0, %v4013
  %v4015 = vpop.f32.mrb[0].mxu0
  %v4016 = vadd.f32 0.0, %v4015
  %4017 = vmatprep.mubr.bf16.mxu0 %v1928
  %4018 = vmatmul.mubr.bf16.gmra.mrb[0].mxu0 %v1927
  %v4019 = vpop.f32.mrb[0].mxu0
  %v4020 = vadd.f32 0.0, %v4019
  %v4021 = vpop.f32.mrb[0].mxu0
  %v4022 = vadd.f32 0.0, %v4021
  %v4023 = vpop.f32.mrb[0].mxu0
  %v4024 = vadd.f32 0.0, %v4023
  %v4025 = vpop.f32.mrb[0].mxu0
  %v4026 = vadd.f32 0.0, %v4025
  %4027 = vmatprep.mubr.bf16.mxu0 %v1932
  %4028 = vmatmul.mubr.bf16.gmra.mrb[0].mxu0 %v1931
  %v4029 = vpop.f32.mrb[0].mxu0
  %v4030 = vadd.f32 0.0, %v4029
  %v4031 = vpop.f32.mrb[0].mxu0
  %v4032 = vadd.f32 0.0, %v4031
  %v4033 = vpop.f32.mrb[0].mxu0
  %v4034 = vadd.f32 0.0, %v4033
  %v4035 = vpop.f32.mrb[0].mxu0
  %v4036 = vadd.f32 0.0, %v4035
  %4037 = vmatprep.mubr.bf16.mxu0 %v1936
  %4038 = vmatmul.mubr.bf16.gmra.mrb[0].mxu0 %v1935
  %v4039 = vpop.f32.mrb[0].mxu0
  %v4040 = vadd.f32 0.0, %v4039
  %v4041 = vpop.f32.mrb[0].mxu0
  %v4042 = vadd.f32 0.0, %v4041
  %v4043 = vpop.f32.mrb[0].mxu0
  %v4044 = vadd.f32 0.0, %v4043
  %v4045 = vpop.f32.mrb[0].mxu0
  %v4046 = vadd.f32 0.0, %v4045
  %4047 = vmatprep.mubr.bf16.mxu0 %v1940
  %4048 = vmatmul.mubr.bf16.gmra.mrb[0].mxu0 %v1939
  %v4049 = vpop.f32.mrb[0].mxu0
  %v4050 = vadd.f32 0.0, %v4049
  %v4051 = vpop.f32.mrb[0].mxu0
  %v4052 = vadd.f32 0.0, %v4051
  %v4053 = vpop.f32.mrb[0].mxu0
  %v4054 = vadd.f32 0.0, %v4053
  %v4055 = vpop.f32.mrb[0].mxu0
  %v4056 = vadd.f32 0.0, %v4055
  %4057 = vdwg.mxu0
  %4058 = vmatprep.subr.bf16.mxu0 %v3098
  %4059 = vmatpush1.bf16.msra.mxu0 %v3097
  %4060 = vmatprep.subr.bf16.mxu0 %v3106
  %4061 = vmatpush1.bf16.msra.mxu0 %v3105
  %4062 = vmatprep.subr.bf16.mxu0 %v3114
  %4063 = vmatpush1.bf16.msra.mxu0 %v3113
  %4064 = vmatprep.subr.bf16.mxu0 %v3122
  %4065 = vmatpush1.bf16.msra.mxu0 %v3121
  %4066 = vmatprep.subr.bf16.mxu0 %v3130
  %4067 = vmatpush1.bf16.msra.mxu0 %v3129
  %4068 = vmatprep.subr.bf16.mxu0 %v3138
  %4069 = vmatpush1.bf16.msra.mxu0 %v3137
  %4070 = vmatprep.subr.bf16.mxu0 %v3146
  %4071 = vmatpush1.bf16.msra.mxu0 %v3145
  %4072 = vmatprep.subr.bf16.mxu0 %v3154
  %4073 = vmatpush1.bf16.msra.mxu0 %v3153
  %4074 = vmatprep.subr.bf16.mxu0 %v3162
  %4075 = vmatpush1.bf16.msra.mxu0 %v3161
  %4076 = vmatprep.subr.bf16.mxu0 %v3170
  %4077 = vmatpush1.bf16.msra.mxu0 %v3169
  %4078 = vmatprep.subr.bf16.mxu0 %v3178
  %4079 = vmatpush1.bf16.msra.mxu0 %v3177
  %4080 = vmatprep.subr.bf16.mxu0 %v3186
  %4081 = vmatpush1.bf16.msra.mxu0 %v3185
  %4082 = vmatprep.subr.bf16.mxu0 %v3194
  %4083 = vmatpush1.bf16.msra.mxu0 %v3193
  %4084 = vmatprep.subr.bf16.mxu0 %v3202
  %4085 = vmatpush1.bf16.msra.mxu0 %v3201
  %4086 = vmatprep.subr.bf16.mxu0 %v3210
  %4087 = vmatpush1.bf16.msra.mxu0 %v3209
  %4088 = vmatprep.subr.bf16.mxu0 %v3218
  %4089 = vmatpush1.bf16.msra.mxu0 %v3217
  %4090 = vmatprep.mubr.bf16.mxu0 %v1882
  %4091 = vmatmul.mubr.bf16.gmra.mrb[0].mxu0 %v1881
  %v4092 = vpop.f32.mrb[0].mxu0
  %v4093 = vadd.f32 %v3900, %v4092
  %v4094 = vpop.f32.mrb[0].mxu0
  %v4095 = vadd.f32 %v3902, %v4094
  %v4096 = vpop.f32.mrb[0].mxu0
  %v4097 = vadd.f32 %v3904, %v4096
  %v4098 = vpop.f32.mrb[0].mxu0
  %v4099 = vadd.f32 %v3906, %v4098
  %4100 = vmatprep.mubr.bf16.mxu0 %v1886
  %4101 = vmatmul.mubr.bf16.gmra.mrb[0].mxu0 %v1885
  %v4102 = vpop.f32.mrb[0].mxu0
  %v4103 = vadd.f32 %v3910, %v4102
  %v4104 = vpop.f32.mrb[0].mxu0
  %v4105 = vadd.f32 %v3912, %v4104
  %v4106 = vpop.f32.mrb[0].mxu0
  %v4107 = vadd.f32 %v3914, %v4106
  %v4108 = vpop.f32.mrb[0].mxu0
  %v4109 = vadd.f32 %v3916, %v4108
  %4110 = vmatprep.mubr.bf16.mxu0 %v1890
  %4111 = vmatmul.mubr.bf16.gmra.mrb[0].mxu0 %v1889
  %v4112 = vpop.f32.mrb[0].mxu0
  %v4113 = vadd.f32 %v3920, %v4112
  %v4114 = vpop.f32.mrb[0].mxu0
  %v4115 = vadd.f32 %v3922, %v4114
  %v4116 = vpop.f32.mrb[0].mxu0
  %v4117 = vadd.f32 %v3924, %v4116
  %v4118 = vpop.f32.mrb[0].mxu0
  %v4119 = vadd.f32 %v3926, %v4118
  %4120 = vmatprep.mubr.bf16.mxu0 %v1894
  %4121 = vmatmul.mubr.bf16.gmra.mrb[0].mxu0 %v1893
  %v4122 = vpop.f32.mrb[0].mxu0
  %v4123 = vadd.f32 %v3930, %v4122
  %v4124 = vpop.f32.mrb[0].mxu0
  %v4125 = vadd.f32 %v3932, %v4124
  %v4126 = vpop.f32.mrb[0].mxu0
  %v4127 = vadd.f32 %v3934, %v4126
  %v4128 = vpop.f32.mrb[0].mxu0
  %v4129 = vadd.f32 %v3936, %v4128
  %4130 = vmatprep.mubr.bf16.mxu0 %v1898
  %4131 = vmatmul.mubr.bf16.gmra.mrb[0].mxu0 %v1897
  %v4132 = vpop.f32.mrb[0].mxu0
  %v4133 = vadd.f32 %v3940, %v4132
  %v4134 = vpop.f32.mrb[0].mxu0
  %v4135 = vadd.f32 %v3942, %v4134
  %v4136 = vpop.f32.mrb[0].mxu0
  %v4137 = vadd.f32 %v3944, %v4136
  %v4138 = vpop.f32.mrb[0].mxu0
  %v4139 = vadd.f32 %v3946, %v4138
  %4140 = vmatprep.mubr.bf16.mxu0 %v1902
  %4141 = vmatmul.mubr.bf16.gmra.mrb[0].mxu0 %v1901
  %v4142 = vpop.f32.mrb[0].mxu0
  %v4143 = vadd.f32 %v3950, %v4142
  %v4144 = vpop.f32.mrb[0].mxu0
  %v4145 = vadd.f32 %v3952, %v4144
  %v4146 = vpop.f32.mrb[0].mxu0
  %v4147 = vadd.f32 %v3954, %v4146
  %v4148 = vpop.f32.mrb[0].mxu0
  %v4149 = vadd.f32 %v3956, %v4148
  %4150 = vmatprep.mubr.bf16.mxu0 %v1906
  %4151 = vmatmul.mubr.bf16.gmra.mrb[0].mxu0 %v1905
  %v4152 = vpop.f32.mrb[0].mxu0
  %v4153 = vadd.f32 %v3960, %v4152
  %v4154 = vpop.f32.mrb[0].mxu0
  %v4155 = vadd.f32 %v3962, %v4154
  %v4156 = vpop.f32.mrb[0].mxu0
  %v4157 = vadd.f32 %v3964, %v4156
  %v4158 = vpop.f32.mrb[0].mxu0
  %v4159 = vadd.f32 %v3966, %v4158
  %4160 = vmatprep.mubr.bf16.mxu0 %v1910
  %4161 = vmatmul.mubr.bf16.gmra.mrb[0].mxu0 %v1909
  %v4162 = vpop.f32.mrb[0].mxu0
  %v4163 = vadd.f32 %v3970, %v4162
  %v4164 = vpop.f32.mrb[0].mxu0
  %v4165 = vadd.f32 %v3972, %v4164
  %v4166 = vpop.f32.mrb[0].mxu0
  %v4167 = vadd.f32 %v3974, %v4166
  %v4168 = vpop.f32.mrb[0].mxu0
  %v4169 = vadd.f32 %v3976, %v4168
  %4170 = vmatprep.mubr.bf16.mxu0 %v1914
  %4171 = vmatmul.mubr.bf16.gmra.mrb[0].mxu0 %v1913
  %v4172 = vpop.f32.mrb[0].mxu0
  %v4173 = vadd.f32 %v3980, %v4172
  %v4174 = vpop.f32.mrb[0].mxu0
  %v4175 = vadd.f32 %v3982, %v4174
  %v4176 = vpop.f32.mrb[0].mxu0
  %v4177 = vadd.f32 %v3984, %v4176
  %v4178 = vpop.f32.mrb[0].mxu0
  %v4179 = vadd.f32 %v3986, %v4178
  %4180 = vmatprep.mubr.bf16.mxu0 %v1918
  %4181 = vmatmul.mubr.bf16.gmra.mrb[0].mxu0 %v1917
  %v4182 = vpop.f32.mrb[0].mxu0
  %v4183 = vadd.f32 %v3990, %v4182
  %v4184 = vpop.f32.mrb[0].mxu0
  %v4185 = vadd.f32 %v3992, %v4184
  %v4186 = vpop.f32.mrb[0].mxu0
  %v4187 = vadd.f32 %v3994, %v4186
  %v4188 = vpop.f32.mrb[0].mxu0
  %v4189 = vadd.f32 %v3996, %v4188
  %4190 = vmatprep.mubr.bf16.mxu0 %v1922
  %4191 = vmatmul.mubr.bf16.gmra.mrb[0].mxu0 %v1921
  %v4192 = vpop.f32.mrb[0].mxu0
  %v4193 = vadd.f32 %v4000, %v4192
  %v4194 = vpop.f32.mrb[0].mxu0
  %v4195 = vadd.f32 %v4002, %v4194
  %v4196 = vpop.f32.mrb[0].mxu0
  %v4197 = vadd.f32 %v4004, %v4196
  %v4198 = vpop.f32.mrb[0].mxu0
  %v4199 = vadd.f32 %v4006, %v4198
  %4200 = vmatprep.mubr.bf16.mxu0 %v1926
  %4201 = vmatmul.mubr.bf16.gmra.mrb[0].mxu0 %v1925
  %v4202 = vpop.f32.mrb[0].mxu0
  %v4203 = vadd.f32 %v4010, %v4202
  %v4204 = vpop.f32.mrb[0].mxu0
  %v4205 = vadd.f32 %v4012, %v4204
  %v4206 = vpop.f32.mrb[0].mxu0
  %v4207 = vadd.f32 %v4014, %v4206
  %v4208 = vpop.f32.mrb[0].mxu0
  %v4209 = vadd.f32 %v4016, %v4208
  %4210 = vmatprep.mubr.bf16.mxu0 %v1930
  %4211 = vmatmul.mubr.bf16.gmra.mrb[0].mxu0 %v1929
  %v4212 = vpop.f32.mrb[0].mxu0
  %v4213 = vadd.f32 %v4020, %v4212
  %v4214 = vpop.f32.mrb[0].mxu0
  %v4215 = vadd.f32 %v4022, %v4214
  %v4216 = vpop.f32.mrb[0].mxu0
  %v4217 = vadd.f32 %v4024, %v4216
  %v4218 = vpop.f32.mrb[0].mxu0
  %v4219 = vadd.f32 %v4026, %v4218
  %4220 = vmatprep.mubr.bf16.mxu0 %v1934
  %4221 = vmatmul.mubr.bf16.gmra.mrb[0].mxu0 %v1933
  %v4222 = vpop.f32.mrb[0].mxu0
  %v4223 = vadd.f32 %v4030, %v4222
  %v4224 = vpop.f32.mrb[0].mxu0
  %v4225 = vadd.f32 %v4032, %v4224
  %v4226 = vpop.f32.mrb[0].mxu0
  %v4227 = vadd.f32 %v4034, %v4226
  %v4228 = vpop.f32.mrb[0].mxu0
  %v4229 = vadd.f32 %v4036, %v4228
  %4230 = vmatprep.mubr.bf16.mxu0 %v1938
  %4231 = vmatmul.mubr.bf16.gmra.mrb[0].mxu0 %v1937
  %v4232 = vpop.f32.mrb[0].mxu0
  %v4233 = vadd.f32 %v4040, %v4232
  %v4234 = vpop.f32.mrb[0].mxu0
  %v4235 = vadd.f32 %v4042, %v4234
  %v4236 = vpop.f32.mrb[0].mxu0
  %v4237 = vadd.f32 %v4044, %v4236
  %v4238 = vpop.f32.mrb[0].mxu0
  %v4239 = vadd.f32 %v4046, %v4238
  %4240 = vmatprep.mubr.bf16.mxu0 %v1942
  %4241 = vmatmul.mubr.bf16.gmra.mrb[0].mxu0 %v1941
  %v4242 = vpop.f32.mrb[0].mxu0
  %v4243 = vadd.f32 %v4050, %v4242
  %v4244 = vpop.f32.mrb[0].mxu0
  %v4245 = vadd.f32 %v4052, %v4244
  %v4246 = vpop.f32.mrb[0].mxu0
  %v4247 = vadd.f32 %v4054, %v4246
  %v4248 = vpop.f32.mrb[0].mxu0
  %v4249 = vadd.f32 %v4056, %v4248
  %4250 = vdwg.mxu0
  %4251 = vmatprep.subr.bf16.mxu0 %v2972
  %4252 = vmatpush1.bf16.msra.mxu0 %v2971
  %4253 = vmatprep.subr.bf16.mxu0 %v2980
  %4254 = vmatpush1.bf16.msra.mxu0 %v2979
  %4255 = vmatprep.subr.bf16.mxu0 %v2988
  %4256 = vmatpush1.bf16.msra.mxu0 %v2987
  %4257 = vmatprep.subr.bf16.mxu0 %v2996
  %4258 = vmatpush1.bf16.msra.mxu0 %v2995
  %4259 = vmatprep.subr.bf16.mxu0 %v3004
  %4260 = vmatpush1.bf16.msra.mxu0 %v3003
  %4261 = vmatprep.subr.bf16.mxu0 %v3012
  %4262 = vmatpush1.bf16.msra.mxu0 %v3011
  %4263 = vmatprep.subr.bf16.mxu0 %v3020
  %4264 = vmatpush1.bf16.msra.mxu0 %v3019
  %4265 = vmatprep.subr.bf16.mxu0 %v3028
  %4266 = vmatpush1.bf16.msra.mxu0 %v3027
  %4267 = vmatprep.subr.bf16.mxu0 %v3036
  %4268 = vmatpush1.bf16.msra.mxu0 %v3035
  %4269 = vmatprep.subr.bf16.mxu0 %v3044
  %4270 = vmatpush1.bf16.msra.mxu0 %v3043
  %4271 = vmatprep.subr.bf16.mxu0 %v3052
  %4272 = vmatpush1.bf16.msra.mxu0 %v3051
  %4273 = vmatprep.subr.bf16.mxu0 %v3060
  %4274 = vmatpush1.bf16.msra.mxu0 %v3059
  %4275 = vmatprep.subr.bf16.mxu0 %v3068
  %4276 = vmatpush1.bf16.msra.mxu0 %v3067
  %4277 = vmatprep.subr.bf16.mxu0 %v3076
  %4278 = vmatpush1.bf16.msra.mxu0 %v3075
  %4279 = vmatprep.subr.bf16.mxu0 %v3084
  %4280 = vmatpush1.bf16.msra.mxu0 %v3083
  %4281 = vmatprep.subr.bf16.mxu0 %v3092
  %4282 = vmatpush1.bf16.msra.mxu0 %v3091
  %4283 = vmatprep.mubr.bf16.mxu0 %v1880
  %4284 = vmatmul.mubr.bf16.gmra.mrb[0].mxu0 %v1879
  %v4285 = vpop.f32.mrb[0].mxu0
  %v4286 = vadd.f32 0.0, %v4285
  %v4287 = vpop.f32.mrb[0].mxu0
  %v4288 = vadd.f32 0.0, %v4287
  %v4289 = vpop.f32.mrb[0].mxu0
  %v4290 = vadd.f32 0.0, %v4289
  %v4291 = vpop.f32.mrb[0].mxu0
  %v4292 = vadd.f32 0.0, %v4291
  %4293 = vmatprep.mubr.bf16.mxu0 %v1884
  %4294 = vmatmul.mubr.bf16.gmra.mrb[0].mxu0 %v1883
  %v4295 = vpop.f32.mrb[0].mxu0
  %v4296 = vadd.f32 0.0, %v4295
  %v4297 = vpop.f32.mrb[0].mxu0
  %v4298 = vadd.f32 0.0, %v4297
  %v4299 = vpop.f32.mrb[0].mxu0
  %v4300 = vadd.f32 0.0, %v4299
  %v4301 = vpop.f32.mrb[0].mxu0
  %v4302 = vadd.f32 0.0, %v4301
  %4303 = vmatprep.mubr.bf16.mxu0 %v1888
  %4304 = vmatmul.mubr.bf16.gmra.mrb[0].mxu0 %v1887
  %v4305 = vpop.f32.mrb[0].mxu0
  %v4306 = vadd.f32 0.0, %v4305
  %v4307 = vpop.f32.mrb[0].mxu0
  %v4308 = vadd.f32 0.0, %v4307
  %v4309 = vpop.f32.mrb[0].mxu0
  %v4310 = vadd.f32 0.0, %v4309
  %v4311 = vpop.f32.mrb[0].mxu0
  %v4312 = vadd.f32 0.0, %v4311
  %4313 = vmatprep.mubr.bf16.mxu0 %v1892
  %4314 = vmatmul.mubr.bf16.gmra.mrb[0].mxu0 %v1891
  %v4315 = vpop.f32.mrb[0].mxu0
  %v4316 = vadd.f32 0.0, %v4315
  %v4317 = vpop.f32.mrb[0].mxu0
  %v4318 = vadd.f32 0.0, %v4317
  %v4319 = vpop.f32.mrb[0].mxu0
  %v4320 = vadd.f32 0.0, %v4319
  %v4321 = vpop.f32.mrb[0].mxu0
  %v4322 = vadd.f32 0.0, %v4321
  %4323 = vmatprep.mubr.bf16.mxu0 %v1896
  %4324 = vmatmul.mubr.bf16.gmra.mrb[0].mxu0 %v1895
  %v4325 = vpop.f32.mrb[0].mxu0
  %v4326 = vadd.f32 0.0, %v4325
  %v4327 = vpop.f32.mrb[0].mxu0
  %v4328 = vadd.f32 0.0, %v4327
  %v4329 = vpop.f32.mrb[0].mxu0
  %v4330 = vadd.f32 0.0, %v4329
  %v4331 = vpop.f32.mrb[0].mxu0
  %v4332 = vadd.f32 0.0, %v4331
  %4333 = vmatprep.mubr.bf16.mxu0 %v1900
  %4334 = vmatmul.mubr.bf16.gmra.mrb[0].mxu0 %v1899
  %v4335 = vpop.f32.mrb[0].mxu0
  %v4336 = vadd.f32 0.0, %v4335
  %v4337 = vpop.f32.mrb[0].mxu0
  %v4338 = vadd.f32 0.0, %v4337
  %v4339 = vpop.f32.mrb[0].mxu0
  %v4340 = vadd.f32 0.0, %v4339
  %v4341 = vpop.f32.mrb[0].mxu0
  %v4342 = vadd.f32 0.0, %v4341
  %4343 = vmatprep.mubr.bf16.mxu0 %v1904
  %4344 = vmatmul.mubr.bf16.gmra.mrb[0].mxu0 %v1903
  %v4345 = vpop.f32.mrb[0].mxu0
  %v4346 = vadd.f32 0.0, %v4345
  %v4347 = vpop.f32.mrb[0].mxu0
  %v4348 = vadd.f32 0.0, %v4347
  %v4349 = vpop.f32.mrb[0].mxu0
  %v4350 = vadd.f32 0.0, %v4349
  %v4351 = vpop.f32.mrb[0].mxu0
  %v4352 = vadd.f32 0.0, %v4351
  %4353 = vmatprep.mubr.bf16.mxu0 %v1908
  %4354 = vmatmul.mubr.bf16.gmra.mrb[0].mxu0 %v1907
  %v4355 = vpop.f32.mrb[0].mxu0
  %v4356 = vadd.f32 0.0, %v4355
  %v4357 = vpop.f32.mrb[0].mxu0
  %v4358 = vadd.f32 0.0, %v4357
  %v4359 = vpop.f32.mrb[0].mxu0
  %v4360 = vadd.f32 0.0, %v4359
  %v4361 = vpop.f32.mrb[0].mxu0
  %v4362 = vadd.f32 0.0, %v4361
  %4363 = vmatprep.mubr.bf16.mxu0 %v1912
  %4364 = vmatmul.mubr.bf16.gmra.mrb[0].mxu0 %v1911
  %v4365 = vpop.f32.mrb[0].mxu0
  %v4366 = vadd.f32 0.0, %v4365
  %v4367 = vpop.f32.mrb[0].mxu0
  %v4368 = vadd.f32 0.0, %v4367
  %v4369 = vpop.f32.mrb[0].mxu0
  %v4370 = vadd.f32 0.0, %v4369
  %v4371 = vpop.f32.mrb[0].mxu0
  %v4372 = vadd.f32 0.0, %v4371
  %4373 = vmatprep.mubr.bf16.mxu0 %v1916
  %4374 = vmatmul.mubr.bf16.gmra.mrb[0].mxu0 %v1915
  %v4375 = vpop.f32.mrb[0].mxu0
  %v4376 = vadd.f32 0.0, %v4375
  %v4377 = vpop.f32.mrb[0].mxu0
  %v4378 = vadd.f32 0.0, %v4377
  %v4379 = vpop.f32.mrb[0].mxu0
  %v4380 = vadd.f32 0.0, %v4379
  %v4381 = vpop.f32.mrb[0].mxu0
  %v4382 = vadd.f32 0.0, %v4381
  %4383 = vmatprep.mubr.bf16.mxu0 %v1920
  %4384 = vmatmul.mubr.bf16.gmra.mrb[0].mxu0 %v1919
  %v4385 = vpop.f32.mrb[0].mxu0
  %v4386 = vadd.f32 0.0, %v4385
  %v4387 = vpop.f32.mrb[0].mxu0
  %v4388 = vadd.f32 0.0, %v4387
  %v4389 = vpop.f32.mrb[0].mxu0
  %v4390 = vadd.f32 0.0, %v4389
  %v4391 = vpop.f32.mrb[0].mxu0
  %v4392 = vadd.f32 0.0, %v4391
  %4393 = vmatprep.mubr.bf16.mxu0 %v1924
  %4394 = vmatmul.mubr.bf16.gmra.mrb[0].mxu0 %v1923
  %v4395 = vpop.f32.mrb[0].mxu0
  %v4396 = vadd.f32 0.0, %v4395
  %v4397 = vpop.f32.mrb[0].mxu0
  %v4398 = vadd.f32 0.0, %v4397
  %v4399 = vpop.f32.mrb[0].mxu0
  %v4400 = vadd.f32 0.0, %v4399
  %v4401 = vpop.f32.mrb[0].mxu0
  %v4402 = vadd.f32 0.0, %v4401
  %4403 = vmatprep.mubr.bf16.mxu0 %v1928
  %4404 = vmatmul.mubr.bf16.gmra.mrb[0].mxu0 %v1927
  %v4405 = vpop.f32.mrb[0].mxu0
  %v4406 = vadd.f32 0.0, %v4405
  %v4407 = vpop.f32.mrb[0].mxu0
  %v4408 = vadd.f32 0.0, %v4407
  %v4409 = vpop.f32.mrb[0].mxu0
  %v4410 = vadd.f32 0.0, %v4409
  %v4411 = vpop.f32.mrb[0].mxu0
  %v4412 = vadd.f32 0.0, %v4411
  %4413 = vmatprep.mubr.bf16.mxu0 %v1932
  %4414 = vmatmul.mubr.bf16.gmra.mrb[0].mxu0 %v1931
  %v4415 = vpop.f32.mrb[0].mxu0
  %v4416 = vadd.f32 0.0, %v4415
  %v4417 = vpop.f32.mrb[0].mxu0
  %v4418 = vadd.f32 0.0, %v4417
  %v4419 = vpop.f32.mrb[0].mxu0
  %v4420 = vadd.f32 0.0, %v4419
  %v4421 = vpop.f32.mrb[0].mxu0
  %v4422 = vadd.f32 0.0, %v4421
  %4423 = vmatprep.mubr.bf16.mxu0 %v1936
  %4424 = vmatmul.mubr.bf16.gmra.mrb[0].mxu0 %v1935
  %v4425 = vpop.f32.mrb[0].mxu0
  %v4426 = vadd.f32 0.0, %v4425
  %v4427 = vpop.f32.mrb[0].mxu0
  %v4428 = vadd.f32 0.0, %v4427
  %v4429 = vpop.f32.mrb[0].mxu0
  %v4430 = vadd.f32 0.0, %v4429
  %v4431 = vpop.f32.mrb[0].mxu0
  %v4432 = vadd.f32 0.0, %v4431
  %4433 = vmatprep.mubr.bf16.mxu0 %v1940
  %4434 = vmatmul.mubr.bf16.gmra.mrb[0].mxu0 %v1939
  %v4435 = vpop.f32.mrb[0].mxu0
  %v4436 = vadd.f32 0.0, %v4435
  %v4437 = vpop.f32.mrb[0].mxu0
  %v4438 = vadd.f32 0.0, %v4437
  %v4439 = vpop.f32.mrb[0].mxu0
  %v4440 = vadd.f32 0.0, %v4439
  %v4441 = vpop.f32.mrb[0].mxu0
  %v4442 = vadd.f32 0.0, %v4441
  %4443 = vdwg.mxu0
  %4444 = vmatprep.subr.bf16.mxu0 %v3100
  %4445 = vmatpush1.bf16.msra.mxu0 %v3099
  %4446 = vmatprep.subr.bf16.mxu0 %v3108
  %4447 = vmatpush1.bf16.msra.mxu0 %v3107
  %4448 = vmatprep.subr.bf16.mxu0 %v3116
  %4449 = vmatpush1.bf16.msra.mxu0 %v3115
  %4450 = vmatprep.subr.bf16.mxu0 %v3124
  %4451 = vmatpush1.bf16.msra.mxu0 %v3123
  %4452 = vmatprep.subr.bf16.mxu0 %v3132
  %4453 = vmatpush1.bf16.msra.mxu0 %v3131
  %4454 = vmatprep.subr.bf16.mxu0 %v3140
  %4455 = vmatpush1.bf16.msra.mxu0 %v3139
  %4456 = vmatprep.subr.bf16.mxu0 %v3148
  %4457 = vmatpush1.bf16.msra.mxu0 %v3147
  %4458 = vmatprep.subr.bf16.mxu0 %v3156
  %4459 = vmatpush1.bf16.msra.mxu0 %v3155
  %4460 = vmatprep.subr.bf16.mxu0 %v3164
  %4461 = vmatpush1.bf16.msra.mxu0 %v3163
  %4462 = vmatprep.subr.bf16.mxu0 %v3172
  %4463 = vmatpush1.bf16.msra.mxu0 %v3171
  %4464 = vmatprep.subr.bf16.mxu0 %v3180
  %4465 = vmatpush1.bf16.msra.mxu0 %v3179
  %4466 = vmatprep.subr.bf16.mxu0 %v3188
  %4467 = vmatpush1.bf16.msra.mxu0 %v3187
  %4468 = vmatprep.subr.bf16.mxu0 %v3196
  %4469 = vmatpush1.bf16.msra.mxu0 %v3195
  %4470 = vmatprep.subr.bf16.mxu0 %v3204
  %4471 = vmatpush1.bf16.msra.mxu0 %v3203
  %4472 = vmatprep.subr.bf16.mxu0 %v3212
  %4473 = vmatpush1.bf16.msra.mxu0 %v3211
  %4474 = vmatprep.subr.bf16.mxu0 %v3220
  %4475 = vmatpush1.bf16.msra.mxu0 %v3219
  %4476 = vmatprep.mubr.bf16.mxu0 %v1882
  %4477 = vmatmul.mubr.bf16.gmra.mrb[0].mxu0 %v1881
  %v4478 = vpop.f32.mrb[0].mxu0
  %v4479 = vadd.f32 %v4286, %v4478
  %v4480 = vpop.f32.mrb[0].mxu0
  %v4481 = vadd.f32 %v4288, %v4480
  %v4482 = vpop.f32.mrb[0].mxu0
  %v4483 = vadd.f32 %v4290, %v4482
  %v4484 = vpop.f32.mrb[0].mxu0
  %v4485 = vadd.f32 %v4292, %v4484
  %4486 = vmatprep.mubr.bf16.mxu0 %v1886
  %4487 = vmatmul.mubr.bf16.gmra.mrb[0].mxu0 %v1885
  %v4488 = vpop.f32.mrb[0].mxu0
  %v4489 = vadd.f32 %v4296, %v4488
  %v4490 = vpop.f32.mrb[0].mxu0
  %v4491 = vadd.f32 %v4298, %v4490
  %v4492 = vpop.f32.mrb[0].mxu0
  %v4493 = vadd.f32 %v4300, %v4492
  %v4494 = vpop.f32.mrb[0].mxu0
  %v4495 = vadd.f32 %v4302, %v4494
  %4496 = vmatprep.mubr.bf16.mxu0 %v1890
  %4497 = vmatmul.mubr.bf16.gmra.mrb[0].mxu0 %v1889
  %v4498 = vpop.f32.mrb[0].mxu0
  %v4499 = vadd.f32 %v4306, %v4498
  %v4500 = vpop.f32.mrb[0].mxu0
  %v4501 = vadd.f32 %v4308, %v4500
  %v4502 = vpop.f32.mrb[0].mxu0
  %v4503 = vadd.f32 %v4310, %v4502
  %v4504 = vpop.f32.mrb[0].mxu0
  %v4505 = vadd.f32 %v4312, %v4504
  %4506 = vmatprep.mubr.bf16.mxu0 %v1894
  %4507 = vmatmul.mubr.bf16.gmra.mrb[0].mxu0 %v1893
  %v4508 = vpop.f32.mrb[0].mxu0
  %v4509 = vadd.f32 %v4316, %v4508
  %v4510 = vpop.f32.mrb[0].mxu0
  %v4511 = vadd.f32 %v4318, %v4510
  %v4512 = vpop.f32.mrb[0].mxu0
  %v4513 = vadd.f32 %v4320, %v4512
  %v4514 = vpop.f32.mrb[0].mxu0
  %v4515 = vadd.f32 %v4322, %v4514
  %4516 = vmatprep.mubr.bf16.mxu0 %v1898
  %4517 = vmatmul.mubr.bf16.gmra.mrb[0].mxu0 %v1897
  %v4518 = vpop.f32.mrb[0].mxu0
  %v4519 = vadd.f32 %v4326, %v4518
  %v4520 = vpop.f32.mrb[0].mxu0
  %v4521 = vadd.f32 %v4328, %v4520
  %v4522 = vpop.f32.mrb[0].mxu0
  %v4523 = vadd.f32 %v4330, %v4522
  %v4524 = vpop.f32.mrb[0].mxu0
  %v4525 = vadd.f32 %v4332, %v4524
  %4526 = vmatprep.mubr.bf16.mxu0 %v1902
  %4527 = vmatmul.mubr.bf16.gmra.mrb[0].mxu0 %v1901
  %v4528 = vpop.f32.mrb[0].mxu0
  %v4529 = vadd.f32 %v4336, %v4528
  %v4530 = vpop.f32.mrb[0].mxu0
  %v4531 = vadd.f32 %v4338, %v4530
  %v4532 = vpop.f32.mrb[0].mxu0
  %v4533 = vadd.f32 %v4340, %v4532
  %v4534 = vpop.f32.mrb[0].mxu0
  %v4535 = vadd.f32 %v4342, %v4534
  %4536 = vmatprep.mubr.bf16.mxu0 %v1906
  %4537 = vmatmul.mubr.bf16.gmra.mrb[0].mxu0 %v1905
  %v4538 = vpop.f32.mrb[0].mxu0
  %v4539 = vadd.f32 %v4346, %v4538
  %v4540 = vpop.f32.mrb[0].mxu0
  %v4541 = vadd.f32 %v4348, %v4540
  %v4542 = vpop.f32.mrb[0].mxu0
  %v4543 = vadd.f32 %v4350, %v4542
  %v4544 = vpop.f32.mrb[0].mxu0
  %v4545 = vadd.f32 %v4352, %v4544
  %4546 = vmatprep.mubr.bf16.mxu0 %v1910
  %4547 = vmatmul.mubr.bf16.gmra.mrb[0].mxu0 %v1909
  %v4548 = vpop.f32.mrb[0].mxu0
  %v4549 = vadd.f32 %v4356, %v4548
  %v4550 = vpop.f32.mrb[0].mxu0
  %v4551 = vadd.f32 %v4358, %v4550
  %v4552 = vpop.f32.mrb[0].mxu0
  %v4553 = vadd.f32 %v4360, %v4552
  %v4554 = vpop.f32.mrb[0].mxu0
  %v4555 = vadd.f32 %v4362, %v4554
  %4556 = vmatprep.mubr.bf16.mxu0 %v1914
  %4557 = vmatmul.mubr.bf16.gmra.mrb[0].mxu0 %v1913
  %v4558 = vpop.f32.mrb[0].mxu0
  %v4559 = vadd.f32 %v4366, %v4558
  %v4560 = vpop.f32.mrb[0].mxu0
  %v4561 = vadd.f32 %v4368, %v4560
  %v4562 = vpop.f32.mrb[0].mxu0
  %v4563 = vadd.f32 %v4370, %v4562
  %v4564 = vpop.f32.mrb[0].mxu0
  %v4565 = vadd.f32 %v4372, %v4564
  %4566 = vmatprep.mubr.bf16.mxu0 %v1918
  %4567 = vmatmul.mubr.bf16.gmra.mrb[0].mxu0 %v1917
  %v4568 = vpop.f32.mrb[0].mxu0
  %v4569 = vadd.f32 %v4376, %v4568
  %v4570 = vpop.f32.mrb[0].mxu0
  %v4571 = vadd.f32 %v4378, %v4570
  %v4572 = vpop.f32.mrb[0].mxu0
  %v4573 = vadd.f32 %v4380, %v4572
  %v4574 = vpop.f32.mrb[0].mxu0
  %v4575 = vadd.f32 %v4382, %v4574
  %4576 = vmatprep.mubr.bf16.mxu0 %v1922
  %4577 = vmatmul.mubr.bf16.gmra.mrb[0].mxu0 %v1921
  %v4578 = vpop.f32.mrb[0].mxu0
  %v4579 = vadd.f32 %v4386, %v4578
  %v4580 = vpop.f32.mrb[0].mxu0
  %v4581 = vadd.f32 %v4388, %v4580
  %v4582 = vpop.f32.mrb[0].mxu0
  %v4583 = vadd.f32 %v4390, %v4582
  %v4584 = vpop.f32.mrb[0].mxu0
  %v4585 = vadd.f32 %v4392, %v4584
  %4586 = vmatprep.mubr.bf16.mxu0 %v1926
  %4587 = vmatmul.mubr.bf16.gmra.mrb[0].mxu0 %v1925
  %v4588 = vpop.f32.mrb[0].mxu0
  %v4589 = vadd.f32 %v4396, %v4588
  %v4590 = vpop.f32.mrb[0].mxu0
  %v4591 = vadd.f32 %v4398, %v4590
  %v4592 = vpop.f32.mrb[0].mxu0
  %v4593 = vadd.f32 %v4400, %v4592
  %v4594 = vpop.f32.mrb[0].mxu0
  %v4595 = vadd.f32 %v4402, %v4594
  %4596 = vmatprep.mubr.bf16.mxu0 %v1930
  %4597 = vmatmul.mubr.bf16.gmra.mrb[0].mxu0 %v1929
  %v4598 = vpop.f32.mrb[0].mxu0
  %v4599 = vadd.f32 %v4406, %v4598
  %v4600 = vpop.f32.mrb[0].mxu0
  %v4601 = vadd.f32 %v4408, %v4600
  %v4602 = vpop.f32.mrb[0].mxu0
  %v4603 = vadd.f32 %v4410, %v4602
  %v4604 = vpop.f32.mrb[0].mxu0
  %v4605 = vadd.f32 %v4412, %v4604
  %4606 = vmatprep.mubr.bf16.mxu0 %v1934
  %4607 = vmatmul.mubr.bf16.gmra.mrb[0].mxu0 %v1933
  %v4608 = vpop.f32.mrb[0].mxu0
  %v4609 = vadd.f32 %v4416, %v4608
  %v4610 = vpop.f32.mrb[0].mxu0
  %v4611 = vadd.f32 %v4418, %v4610
  %v4612 = vpop.f32.mrb[0].mxu0
  %v4613 = vadd.f32 %v4420, %v4612
  %v4614 = vpop.f32.mrb[0].mxu0
  %v4615 = vadd.f32 %v4422, %v4614
  %4616 = vmatprep.mubr.bf16.mxu0 %v1938
  %4617 = vmatmul.mubr.bf16.gmra.mrb[0].mxu0 %v1937
  %v4618 = vpop.f32.mrb[0].mxu0
  %v4619 = vadd.f32 %v4426, %v4618
  %v4620 = vpop.f32.mrb[0].mxu0
  %v4621 = vadd.f32 %v4428, %v4620
  %v4622 = vpop.f32.mrb[0].mxu0
  %v4623 = vadd.f32 %v4430, %v4622
  %v4624 = vpop.f32.mrb[0].mxu0
  %v4625 = vadd.f32 %v4432, %v4624
  %4626 = vmatprep.mubr.bf16.mxu0 %v1942
  %4627 = vmatmul.mubr.bf16.gmra.mrb[0].mxu0 %v1941
  %v4628 = vpop.f32.mrb[0].mxu0
  %v4629 = vadd.f32 %v4436, %v4628
  %v4630 = vpop.f32.mrb[0].mxu0
  %v4631 = vadd.f32 %v4438, %v4630
  %v4632 = vpop.f32.mrb[0].mxu0
  %v4633 = vadd.f32 %v4440, %v4632
  %v4634 = vpop.f32.mrb[0].mxu0
  %v4635 = vadd.f32 %v4442, %v4634
  %4636 = vdwg.mxu0
  %4637 = vmatprep.subr.bf16.mxu0 %v2974
  %4638 = vmatpush1.bf16.msra.mxu0 %v2973
  %4639 = vmatprep.subr.bf16.mxu0 %v2982
  %4640 = vmatpush1.bf16.msra.mxu0 %v2981
  %4641 = vmatprep.subr.bf16.mxu0 %v2990
  %4642 = vmatpush1.bf16.msra.mxu0 %v2989
  %4643 = vmatprep.subr.bf16.mxu0 %v2998
  %4644 = vmatpush1.bf16.msra.mxu0 %v2997
  %4645 = vmatprep.subr.bf16.mxu0 %v3006
  %4646 = vmatpush1.bf16.msra.mxu0 %v3005
  %4647 = vmatprep.subr.bf16.mxu0 %v3014
  %4648 = vmatpush1.bf16.msra.mxu0 %v3013
  %4649 = vmatprep.subr.bf16.mxu0 %v3022
  %4650 = vmatpush1.bf16.msra.mxu0 %v3021
  %4651 = vmatprep.subr.bf16.mxu0 %v3030
  %4652 = vmatpush1.bf16.msra.mxu0 %v3029
  %4653 = vmatprep.subr.bf16.mxu0 %v3038
  %4654 = vmatpush1.bf16.msra.mxu0 %v3037
  %4655 = vmatprep.subr.bf16.mxu0 %v3046
  %4656 = vmatpush1.bf16.msra.mxu0 %v3045
  %4657 = vmatprep.subr.bf16.mxu0 %v3054
  %4658 = vmatpush1.bf16.msra.mxu0 %v3053
  %4659 = vmatprep.subr.bf16.mxu0 %v3062
  %4660 = vmatpush1.bf16.msra.mxu0 %v3061
  %4661 = vmatprep.subr.bf16.mxu0 %v3070
  %4662 = vmatpush1.bf16.msra.mxu0 %v3069
  %4663 = vmatprep.subr.bf16.mxu0 %v3078
  %4664 = vmatpush1.bf16.msra.mxu0 %v3077
  %4665 = vmatprep.subr.bf16.mxu0 %v3086
  %4666 = vmatpush1.bf16.msra.mxu0 %v3085
  %4667 = vmatprep.subr.bf16.mxu0 %v3094
  %4668 = vmatpush1.bf16.msra.mxu0 %v3093
  %4669 = vmatprep.mubr.bf16.mxu0 %v1880
  %4670 = vmatmul.mubr.bf16.gmra.mrb[0].mxu0 %v1879
  %v4671 = vpop.f32.mrb[0].mxu0
  %v4672 = vadd.f32 0.0, %v4671
  %v4673 = vpop.f32.mrb[0].mxu0
  %v4674 = vadd.f32 0.0, %v4673
  %v4675 = vpop.f32.mrb[0].mxu0
  %v4676 = vadd.f32 0.0, %v4675
  %v4677 = vpop.f32.mrb[0].mxu0
  %v4678 = vadd.f32 0.0, %v4677
  %4679 = vmatprep.mubr.bf16.mxu0 %v1884
  %4680 = vmatmul.mubr.bf16.gmra.mrb[0].mxu0 %v1883
  %v4681 = vpop.f32.mrb[0].mxu0
  %v4682 = vadd.f32 0.0, %v4681
  %v4683 = vpop.f32.mrb[0].mxu0
  %v4684 = vadd.f32 0.0, %v4683
  %v4685 = vpop.f32.mrb[0].mxu0
  %v4686 = vadd.f32 0.0, %v4685
  %v4687 = vpop.f32.mrb[0].mxu0
  %v4688 = vadd.f32 0.0, %v4687
  %4689 = vmatprep.mubr.bf16.mxu0 %v1888
  %4690 = vmatmul.mubr.bf16.gmra.mrb[0].mxu0 %v1887
  %v4691 = vpop.f32.mrb[0].mxu0
  %v4692 = vadd.f32 0.0, %v4691
  %v4693 = vpop.f32.mrb[0].mxu0
  %v4694 = vadd.f32 0.0, %v4693
  %v4695 = vpop.f32.mrb[0].mxu0
  %v4696 = vadd.f32 0.0, %v4695
  %v4697 = vpop.f32.mrb[0].mxu0
  %v4698 = vadd.f32 0.0, %v4697
  %4699 = vmatprep.mubr.bf16.mxu0 %v1892
  %4700 = vmatmul.mubr.bf16.gmra.mrb[0].mxu0 %v1891
  %v4701 = vpop.f32.mrb[0].mxu0
  %v4702 = vadd.f32 0.0, %v4701
  %v4703 = vpop.f32.mrb[0].mxu0
  %v4704 = vadd.f32 0.0, %v4703
  %v4705 = vpop.f32.mrb[0].mxu0
  %v4706 = vadd.f32 0.0, %v4705
  %v4707 = vpop.f32.mrb[0].mxu0
  %v4708 = vadd.f32 0.0, %v4707
  %4709 = vmatprep.mubr.bf16.mxu0 %v1896
  %4710 = vmatmul.mubr.bf16.gmra.mrb[0].mxu0 %v1895
  %v4711 = vpop.f32.mrb[0].mxu0
  %v4712 = vadd.f32 0.0, %v4711
  %v4713 = vpop.f32.mrb[0].mxu0
  %v4714 = vadd.f32 0.0, %v4713
  %v4715 = vpop.f32.mrb[0].mxu0
  %v4716 = vadd.f32 0.0, %v4715
  %v4717 = vpop.f32.mrb[0].mxu0
  %v4718 = vadd.f32 0.0, %v4717
  %4719 = vmatprep.mubr.bf16.mxu0 %v1900
  %4720 = vmatmul.mubr.bf16.gmra.mrb[0].mxu0 %v1899
  %v4721 = vpop.f32.mrb[0].mxu0
  %v4722 = vadd.f32 0.0, %v4721
  %v4723 = vpop.f32.mrb[0].mxu0
  %v4724 = vadd.f32 0.0, %v4723
  %v4725 = vpop.f32.mrb[0].mxu0
  %v4726 = vadd.f32 0.0, %v4725
  %v4727 = vpop.f32.mrb[0].mxu0
  %v4728 = vadd.f32 0.0, %v4727
  %4729 = vmatprep.mubr.bf16.mxu0 %v1904
  %4730 = vmatmul.mubr.bf16.gmra.mrb[0].mxu0 %v1903
  %v4731 = vpop.f32.mrb[0].mxu0
  %v4732 = vadd.f32 0.0, %v4731
  %v4733 = vpop.f32.mrb[0].mxu0
  %v4734 = vadd.f32 0.0, %v4733
  %v4735 = vpop.f32.mrb[0].mxu0
  %v4736 = vadd.f32 0.0, %v4735
  %v4737 = vpop.f32.mrb[0].mxu0
  %v4738 = vadd.f32 0.0, %v4737
  %4739 = vmatprep.mubr.bf16.mxu0 %v1908
  %4740 = vmatmul.mubr.bf16.gmra.mrb[0].mxu0 %v1907
  %v4741 = vpop.f32.mrb[0].mxu0
  %v4742 = vadd.f32 0.0, %v4741
  %v4743 = vpop.f32.mrb[0].mxu0
  %v4744 = vadd.f32 0.0, %v4743
  %v4745 = vpop.f32.mrb[0].mxu0
  %v4746 = vadd.f32 0.0, %v4745
  %v4747 = vpop.f32.mrb[0].mxu0
  %v4748 = vadd.f32 0.0, %v4747
  %4749 = vmatprep.mubr.bf16.mxu0 %v1912
  %4750 = vmatmul.mubr.bf16.gmra.mrb[0].mxu0 %v1911
  %v4751 = vpop.f32.mrb[0].mxu0
  %v4752 = vadd.f32 0.0, %v4751
  %v4753 = vpop.f32.mrb[0].mxu0
  %v4754 = vadd.f32 0.0, %v4753
  %v4755 = vpop.f32.mrb[0].mxu0
  %v4756 = vadd.f32 0.0, %v4755
  %v4757 = vpop.f32.mrb[0].mxu0
  %v4758 = vadd.f32 0.0, %v4757
  %4759 = vmatprep.mubr.bf16.mxu0 %v1916
  %4760 = vmatmul.mubr.bf16.gmra.mrb[0].mxu0 %v1915
  %v4761 = vpop.f32.mrb[0].mxu0
  %v4762 = vadd.f32 0.0, %v4761
  %v4763 = vpop.f32.mrb[0].mxu0
  %v4764 = vadd.f32 0.0, %v4763
  %v4765 = vpop.f32.mrb[0].mxu0
  %v4766 = vadd.f32 0.0, %v4765
  %v4767 = vpop.f32.mrb[0].mxu0
  %v4768 = vadd.f32 0.0, %v4767
  %4769 = vmatprep.mubr.bf16.mxu0 %v1920
  %4770 = vmatmul.mubr.bf16.gmra.mrb[0].mxu0 %v1919
  %v4771 = vpop.f32.mrb[0].mxu0
  %v4772 = vadd.f32 0.0, %v4771
  %v4773 = vpop.f32.mrb[0].mxu0
  %v4774 = vadd.f32 0.0, %v4773
  %v4775 = vpop.f32.mrb[0].mxu0
  %v4776 = vadd.f32 0.0, %v4775
  %v4777 = vpop.f32.mrb[0].mxu0
  %v4778 = vadd.f32 0.0, %v4777
  %4779 = vmatprep.mubr.bf16.mxu0 %v1924
  %4780 = vmatmul.mubr.bf16.gmra.mrb[0].mxu0 %v1923
  %v4781 = vpop.f32.mrb[0].mxu0
  %v4782 = vadd.f32 0.0, %v4781
  %v4783 = vpop.f32.mrb[0].mxu0
  %v4784 = vadd.f32 0.0, %v4783
  %v4785 = vpop.f32.mrb[0].mxu0
  %v4786 = vadd.f32 0.0, %v4785
  %v4787 = vpop.f32.mrb[0].mxu0
  %v4788 = vadd.f32 0.0, %v4787
  %4789 = vmatprep.mubr.bf16.mxu0 %v1928
  %4790 = vmatmul.mubr.bf16.gmra.mrb[0].mxu0 %v1927
  %v4791 = vpop.f32.mrb[0].mxu0
  %v4792 = vadd.f32 0.0, %v4791
  %v4793 = vpop.f32.mrb[0].mxu0
  %v4794 = vadd.f32 0.0, %v4793
  %v4795 = vpop.f32.mrb[0].mxu0
  %v4796 = vadd.f32 0.0, %v4795
  %v4797 = vpop.f32.mrb[0].mxu0
  %v4798 = vadd.f32 0.0, %v4797
  %4799 = vmatprep.mubr.bf16.mxu0 %v1932
  %4800 = vmatmul.mubr.bf16.gmra.mrb[0].mxu0 %v1931
  %v4801 = vpop.f32.mrb[0].mxu0
  %v4802 = vadd.f32 0.0, %v4801
  %v4803 = vpop.f32.mrb[0].mxu0
  %v4804 = vadd.f32 0.0, %v4803
  %v4805 = vpop.f32.mrb[0].mxu0
  %v4806 = vadd.f32 0.0, %v4805
  %v4807 = vpop.f32.mrb[0].mxu0
  %v4808 = vadd.f32 0.0, %v4807
  %4809 = vmatprep.mubr.bf16.mxu0 %v1936
  %4810 = vmatmul.mubr.bf16.gmra.mrb[0].mxu0 %v1935
  %v4811 = vpop.f32.mrb[0].mxu0
  %v4812 = vadd.f32 0.0, %v4811
  %v4813 = vpop.f32.mrb[0].mxu0
  %v4814 = vadd.f32 0.0, %v4813
  %v4815 = vpop.f32.mrb[0].mxu0
  %v4816 = vadd.f32 0.0, %v4815
  %v4817 = vpop.f32.mrb[0].mxu0
  %v4818 = vadd.f32 0.0, %v4817
  %4819 = vmatprep.mubr.bf16.mxu0 %v1940
  %4820 = vmatmul.mubr.bf16.gmra.mrb[0].mxu0 %v1939
  %v4821 = vpop.f32.mrb[0].mxu0
  %v4822 = vadd.f32 0.0, %v4821
  %v4823 = vpop.f32.mrb[0].mxu0
  %v4824 = vadd.f32 0.0, %v4823
  %v4825 = vpop.f32.mrb[0].mxu0
  %v4826 = vadd.f32 0.0, %v4825
  %v4827 = vpop.f32.mrb[0].mxu0
  %v4828 = vadd.f32 0.0, %v4827
  %4829 = vdwg.mxu0
  %4830 = vmatprep.subr.bf16.mxu0 %v3102
  %4831 = vmatpush1.bf16.msra.mxu0 %v3101
  %4832 = vmatprep.subr.bf16.mxu0 %v3110
  %4833 = vmatpush1.bf16.msra.mxu0 %v3109
  %4834 = vmatprep.subr.bf16.mxu0 %v3118
  %4835 = vmatpush1.bf16.msra.mxu0 %v3117
  %4836 = vmatprep.subr.bf16.mxu0 %v3126
  %4837 = vmatpush1.bf16.msra.mxu0 %v3125
  %4838 = vmatprep.subr.bf16.mxu0 %v3134
  %4839 = vmatpush1.bf16.msra.mxu0 %v3133
  %4840 = vmatprep.subr.bf16.mxu0 %v3142
  %4841 = vmatpush1.bf16.msra.mxu0 %v3141
  %4842 = vmatprep.subr.bf16.mxu0 %v3150
  %4843 = vmatpush1.bf16.msra.mxu0 %v3149
  %4844 = vmatprep.subr.bf16.mxu0 %v3158
  %4845 = vmatpush1.bf16.msra.mxu0 %v3157
  %4846 = vmatprep.subr.bf16.mxu0 %v3166
  %4847 = vmatpush1.bf16.msra.mxu0 %v3165
  %4848 = vmatprep.subr.bf16.mxu0 %v3174
  %4849 = vmatpush1.bf16.msra.mxu0 %v3173
  %4850 = vmatprep.subr.bf16.mxu0 %v3182
  %4851 = vmatpush1.bf16.msra.mxu0 %v3181
  %4852 = vmatprep.subr.bf16.mxu0 %v3190
  %4853 = vmatpush1.bf16.msra.mxu0 %v3189
  %4854 = vmatprep.subr.bf16.mxu0 %v3198
  %4855 = vmatpush1.bf16.msra.mxu0 %v3197
  %4856 = vmatprep.subr.bf16.mxu0 %v3206
  %4857 = vmatpush1.bf16.msra.mxu0 %v3205
  %4858 = vmatprep.subr.bf16.mxu0 %v3214
  %4859 = vmatpush1.bf16.msra.mxu0 %v3213
  %4860 = vmatprep.subr.bf16.mxu0 %v3222
  %4861 = vmatpush1.bf16.msra.mxu0 %v3221
  %4862 = vmatprep.mubr.bf16.mxu0 %v1882
  %4863 = vmatmul.mubr.bf16.gmra.mrb[0].mxu0 %v1881
  %v4864 = vpop.f32.mrb[0].mxu0
  %v4865 = vadd.f32 %v4672, %v4864
  %v4866 = vpop.f32.mrb[0].mxu0
  %v4867 = vadd.f32 %v4674, %v4866
  %v4868 = vpop.f32.mrb[0].mxu0
  %v4869 = vadd.f32 %v4676, %v4868
  %v4870 = vpop.f32.mrb[0].mxu0
  %v4871 = vadd.f32 %v4678, %v4870
  %4872 = vmatprep.mubr.bf16.mxu0 %v1886
  %4873 = vmatmul.mubr.bf16.gmra.mrb[0].mxu0 %v1885
  %v4874 = vpop.f32.mrb[0].mxu0
  %v4875 = vadd.f32 %v4682, %v4874
  %v4876 = vpop.f32.mrb[0].mxu0
  %v4877 = vadd.f32 %v4684, %v4876
  %v4878 = vpop.f32.mrb[0].mxu0
  %v4879 = vadd.f32 %v4686, %v4878
  %v4880 = vpop.f32.mrb[0].mxu0
  %v4881 = vadd.f32 %v4688, %v4880
  %4882 = vmatprep.mubr.bf16.mxu0 %v1890
  %4883 = vmatmul.mubr.bf16.gmra.mrb[0].mxu0 %v1889
  %v4884 = vpop.f32.mrb[0].mxu0
  %v4885 = vadd.f32 %v4692, %v4884
  %v4886 = vpop.f32.mrb[0].mxu0
  %v4887 = vadd.f32 %v4694, %v4886
  %v4888 = vpop.f32.mrb[0].mxu0
  %v4889 = vadd.f32 %v4696, %v4888
  %v4890 = vpop.f32.mrb[0].mxu0
  %v4891 = vadd.f32 %v4698, %v4890
  %4892 = vmatprep.mubr.bf16.mxu0 %v1894
  %4893 = vmatmul.mubr.bf16.gmra.mrb[0].mxu0 %v1893
  %v4894 = vpop.f32.mrb[0].mxu0
  %v4895 = vadd.f32 %v4702, %v4894
  %v4896 = vpop.f32.mrb[0].mxu0
  %v4897 = vadd.f32 %v4704, %v4896
  %v4898 = vpop.f32.mrb[0].mxu0
  %v4899 = vadd.f32 %v4706, %v4898
  %v4900 = vpop.f32.mrb[0].mxu0
  %v4901 = vadd.f32 %v4708, %v4900
  %4902 = vmatprep.mubr.bf16.mxu0 %v1898
  %4903 = vmatmul.mubr.bf16.gmra.mrb[0].mxu0 %v1897
  %v4904 = vpop.f32.mrb[0].mxu0
  %v4905 = vadd.f32 %v4712, %v4904
  %v4906 = vpop.f32.mrb[0].mxu0
  %v4907 = vadd.f32 %v4714, %v4906
  %v4908 = vpop.f32.mrb[0].mxu0
  %v4909 = vadd.f32 %v4716, %v4908
  %v4910 = vpop.f32.mrb[0].mxu0
  %v4911 = vadd.f32 %v4718, %v4910
  %4912 = vmatprep.mubr.bf16.mxu0 %v1902
  %4913 = vmatmul.mubr.bf16.gmra.mrb[0].mxu0 %v1901
  %v4914 = vpop.f32.mrb[0].mxu0
  %v4915 = vadd.f32 %v4722, %v4914
  %v4916 = vpop.f32.mrb[0].mxu0
  %v4917 = vadd.f32 %v4724, %v4916
  %v4918 = vpop.f32.mrb[0].mxu0
  %v4919 = vadd.f32 %v4726, %v4918
  %v4920 = vpop.f32.mrb[0].mxu0
  %v4921 = vadd.f32 %v4728, %v4920
  %4922 = vmatprep.mubr.bf16.mxu0 %v1906
  %4923 = vmatmul.mubr.bf16.gmra.mrb[0].mxu0 %v1905
  %v4924 = vpop.f32.mrb[0].mxu0
  %v4925 = vadd.f32 %v4732, %v4924
  %v4926 = vpop.f32.mrb[0].mxu0
  %v4927 = vadd.f32 %v4734, %v4926
  %v4928 = vpop.f32.mrb[0].mxu0
  %v4929 = vadd.f32 %v4736, %v4928
  %v4930 = vpop.f32.mrb[0].mxu0
  %v4931 = vadd.f32 %v4738, %v4930
  %4932 = vmatprep.mubr.bf16.mxu0 %v1910
  %4933 = vmatmul.mubr.bf16.gmra.mrb[0].mxu0 %v1909
  %v4934 = vpop.f32.mrb[0].mxu0
  %v4935 = vadd.f32 %v4742, %v4934
  %v4936 = vpop.f32.mrb[0].mxu0
  %v4937 = vadd.f32 %v4744, %v4936
  %v4938 = vpop.f32.mrb[0].mxu0
  %v4939 = vadd.f32 %v4746, %v4938
  %v4940 = vpop.f32.mrb[0].mxu0
  %v4941 = vadd.f32 %v4748, %v4940
  %4942 = vmatprep.mubr.bf16.mxu0 %v1914
  %4943 = vmatmul.mubr.bf16.gmra.mrb[0].mxu0 %v1913
  %v4944 = vpop.f32.mrb[0].mxu0
  %v4945 = vadd.f32 %v4752, %v4944
  %v4946 = vpop.f32.mrb[0].mxu0
  %v4947 = vadd.f32 %v4754, %v4946
  %v4948 = vpop.f32.mrb[0].mxu0
  %v4949 = vadd.f32 %v4756, %v4948
  %v4950 = vpop.f32.mrb[0].mxu0
  %v4951 = vadd.f32 %v4758, %v4950
  %4952 = vmatprep.mubr.bf16.mxu0 %v1918
  %4953 = vmatmul.mubr.bf16.gmra.mrb[0].mxu0 %v1917
  %v4954 = vpop.f32.mrb[0].mxu0
  %v4955 = vadd.f32 %v4762, %v4954
  %v4956 = vpop.f32.mrb[0].mxu0
  %v4957 = vadd.f32 %v4764, %v4956
  %v4958 = vpop.f32.mrb[0].mxu0
  %v4959 = vadd.f32 %v4766, %v4958
  %v4960 = vpop.f32.mrb[0].mxu0
  %v4961 = vadd.f32 %v4768, %v4960
  %4962 = vmatprep.mubr.bf16.mxu0 %v1922
  %4963 = vmatmul.mubr.bf16.gmra.mrb[0].mxu0 %v1921
  %v4964 = vpop.f32.mrb[0].mxu0
  %v4965 = vadd.f32 %v4772, %v4964
  %v4966 = vpop.f32.mrb[0].mxu0
  %v4967 = vadd.f32 %v4774, %v4966
  %v4968 = vpop.f32.mrb[0].mxu0
  %v4969 = vadd.f32 %v4776, %v4968
  %v4970 = vpop.f32.mrb[0].mxu0
  %v4971 = vadd.f32 %v4778, %v4970
  %4972 = vmatprep.mubr.bf16.mxu0 %v1926
  %4973 = vmatmul.mubr.bf16.gmra.mrb[0].mxu0 %v1925
  %v4974 = vpop.f32.mrb[0].mxu0
  %v4975 = vadd.f32 %v4782, %v4974
  %v4976 = vpop.f32.mrb[0].mxu0
  %v4977 = vadd.f32 %v4784, %v4976
  %v4978 = vpop.f32.mrb[0].mxu0
  %v4979 = vadd.f32 %v4786, %v4978
  %v4980 = vpop.f32.mrb[0].mxu0
  %v4981 = vadd.f32 %v4788, %v4980
  %4982 = vmatprep.mubr.bf16.mxu0 %v1930
  %4983 = vmatmul.mubr.bf16.gmra.mrb[0].mxu0 %v1929
  %v4984 = vpop.f32.mrb[0].mxu0
  %v4985 = vadd.f32 %v4792, %v4984
  %v4986 = vpop.f32.mrb[0].mxu0
  %v4987 = vadd.f32 %v4794, %v4986
  %v4988 = vpop.f32.mrb[0].mxu0
  %v4989 = vadd.f32 %v4796, %v4988
  %v4990 = vpop.f32.mrb[0].mxu0
  %v4991 = vadd.f32 %v4798, %v4990
  %4992 = vmatprep.mubr.bf16.mxu0 %v1934
  %4993 = vmatmul.mubr.bf16.gmra.mrb[0].mxu0 %v1933
  %v4994 = vpop.f32.mrb[0].mxu0
  %v4995 = vadd.f32 %v4802, %v4994
  %v4996 = vpop.f32.mrb[0].mxu0
  %v4997 = vadd.f32 %v4804, %v4996
  %v4998 = vpop.f32.mrb[0].mxu0
  %v4999 = vadd.f32 %v4806, %v4998
  %v5000 = vpop.f32.mrb[0].mxu0
  %v5001 = vadd.f32 %v4808, %v5000
  %5002 = vmatprep.mubr.bf16.mxu0 %v1938
  %5003 = vmatmul.mubr.bf16.gmra.mrb[0].mxu0 %v1937
  %v5004 = vpop.f32.mrb[0].mxu0
  %v5005 = vadd.f32 %v4812, %v5004
  %v5006 = vpop.f32.mrb[0].mxu0
  %v5007 = vadd.f32 %v4814, %v5006
  %v5008 = vpop.f32.mrb[0].mxu0
  %v5009 = vadd.f32 %v4816, %v5008
  %v5010 = vpop.f32.mrb[0].mxu0
  %v5011 = vadd.f32 %v4818, %v5010
  %5012 = vmatprep.mubr.bf16.mxu0 %v1942
  %5013 = vmatmul.mubr.bf16.gmra.mrb[0].mxu0 %v1941
  %v5014 = vpop.f32.mrb[0].mxu0
  %v5015 = vadd.f32 %v4822, %v5014
  %v5016 = vpop.f32.mrb[0].mxu0
  %v5017 = vadd.f32 %v4824, %v5016
  %v5018 = vpop.f32.mrb[0].mxu0
  %v5019 = vadd.f32 %v4826, %v5018
  %v5020 = vpop.f32.mrb[0].mxu0
  %v5021 = vadd.f32 %v4828, %v5020
  %5022 = vdwg.mxu0
  %v5023 = vmax.f32 %v3707, %v3711
  %v5024 = vmax.f32 %v5023, %v3717
  %v5025 = vmax.f32 %v5024, %v3721
  %v5026 = vmax.f32 %v5025, %v3727
  %v5027 = vmax.f32 %v5026, %v3731
  %v5028 = vmax.f32 %v5027, %v3737
  %v5029 = vmax.f32 %v5028, %v3741
  %v5030 = vmax.f32 %v5029, %v3747
  %v5031 = vmax.f32 %v5030, %v3751
  %v5032 = vmax.f32 %v5031, %v3757
  %v5033 = vmax.f32 %v5032, %v3761
  %v5034 = vmax.f32 %v5033, %v3767
  %v5035 = vmax.f32 %v5034, %v3771
  %v5036 = vmax.f32 %v5035, %v3777
  %v5037 = vmax.f32 %v5036, %v3781
  %v5038 = vrot.slane %v5037, 4
  %v5039 = vmax.f32 %v5037, %v5038
  %v5040 = vrot.slane %v5039, 2
  %v5041 = vmax.f32 %v5039, %v5040
  %v5042 = vrot.slane %v5041, 1
  %v5043 = vmax.f32 %v5041, %v5042
  %v5044 = vmax.f32 %v3709, %v3713
  %v5045 = vmax.f32 %v5044, %v3719
  %v5046 = vmax.f32 %v5045, %v3723
  %v5047 = vmax.f32 %v5046, %v3729
  %v5048 = vmax.f32 %v5047, %v3733
  %v5049 = vmax.f32 %v5048, %v3739
  %v5050 = vmax.f32 %v5049, %v3743
  %v5051 = vmax.f32 %v5050, %v3749
  %v5052 = vmax.f32 %v5051, %v3753
  %v5053 = vmax.f32 %v5052, %v3759
  %v5054 = vmax.f32 %v5053, %v3763
  %v5055 = vmax.f32 %v5054, %v3769
  %v5056 = vmax.f32 %v5055, %v3773
  %v5057 = vmax.f32 %v5056, %v3779
  %v5058 = vmax.f32 %v5057, %v3783
  %v5059 = vrot.slane %v5058, 4
  %v5060 = vmax.f32 %v5058, %v5059
  %v5061 = vrot.slane %v5060, 2
  %v5062 = vmax.f32 %v5060, %v5061
  %v5063 = vrot.slane %v5062, 1
  %v5064 = vmax.f32 %v5062, %v5063
  %v5065 = vmax.f32 %v4093, %v4097
  %v5066 = vmax.f32 %v5065, %v4103
  %v5067 = vmax.f32 %v5066, %v4107
  %v5068 = vmax.f32 %v5067, %v4113
  %v5069 = vmax.f32 %v5068, %v4117
  %v5070 = vmax.f32 %v5069, %v4123
  %v5071 = vmax.f32 %v5070, %v4127
  %v5072 = vmax.f32 %v5071, %v4133
  %v5073 = vmax.f32 %v5072, %v4137
  %v5074 = vmax.f32 %v5073, %v4143
  %v5075 = vmax.f32 %v5074, %v4147
  %v5076 = vmax.f32 %v5075, %v4153
  %v5077 = vmax.f32 %v5076, %v4157
  %v5078 = vmax.f32 %v5077, %v4163
  %v5079 = vmax.f32 %v5078, %v4167
  %v5080 = vrot.slane %v5079, 4
  %v5081 = vmax.f32 %v5079, %v5080
  %v5082 = vrot.slane %v5081, 2
  %v5083 = vmax.f32 %v5081, %v5082
  %v5084 = vrot.slane %v5083, 1
  %v5085 = vmax.f32 %v5083, %v5084
  %v5086 = vmax.f32 %v4095, %v4099
  %v5087 = vmax.f32 %v5086, %v4105
  %v5088 = vmax.f32 %v5087, %v4109
  %v5089 = vmax.f32 %v5088, %v4115
  %v5090 = vmax.f32 %v5089, %v4119
  %v5091 = vmax.f32 %v5090, %v4125
  %v5092 = vmax.f32 %v5091, %v4129
  %v5093 = vmax.f32 %v5092, %v4135
  %v5094 = vmax.f32 %v5093, %v4139
  %v5095 = vmax.f32 %v5094, %v4145
  %v5096 = vmax.f32 %v5095, %v4149
  %v5097 = vmax.f32 %v5096, %v4155
  %v5098 = vmax.f32 %v5097, %v4159
  %v5099 = vmax.f32 %v5098, %v4165
  %v5100 = vmax.f32 %v5099, %v4169
  %v5101 = vrot.slane %v5100, 4
  %v5102 = vmax.f32 %v5100, %v5101
  %v5103 = vrot.slane %v5102, 2
  %v5104 = vmax.f32 %v5102, %v5103
  %v5105 = vrot.slane %v5104, 1
  %v5106 = vmax.f32 %v5104, %v5105
  %v5107 = vmax.f32 %v4479, %v4483
  %v5108 = vmax.f32 %v5107, %v4489
  %v5109 = vmax.f32 %v5108, %v4493
  %v5110 = vmax.f32 %v5109, %v4499
  %v5111 = vmax.f32 %v5110, %v4503
  %v5112 = vmax.f32 %v5111, %v4509
  %v5113 = vmax.f32 %v5112, %v4513
  %v5114 = vmax.f32 %v5113, %v4519
  %v5115 = vmax.f32 %v5114, %v4523
  %v5116 = vmax.f32 %v5115, %v4529
  %v5117 = vmax.f32 %v5116, %v4533
  %v5118 = vmax.f32 %v5117, %v4539
  %v5119 = vmax.f32 %v5118, %v4543
  %v5120 = vmax.f32 %v5119, %v4549
  %v5121 = vmax.f32 %v5120, %v4553
  %v5122 = vrot.slane %v5121, 4
  %v5123 = vmax.f32 %v5121, %v5122
  %v5124 = vrot.slane %v5123, 2
  %v5125 = vmax.f32 %v5123, %v5124
  %v5126 = vrot.slane %v5125, 1
  %v5127 = vmax.f32 %v5125, %v5126
  %v5128 = vmax.f32 %v4481, %v4485
  %v5129 = vmax.f32 %v5128, %v4491
  %v5130 = vmax.f32 %v5129, %v4495
  %v5131 = vmax.f32 %v5130, %v4501
  %v5132 = vmax.f32 %v5131, %v4505
  %v5133 = vmax.f32 %v5132, %v4511
  %v5134 = vmax.f32 %v5133, %v4515
  %v5135 = vmax.f32 %v5134, %v4521
  %v5136 = vmax.f32 %v5135, %v4525
  %v5137 = vmax.f32 %v5136, %v4531
  %v5138 = vmax.f32 %v5137, %v4535
  %v5139 = vmax.f32 %v5138, %v4541
  %v5140 = vmax.f32 %v5139, %v4545
  %v5141 = vmax.f32 %v5140, %v4551
  %v5142 = vmax.f32 %v5141, %v4555
  %v5143 = vrot.slane %v5142, 4
  %v5144 = vmax.f32 %v5142, %v5143
  %v5145 = vrot.slane %v5144, 2
  %v5146 = vmax.f32 %v5144, %v5145
  %v5147 = vrot.slane %v5146, 1
  %v5148 = vmax.f32 %v5146, %v5147
  %v5149 = vmax.f32 %v4865, %v4869
  %v5150 = vmax.f32 %v5149, %v4875
  %v5151 = vmax.f32 %v5150, %v4879
  %v5152 = vmax.f32 %v5151, %v4885
  %v5153 = vmax.f32 %v5152, %v4889
  %v5154 = vmax.f32 %v5153, %v4895
  %v5155 = vmax.f32 %v5154, %v4899
  %v5156 = vmax.f32 %v5155, %v4905
  %v5157 = vmax.f32 %v5156, %v4909
  %v5158 = vmax.f32 %v5157, %v4915
  %v5159 = vmax.f32 %v5158, %v4919
  %v5160 = vmax.f32 %v5159, %v4925
  %v5161 = vmax.f32 %v5160, %v4929
  %v5162 = vmax.f32 %v5161, %v4935
  %v5163 = vmax.f32 %v5162, %v4939
  %v5164 = vrot.slane %v5163, 4
  %v5165 = vmax.f32 %v5163, %v5164
  %v5166 = vrot.slane %v5165, 2
  %v5167 = vmax.f32 %v5165, %v5166
  %v5168 = vrot.slane %v5167, 1
  %v5169 = vmax.f32 %v5167, %v5168
  %v5170 = vmax.f32 %v4867, %v4871
  %v5171 = vmax.f32 %v5170, %v4877
  %v5172 = vmax.f32 %v5171, %v4881
  %v5173 = vmax.f32 %v5172, %v4887
  %v5174 = vmax.f32 %v5173, %v4891
  %v5175 = vmax.f32 %v5174, %v4897
  %v5176 = vmax.f32 %v5175, %v4901
  %v5177 = vmax.f32 %v5176, %v4907
  %v5178 = vmax.f32 %v5177, %v4911
  %v5179 = vmax.f32 %v5178, %v4917
  %v5180 = vmax.f32 %v5179, %v4921
  %v5181 = vmax.f32 %v5180, %v4927
  %v5182 = vmax.f32 %v5181, %v4931
  %v5183 = vmax.f32 %v5182, %v4937
  %v5184 = vmax.f32 %v5183, %v4941
  %v5185 = vrot.slane %v5184, 4
  %v5186 = vmax.f32 %v5184, %v5185
  %v5187 = vrot.slane %v5186, 2
  %v5188 = vmax.f32 %v5186, %v5187
  %v5189 = vrot.slane %v5188, 1
  %v5190 = vmax.f32 %v5188, %v5189
  %v5191 = vmax.f32 %v3787, %v3791
  %v5192 = vmax.f32 %v5191, %v3797
  %v5193 = vmax.f32 %v5192, %v3801
  %v5194 = vmax.f32 %v5193, %v3807
  %v5195 = vmax.f32 %v5194, %v3811
  %v5196 = vmax.f32 %v5195, %v3817
  %v5197 = vmax.f32 %v5196, %v3821
  %v5198 = vmax.f32 %v5197, %v3827
  %v5199 = vmax.f32 %v5198, %v3831
  %v5200 = vmax.f32 %v5199, %v3837
  %v5201 = vmax.f32 %v5200, %v3841
  %v5202 = vmax.f32 %v5201, %v3847
  %v5203 = vmax.f32 %v5202, %v3851
  %v5204 = vmax.f32 %v5203, %v3857
  %v5205 = vmax.f32 %v5204, %v3861
  %v5206 = vrot.slane %v5205, 4
  %v5207 = vmax.f32 %v5205, %v5206
  %v5208 = vrot.slane %v5207, 2
  %v5209 = vmax.f32 %v5207, %v5208
  %v5210 = vrot.slane %v5209, 1
  %v5211 = vmax.f32 %v5209, %v5210
  %v5212 = vmax.f32 %v3789, %v3793
  %v5213 = vmax.f32 %v5212, %v3799
  %v5214 = vmax.f32 %v5213, %v3803
  %v5215 = vmax.f32 %v5214, %v3809
  %v5216 = vmax.f32 %v5215, %v3813
  %v5217 = vmax.f32 %v5216, %v3819
  %v5218 = vmax.f32 %v5217, %v3823
  %v5219 = vmax.f32 %v5218, %v3829
  %v5220 = vmax.f32 %v5219, %v3833
  %v5221 = vmax.f32 %v5220, %v3839
  %v5222 = vmax.f32 %v5221, %v3843
  %v5223 = vmax.f32 %v5222, %v3849
  %v5224 = vmax.f32 %v5223, %v3853
  %v5225 = vmax.f32 %v5224, %v3859
  %v5226 = vmax.f32 %v5225, %v3863
  %v5227 = vrot.slane %v5226, 4
  %v5228 = vmax.f32 %v5226, %v5227
  %v5229 = vrot.slane %v5228, 2
  %v5230 = vmax.f32 %v5228, %v5229
  %v5231 = vrot.slane %v5230, 1
  %v5232 = vmax.f32 %v5230, %v5231
  %v5233 = vmax.f32 %v4173, %v4177
  %v5234 = vmax.f32 %v5233, %v4183
  %v5235 = vmax.f32 %v5234, %v4187
  %v5236 = vmax.f32 %v5235, %v4193
  %v5237 = vmax.f32 %v5236, %v4197
  %v5238 = vmax.f32 %v5237, %v4203
  %v5239 = vmax.f32 %v5238, %v4207
  %v5240 = vmax.f32 %v5239, %v4213
  %v5241 = vmax.f32 %v5240, %v4217
  %v5242 = vmax.f32 %v5241, %v4223
  %v5243 = vmax.f32 %v5242, %v4227
  %v5244 = vmax.f32 %v5243, %v4233
  %v5245 = vmax.f32 %v5244, %v4237
  %v5246 = vmax.f32 %v5245, %v4243
  %v5247 = vmax.f32 %v5246, %v4247
  %v5248 = vrot.slane %v5247, 4
  %v5249 = vmax.f32 %v5247, %v5248
  %v5250 = vrot.slane %v5249, 2
  %v5251 = vmax.f32 %v5249, %v5250
  %v5252 = vrot.slane %v5251, 1
  %v5253 = vmax.f32 %v5251, %v5252
  %v5254 = vmax.f32 %v4175, %v4179
  %v5255 = vmax.f32 %v5254, %v4185
  %v5256 = vmax.f32 %v5255, %v4189
  %v5257 = vmax.f32 %v5256, %v4195
  %v5258 = vmax.f32 %v5257, %v4199
  %v5259 = vmax.f32 %v5258, %v4205
  %v5260 = vmax.f32 %v5259, %v4209
  %v5261 = vmax.f32 %v5260, %v4215
  %v5262 = vmax.f32 %v5261, %v4219
  %v5263 = vmax.f32 %v5262, %v4225
  %v5264 = vmax.f32 %v5263, %v4229
  %v5265 = vmax.f32 %v5264, %v4235
  %v5266 = vmax.f32 %v5265, %v4239
  %v5267 = vmax.f32 %v5266, %v4245
  %v5268 = vmax.f32 %v5267, %v4249
  %v5269 = vrot.slane %v5268, 4
  %v5270 = vmax.f32 %v5268, %v5269
  %v5271 = vrot.slane %v5270, 2
  %v5272 = vmax.f32 %v5270, %v5271
  %v5273 = vrot.slane %v5272, 1
  %v5274 = vmax.f32 %v5272, %v5273
  %v5275 = vmax.f32 %v4559, %v4563
  %v5276 = vmax.f32 %v5275, %v4569
  %v5277 = vmax.f32 %v5276, %v4573
  %v5278 = vmax.f32 %v5277, %v4579
  %v5279 = vmax.f32 %v5278, %v4583
  %v5280 = vmax.f32 %v5279, %v4589
  %v5281 = vmax.f32 %v5280, %v4593
  %v5282 = vmax.f32 %v5281, %v4599
  %v5283 = vmax.f32 %v5282, %v4603
  %v5284 = vmax.f32 %v5283, %v4609
  %v5285 = vmax.f32 %v5284, %v4613
  %v5286 = vmax.f32 %v5285, %v4619
  %v5287 = vmax.f32 %v5286, %v4623
  %v5288 = vmax.f32 %v5287, %v4629
  %v5289 = vmax.f32 %v5288, %v4633
  %v5290 = vrot.slane %v5289, 4
  %v5291 = vmax.f32 %v5289, %v5290
  %v5292 = vrot.slane %v5291, 2
  %v5293 = vmax.f32 %v5291, %v5292
  %v5294 = vrot.slane %v5293, 1
  %v5295 = vmax.f32 %v5293, %v5294
  %v5296 = vmax.f32 %v4561, %v4565
  %v5297 = vmax.f32 %v5296, %v4571
  %v5298 = vmax.f32 %v5297, %v4575
  %v5299 = vmax.f32 %v5298, %v4581
  %v5300 = vmax.f32 %v5299, %v4585
  %v5301 = vmax.f32 %v5300, %v4591
  %v5302 = vmax.f32 %v5301, %v4595
  %v5303 = vmax.f32 %v5302, %v4601
  %v5304 = vmax.f32 %v5303, %v4605
  %v5305 = vmax.f32 %v5304, %v4611
  %v5306 = vmax.f32 %v5305, %v4615
  %v5307 = vmax.f32 %v5306, %v4621
  %v5308 = vmax.f32 %v5307, %v4625
  %v5309 = vmax.f32 %v5308, %v4631
  %v5310 = vmax.f32 %v5309, %v4635
  %v5311 = vrot.slane %v5310, 4
  %v5312 = vmax.f32 %v5310, %v5311
  %v5313 = vrot.slane %v5312, 2
  %v5314 = vmax.f32 %v5312, %v5313
  %v5315 = vrot.slane %v5314, 1
  %v5316 = vmax.f32 %v5314, %v5315
  %v5317 = vmax.f32 %v4945, %v4949
  %v5318 = vmax.f32 %v5317, %v4955
  %v5319 = vmax.f32 %v5318, %v4959
  %v5320 = vmax.f32 %v5319, %v4965
  %v5321 = vmax.f32 %v5320, %v4969
  %v5322 = vmax.f32 %v5321, %v4975
  %v5323 = vmax.f32 %v5322, %v4979
  %v5324 = vmax.f32 %v5323, %v4985
  %v5325 = vmax.f32 %v5324, %v4989
  %v5326 = vmax.f32 %v5325, %v4995
  %v5327 = vmax.f32 %v5326, %v4999
  %v5328 = vmax.f32 %v5327, %v5005
  %v5329 = vmax.f32 %v5328, %v5009
  %v5330 = vmax.f32 %v5329, %v5015
  %v5331 = vmax.f32 %v5330, %v5019
  %v5332 = vrot.slane %v5331, 4
  %v5333 = vmax.f32 %v5331, %v5332
  %v5334 = vrot.slane %v5333, 2
  %v5335 = vmax.f32 %v5333, %v5334
  %v5336 = vrot.slane %v5335, 1
  %v5337 = vmax.f32 %v5335, %v5336
  %v5338 = vmax.f32 %v4947, %v4951
  %v5339 = vmax.f32 %v5338, %v4957
  %v5340 = vmax.f32 %v5339, %v4961
  %v5341 = vmax.f32 %v5340, %v4967
  %v5342 = vmax.f32 %v5341, %v4971
  %v5343 = vmax.f32 %v5342, %v4977
  %v5344 = vmax.f32 %v5343, %v4981
  %v5345 = vmax.f32 %v5344, %v4987
  %v5346 = vmax.f32 %v5345, %v4991
  %v5347 = vmax.f32 %v5346, %v4997
  %v5348 = vmax.f32 %v5347, %v5001
  %v5349 = vmax.f32 %v5348, %v5007
  %v5350 = vmax.f32 %v5349, %v5011
  %v5351 = vmax.f32 %v5350, %v5017
  %v5352 = vmax.f32 %v5351, %v5021
  %v5353 = vrot.slane %v5352, 4
  %v5354 = vmax.f32 %v5352, %v5353
  %v5355 = vrot.slane %v5354, 2
  %v5356 = vmax.f32 %v5354, %v5355
  %v5357 = vrot.slane %v5356, 1
  %v5358 = vmax.f32 %v5356, %v5357
  %p5359 = scmp.eq.s32.totalorder 0, 0
  // Predicated region
  $region34: #{pcn_encoder.3} parent=0 // pred_check
    %p5360 = pneg %p5359
  $region35: #{pcn_encoder.3} parent=0 // pred_check_branch
    %5362 = sbr.rel (%p5360) target = $region37
  $region36: #{pcn_encoder.3} parent=0 // pred_region
    %v5379 = vcombine.low %v5043, %v5064
    %v5380 = vcombine.low %v5085, %v5106
    %v5381 = vcombine.low %v5127, %v5148
    %v5382 = vcombine.low %v5169, %v5190
    %v5384 = vunpack.c.l.s4 1966171168
    %v5385 = vunpack.c.0.s8 %v5384
    %v5386 = vlaneseq
    %v5387 = vshrl.u32 %v5386, 7
    %v5388 = vsub.s32 %v5385, %v5387
    %v5389 = vrot.slane %v5379, %v5388
    %v5391 = vunpack.c.l.s4 1966171168
    %v5392 = vunpack.c.0.s8 %v5391
    %v5393 = vlaneseq
    %v5394 = vshrl.u32 %v5393, 7
    %v5395 = vsub.s32 %v5392, %v5394
    %v5396 = vrot.slane %v5380, %v5395
    %v5398 = vunpack.c.l.s4 1966171168
    %v5399 = vunpack.c.0.s8 %v5398
    %v5400 = vlaneseq
    %v5401 = vshrl.u32 %v5400, 7
    %v5402 = vsub.s32 %v5399, %v5401
    %v5403 = vrot.slane %v5381, %v5402
    %v5405 = vunpack.c.l.s4 1966171168
    %v5406 = vunpack.c.0.s8 %v5405
    %v5407 = vlaneseq
    %v5408 = vshrl.u32 %v5407, 7
    %v5409 = vsub.s32 %v5406, %v5408
    %v5410 = vrot.slane %v5382, %v5409
    %v5411 = vcombine.low %v5389, %v5396
    %v5412 = vcombine.low %v5403, %v5410
    %v5414 = vunpack.c.l.s4 1966171168
    %v5415 = vunpack.c.0.s8 %v5414
    %v5416 = vlaneseq
    %v5417 = vshrl.u32 %v5416, 7
    %v5418 = vsub.s32 %v5415, %v5417
    %v5419 = vrot.slane %v5411, %v5418
    %v5421 = vunpack.c.l.s4 1966171168
    %v5422 = vunpack.c.0.s8 %v5421
    %v5423 = vlaneseq
    %v5424 = vshrl.u32 %v5423, 7
    %v5425 = vsub.s32 %v5422, %v5424
    %v5426 = vrot.slane %v5412, %v5425
    %v5427 = vcombine.low %v5419, %v5426
    %v5428 = vcombine.low %v5211, %v5232
    %v5429 = vcombine.low %v5253, %v5274
    %v5430 = vcombine.low %v5295, %v5316
    %v5431 = vcombine.low %v5337, %v5358
    %v5433 = vunpack.c.l.s4 1966171168
    %v5434 = vunpack.c.0.s8 %v5433
    %v5435 = vlaneseq
    %v5436 = vshrl.u32 %v5435, 7
    %v5437 = vsub.s32 %v5434, %v5436
    %v5438 = vrot.slane %v5428, %v5437
    %v5440 = vunpack.c.l.s4 1966171168
    %v5441 = vunpack.c.0.s8 %v5440
    %v5442 = vlaneseq
    %v5443 = vshrl.u32 %v5442, 7
    %v5444 = vsub.s32 %v5441, %v5443
    %v5445 = vrot.slane %v5429, %v5444
    %v5447 = vunpack.c.l.s4 1966171168
    %v5448 = vunpack.c.0.s8 %v5447
    %v5449 = vlaneseq
    %v5450 = vshrl.u32 %v5449, 7
    %v5451 = vsub.s32 %v5448, %v5450
    %v5452 = vrot.slane %v5430, %v5451
    %v5454 = vunpack.c.l.s4 1966171168
    %v5455 = vunpack.c.0.s8 %v5454
    %v5456 = vlaneseq
    %v5457 = vshrl.u32 %v5456, 7
    %v5458 = vsub.s32 %v5455, %v5457
    %v5459 = vrot.slane %v5431, %v5458
    %v5460 = vcombine.low %v5438, %v5445
    %v5461 = vcombine.low %v5452, %v5459
    %v5463 = vunpack.c.l.s4 1966171168
    %v5464 = vunpack.c.0.s8 %v5463
    %v5465 = vlaneseq
    %v5466 = vshrl.u32 %v5465, 7
    %v5467 = vsub.s32 %v5464, %v5466
    %v5468 = vrot.slane %v5460, %v5467
    %v5470 = vunpack.c.l.s4 1966171168
    %v5471 = vunpack.c.0.s8 %v5470
    %v5472 = vlaneseq
    %v5473 = vshrl.u32 %v5472, 7
    %v5474 = vsub.s32 %v5471, %v5473
    %v5475 = vrot.slane %v5461, %v5474
    %v5476 = vcombine.low %v5468, %v5475
    %5479 = vst [vmem:[%s8] sm:$0xff] %v5427
    %5480 = vst [vmem:[%s8 + $0x8] sm:$0xff] %v5476
  $region37: #{pcn_encoder.3} parent=0 // pred_fallthru
    _
  %p5481 = scmp.gt.s32.totalorder 0, 0
  // Predicated region
  $region38: #{pcn_encoder.3} parent=0 // pred_check
    %p5482 = pneg %p5481
  $region39: #{pcn_encoder.3} parent=0 // pred_check_branch
    %5484 = sbr.rel (%p5482) target = $region41
  $region40: #{pcn_encoder.3} parent=0 // pred_region
    %v5485 = vld [vmem:[%s8] sm:$0xff]
    %v5486 = vld [vmem:[%s8 + $0x8] sm:$0xff]
    %v5503 = vcombine.low %v5043, %v5064
    %v5504 = vcombine.low %v5085, %v5106
    %v5505 = vcombine.low %v5127, %v5148
    %v5506 = vcombine.low %v5169, %v5190
    %v5508 = vunpack.c.l.s4 1966171168
    %v5509 = vunpack.c.0.s8 %v5508
    %v5510 = vlaneseq
    %v5511 = vshrl.u32 %v5510, 7
    %v5512 = vsub.s32 %v5509, %v5511
    %v5513 = vrot.slane %v5503, %v5512
    %v5515 = vunpack.c.l.s4 1966171168
    %v5516 = vunpack.c.0.s8 %v5515
    %v5517 = vlaneseq
    %v5518 = vshrl.u32 %v5517, 7
    %v5519 = vsub.s32 %v5516, %v5518
    %v5520 = vrot.slane %v5504, %v5519
    %v5522 = vunpack.c.l.s4 1966171168
    %v5523 = vunpack.c.0.s8 %v5522
    %v5524 = vlaneseq
    %v5525 = vshrl.u32 %v5524, 7
    %v5526 = vsub.s32 %v5523, %v5525
    %v5527 = vrot.slane %v5505, %v5526
    %v5529 = vunpack.c.l.s4 1966171168
    %v5530 = vunpack.c.0.s8 %v5529
    %v5531 = vlaneseq
    %v5532 = vshrl.u32 %v5531, 7
    %v5533 = vsub.s32 %v5530, %v5532
    %v5534 = vrot.slane %v5506, %v5533
    %v5535 = vcombine.low %v5513, %v5520
    %v5536 = vcombine.low %v5527, %v5534
    %v5538 = vunpack.c.l.s4 1966171168
    %v5539 = vunpack.c.0.s8 %v5538
    %v5540 = vlaneseq
    %v5541 = vshrl.u32 %v5540, 7
    %v5542 = vsub.s32 %v5539, %v5541
    %v5543 = vrot.slane %v5535, %v5542
    %v5545 = vunpack.c.l.s4 1966171168
    %v5546 = vunpack.c.0.s8 %v5545
    %v5547 = vlaneseq
    %v5548 = vshrl.u32 %v5547, 7
    %v5549 = vsub.s32 %v5546, %v5548
    %v5550 = vrot.slane %v5536, %v5549
    %v5551 = vcombine.low %v5543, %v5550
    %v5552 = vcombine.low %v5211, %v5232
    %v5553 = vcombine.low %v5253, %v5274
    %v5554 = vcombine.low %v5295, %v5316
    %v5555 = vcombine.low %v5337, %v5358
    %v5557 = vunpack.c.l.s4 1966171168
    %v5558 = vunpack.c.0.s8 %v5557
    %v5559 = vlaneseq
    %v5560 = vshrl.u32 %v5559, 7
    %v5561 = vsub.s32 %v5558, %v5560
    %v5562 = vrot.slane %v5552, %v5561
    %v5564 = vunpack.c.l.s4 1966171168
    %v5565 = vunpack.c.0.s8 %v5564
    %v5566 = vlaneseq
    %v5567 = vshrl.u32 %v5566, 7
    %v5568 = vsub.s32 %v5565, %v5567
    %v5569 = vrot.slane %v5553, %v5568
    %v5571 = vunpack.c.l.s4 1966171168
    %v5572 = vunpack.c.0.s8 %v5571
    %v5573 = vlaneseq
    %v5574 = vshrl.u32 %v5573, 7
    %v5575 = vsub.s32 %v5572, %v5574
    %v5576 = vrot.slane %v5554, %v5575
    %v5578 = vunpack.c.l.s4 1966171168
    %v5579 = vunpack.c.0.s8 %v5578
    %v5580 = vlaneseq
    %v5581 = vshrl.u32 %v5580, 7
    %v5582 = vsub.s32 %v5579, %v5581
    %v5583 = vrot.slane %v5555, %v5582
    %v5584 = vcombine.low %v5562, %v5569
    %v5585 = vcombine.low %v5576, %v5583
    %v5587 = vunpack.c.l.s4 1966171168
    %v5588 = vunpack.c.0.s8 %v5587
    %v5589 = vlaneseq
    %v5590 = vshrl.u32 %v5589, 7
    %v5591 = vsub.s32 %v5588, %v5590
    %v5592 = vrot.slane %v5584, %v5591
    %v5594 = vunpack.c.l.s4 1966171168
    %v5595 = vunpack.c.0.s8 %v5594
    %v5596 = vlaneseq
    %v5597 = vshrl.u32 %v5596, 7
    %v5598 = vsub.s32 %v5595, %v5597
    %v5599 = vrot.slane %v5585, %v5598
    %v5600 = vcombine.low %v5592, %v5599
    %v5603 = vmax.f32 %v5485, %v5551
    %v5604 = vmax.f32 %v5486, %v5600
    %5605 = vst [vmem:[%s8] sm:$0xff] %v5603
    %5606 = vst [vmem:[%s8 + $0x8] sm:$0xff] %v5604
  $region41: #{pcn_encoder.3} parent=0 // pred_fallthru
    _
  // Predicated region
  $region42: #{pcn_encoder.3} parent=0 // pred_check
    _
  $region43: #{pcn_encoder.3} parent=0 // pred_check_branch
    %5608 = sbr.rel (0) target = $region45
  $region44: #{pcn_encoder.3} parent=0 // pred_region
    _
  $region45: #{pcn_encoder.3} parent=0 // pred_fallthru
    _
  // Predicated region
  $region46: #{pcn_encoder.3} parent=0 // pred_check
    _
  $region47: #{pcn_encoder.3} parent=0 // pred_check_branch
    %5610 = sbr.rel (0) target = $region49
  $region48: #{pcn_encoder.3} parent=0 // pred_region
    _
  $region49: #{pcn_encoder.3} parent=0 // pred_fallthru
    _

</llo_original>
